<compile_context>
chip_gen: v7x
topology: tpu7x:2x2x1
jax: 0.10.0
libtpu: 0.0.40
codegen_flags: <defaults>
</compile_context>

<pallas_src>
import jax
import jax.numpy as jnp
from jax.experimental import pallas as pl
from jax.experimental.pallas import tpu as pltpu

KSIZE = 7
EPS = 1e-5                                   # PyTorch InstanceNorm1d default
CHANNELS = [2, 4, 8, 16, 32, 16, 8, 4, 1]    # layer channel chain
PATCH_ROWS = 128                             # >= max(K*Cin, 4*Cin) over layers
PATCH_COLS = 128                             # >= max patch width (122)


def _conv_len(l):
    return (l - KSIZE) // 2 + 1


def _deconv_len(l):
    return 2 * (l - 1) + KSIZE


# ------------------------------ kernel body -------------------------------- #
def _instance_norm_relu(y):
    # InstanceNorm1d(affine=False, eps=1e-5) + ReLU with single-pass stats:
    # the two cross-lane reductions are independent and issue back-to-back.
    inv_n = 1.0 / y.shape[-1]
    s1 = jnp.sum(y, axis=-1, keepdims=True)
    s2 = jnp.sum(y * y, axis=-1, keepdims=True)
    mean = s1 * inv_n
    var = s2 * inv_n - mean * mean
    return jnp.maximum((y - mean) * jax.lax.rsqrt(var + EPS), 0.0)


def _conv_block(src, w_ref, dsel_ref, patch_ref):
    # Stride-2 valid Conv1d as ONE matmul: im2col the 7 shifted views into a
    # (K*Cin, L_full) VMEM patch (7 sub-stores), dot against (Cout, K*Cin)
    # weights, then a precomputed 0/1 downsample matmul.  No bias (cancelled
    # by the following InstanceNorm).
    cin, l_in = src.shape
    l_full = l_in - (KSIZE - 1)
    for t in range(KSIZE):
        patch_ref[pl.ds(t * cin, cin), pl.ds(0, l_full)] = src[:, t:t + l_full]
    patch = patch_ref[pl.ds(0, KSIZE * cin), pl.ds(0, l_full)]
    y_full = jnp.dot(w_ref[...], patch, preferred_element_type=jnp.float32)
    y = jnp.dot(y_full, dsel_ref[...], preferred_element_type=jnp.float32)
    return _instance_norm_relu(y)


def _deconv_block(src, we_ref, wo_ref, se_ref, so_ref, patch_ref, *, norm_relu):
    # Stride-2 ConvTranspose1d via polyphase decomposition (no zero-inserted
    # upsample).  Even phase:  y[:, 2m]   = sum_t w[:, :, 6-2t] * x[:, m+t-3]
    #             Odd  phase:  y[:, 2m+1] = sum_t w[:, :, 5-2t] * x[:, m+t-2]
    # Each phase is one im2col matmul; the interleave is two precomputed 0/1
    # selection matmuls.
    cin, l_in = src.shape
    l_e = l_in + 3
    l_o = l_in + 2

    # Even phase patch: pe[t*Cin + c, m] = x[c, m + t - 3] (zero out of range).
    patch_ref[pl.ds(0, 4 * cin), pl.ds(0, l_e)] = jnp.zeros((4 * cin, l_e),
                                                            jnp.float32)
    for t in range(4):
        patch_ref[pl.ds(t * cin, cin), pl.ds(3 - t, l_in)] = src
    z_e = jnp.dot(we_ref[...], patch_ref[pl.ds(0, 4 * cin), pl.ds(0, l_e)],
                  preferred_element_type=jnp.float32)

    # Odd phase patch: po[t*Cin + c, m] = x[c, m + t - 2] (zero out of range).
    patch_ref[pl.ds(0, 3 * cin), pl.ds(0, l_o)] = jnp.zeros((3 * cin, l_o),
                                                            jnp.float32)
    for t in range(3):
        patch_ref[pl.ds(t * cin, cin), pl.ds(2 - t, l_in)] = src
    z_o = jnp.dot(wo_ref[...], patch_ref[pl.ds(0, 3 * cin), pl.ds(0, l_o)],
                  preferred_element_type=jnp.float32)

    # Interleave even/odd phases into the length-(2*l_in + 5) output.
    y = (jnp.dot(z_e, se_ref[...], preferred_element_type=jnp.float32)
         + jnp.dot(z_o, so_ref[...], preferred_element_type=jnp.float32))
    return _instance_norm_relu(y) if norm_relu else y


def _conv8_kernel(x_ref, *args):
    conv_args = args[:8]            # (w2, dsel) x 4
    dec_args = args[8:24]           # (we2, wo2, se, so) x 4
    b8_ref = args[24]               # final deconv bias (1, 1)
    o_ref = args[25]
    patch_ref = args[26]            # shared (128, 128) VMEM im2col scratch

    # Tanh once on the raw (2, L) input.
    h = jnp.tanh(x_ref[0])

    # Encoder: 4x [stride-2 Conv1d -> InstanceNorm -> ReLU], all VMEM/vreg.
    for i in range(4):
        h = _conv_block(h, conv_args[2 * i], conv_args[2 * i + 1], patch_ref)

    # Decoder: 4x stride-2 ConvTranspose1d; last one keeps bias, no norm/ReLU.
    for j in range(4):
        we, wo, se, so = dec_args[4 * j:4 * j + 4]
        h = _deconv_block(h, we, wo, se, so, patch_ref, norm_relu=(j < 3))
    y = h + b8_ref[...]                                   # (1, 123)

    # Right zero-pad to L: zero-init + masked partial store (lane-dense
    # 128-wide HBM writeback, no pad matmul).
    out_len = o_ref.shape[-1]
    cur_len = y.shape[-1]
    if cur_len == out_len:
        o_ref[...] = y[None]
    else:
        o_ref[...] = jnp.zeros_like(o_ref)
        o_ref[:, :, pl.ds(0, cur_len)] = y[None]


# --------------------------- pallas_call builder ---------------------------- #
def _build_conv8_call(B, L, param_shapes):
    in_specs = [pl.BlockSpec((1, CHANNELS[0], L), lambda b: (b, 0, 0))]
    for shp in param_shapes:
        in_specs.append(pl.BlockSpec(shp, lambda b, _n=len(shp): (0,) * _n))

    return pl.pallas_call(
        _conv8_kernel,
        out_shape=jax.ShapeDtypeStruct((B, 1, L), jnp.float32),
        grid_spec=pltpu.PrefetchScalarGridSpec(
            num_scalar_prefetch=0,
            grid=(B,),
            in_specs=in_specs,
            out_specs=pl.BlockSpec((1, 1, L), lambda b: (b, 0, 0)),
            scratch_shapes=[pltpu.VMEM((PATCH_ROWS, PATCH_COLS), jnp.float32)]),
        compiler_params=pltpu.CompilerParams(
            dimension_semantics=("parallel",)),
    )


# ------------------------- parameters / wrappers --------------------------- #
def init_params(key):
    params = {}
    keys = jax.random.split(key, 16)
    ki = 0
    for i in range(4):
        cin, cout = CHANNELS[i], CHANNELS[i + 1]
        bound = 1.0 / (cin * KSIZE) ** 0.5
        params[f"conv{i}_w"] = jax.random.uniform(
            keys[ki], (cout, cin, KSIZE), jnp.float32, -bound, bound); ki += 1
        params[f"conv{i}_b"] = jax.random.uniform(
            keys[ki], (cout,), jnp.float32, -bound, bound); ki += 1
    for i in range(4):
        cin, cout = CHANNELS[4 + i], CHANNELS[5 + i]
        bound = 1.0 / (cin * KSIZE) ** 0.5
        params[f"deconv{i}_w"] = jax.random.uniform(
            keys[ki], (cin, cout, KSIZE), jnp.float32, -bound, bound); ki += 1
        params[f"deconv{i}_b"] = jax.random.uniform(
            keys[ki], (cout,), jnp.float32, -bound, bound); ki += 1
    return params


def prepare_params(params, L=128):
    # One-time preprocessing (hoisted out of the forward pass):
    #  * conv weights   -> (Cout, K*Cin)  tap-major im2col layout
    #  * deconv weights -> even/odd polyphase (Cout, 4*Cin) / (Cout, 3*Cin)
    #  * precomputed 0/1 downsample / interleave selection matrices
    #  * biases of layers followed by InstanceNorm(affine=False) are dropped
    #    (exact no-op under the mean subtraction); only the final bias kept.
    lens = [L]
    for _ in range(4):
        lens.append(_conv_len(lens[-1]))
    for _ in range(4):
        lens.append(_deconv_len(lens[-1]))
    assert lens[-1] <= L, lens

    flat = []
    for i in range(4):
        w = params[f"conv{i}_w"]                          # (Cout, Cin, K)
        cout, cin, _ = w.shape
        flat.append(jnp.transpose(w, (0, 2, 1)).reshape(cout, KSIZE * cin))
        l_in, l_out = lens[i], lens[i + 1]
        l_full = l_in - (KSIZE - 1)
        r = jnp.arange(l_full)[:, None]
        c = jnp.arange(l_out)[None, :]
        flat.append((r == 2 * c).astype(jnp.float32))     # stride-2 downsample
    for j in range(4):
        w = params[f"deconv{j}_w"]                        # (Cin, Cout, K)
        cin, cout, _ = w.shape
        # even taps: w[..., 6-2t], t=0..3 ; odd taps: w[..., 5-2t], t=0..2
        we = jnp.transpose(w[:, :, ::-2], (1, 2, 0)).reshape(cout, 4 * cin)
        wo = jnp.transpose(w[:, :, 5::-2], (1, 2, 0)).reshape(cout, 3 * cin)
        flat += [we, wo]
        l_in, l_out = lens[4 + j], lens[5 + j]
        l_e, l_o = l_in + 3, l_in + 2
        o = jnp.arange(l_out)[None, :]
        me = jnp.arange(l_e)[:, None]
        mo = jnp.arange(l_o)[:, None]
        flat.append((o == 2 * me).astype(jnp.float32))        # even interleave
        flat.append((o == 2 * mo + 1).astype(jnp.float32))    # odd interleave
    flat.append(params["deconv3_b"][:, None].astype(jnp.float32))   # (1, 1)
    return tuple(flat)


@jax.jit
def conv_8_layer_forward(prepped, x, sub_id):
    # x: (B, 1, L), sub_id: (B, 1, L_sub)
    B, _, L = x.shape
    sub_pad = jnp.pad(sub_id, ((0, 0), (0, 0), (0, L - sub_id.shape[2])))
    h = jnp.concatenate([x, sub_pad], axis=1)             # (B, 2, L)
    shapes = tuple(p.shape for p in prepped)
    return _build_conv8_call(B, L, shapes)(h, *prepped)


if __name__ == "__main__":
    key = jax.random.PRNGKey(0)
    k_p, k_x, k_s = jax.random.split(key, 3)
    params = init_params(k_p)
    prepped = prepare_params(params, L=128)

    B, L, L_sub = 2, 128, 8
    x = jax.random.normal(k_x, (B, 1, L), jnp.float32)
    sub_id = jax.random.normal(k_s, (B, 1, L_sub), jnp.float32)

    out = conv_8_layer_forward(prepped, x, sub_id)
    out = jax.block_until_ready(out)
    assert out.shape == (B, 1, L), out.shape
    assert out.dtype == jnp.float32
    assert bool(jnp.all(jnp.isfinite(out)))
    print("KERNEL_OK")
</pallas_src>

<mosaic_0001>
module attributes {stable_mosaic.version = 11 : i64} {
  func.func @_conv8_kernel(%arg0: i32, %arg1: memref<1x2x128xf32, #tpu.memory_space<vmem>>, %arg2: memref<4x14xf32, #tpu.memory_space<vmem>>, %arg3: memref<122x61xf32, #tpu.memory_space<vmem>>, %arg4: memref<8x28xf32, #tpu.memory_space<vmem>>, %arg5: memref<55x28xf32, #tpu.memory_space<vmem>>, %arg6: memref<16x56xf32, #tpu.memory_space<vmem>>, %arg7: memref<22x11xf32, #tpu.memory_space<vmem>>, %arg8: memref<32x112xf32, #tpu.memory_space<vmem>>, %arg9: memref<5x3xf32, #tpu.memory_space<vmem>>, %arg10: memref<16x128xf32, #tpu.memory_space<vmem>>, %arg11: memref<16x96xf32, #tpu.memory_space<vmem>>, %arg12: memref<6x11xf32, #tpu.memory_space<vmem>>, %arg13: memref<5x11xf32, #tpu.memory_space<vmem>>, %arg14: memref<8x64xf32, #tpu.memory_space<vmem>>, %arg15: memref<8x48xf32, #tpu.memory_space<vmem>>, %arg16: memref<14x27xf32, #tpu.memory_space<vmem>>, %arg17: memref<13x27xf32, #tpu.memory_space<vmem>>, %arg18: memref<4x32xf32, #tpu.memory_space<vmem>>, %arg19: memref<4x24xf32, #tpu.memory_space<vmem>>, %arg20: memref<30x59xf32, #tpu.memory_space<vmem>>, %arg21: memref<29x59xf32, #tpu.memory_space<vmem>>, %arg22: memref<1x16xf32, #tpu.memory_space<vmem>>, %arg23: memref<1x12xf32, #tpu.memory_space<vmem>>, %arg24: memref<62x123xf32, #tpu.memory_space<vmem>>, %arg25: memref<61x123xf32, #tpu.memory_space<vmem>>, %arg26: memref<1x1xf32, #tpu.memory_space<vmem>>, %arg27: memref<1x1x128xf32, #tpu.memory_space<vmem>>, %arg28: memref<128x128xf32, #tpu.memory_space<vmem>>) attributes {dimension_semantics = [#tpu.dimension_semantics<parallel>], iteration_bounds = array<i64: 2>, scalar_prefetch = 0 : i64, scratch_operands = 1 : i64, tpu.core_type = #tpu.core_type<tc>, window_params = [{transform_indices = @transform_0, window_bounds = array<i64: 1, 2, 128>}, {pipeline_mode = #tpu.pipeline_mode<synchronous>, transform_indices = @transform_1, window_bounds = array<i64: 4, 14>}, {pipeline_mode = #tpu.pipeline_mode<synchronous>, transform_indices = @transform_2, window_bounds = array<i64: 122, 61>}, {pipeline_mode = #tpu.pipeline_mode<synchronous>, transform_indices = @transform_3, window_bounds = array<i64: 8, 28>}, {pipeline_mode = #tpu.pipeline_mode<synchronous>, transform_indices = @transform_4, window_bounds = array<i64: 55, 28>}, {pipeline_mode = #tpu.pipeline_mode<synchronous>, transform_indices = @transform_5, window_bounds = array<i64: 16, 56>}, {pipeline_mode = #tpu.pipeline_mode<synchronous>, transform_indices = @transform_6, window_bounds = array<i64: 22, 11>}, {pipeline_mode = #tpu.pipeline_mode<synchronous>, transform_indices = @transform_7, window_bounds = array<i64: 32, 112>}, {pipeline_mode = #tpu.pipeline_mode<synchronous>, transform_indices = @transform_8, window_bounds = array<i64: 5, 3>}, {pipeline_mode = #tpu.pipeline_mode<synchronous>, transform_indices = @transform_9, window_bounds = array<i64: 16, 128>}, {pipeline_mode = #tpu.pipeline_mode<synchronous>, transform_indices = @transform_10, window_bounds = array<i64: 16, 96>}, {pipeline_mode = #tpu.pipeline_mode<synchronous>, transform_indices = @transform_11, window_bounds = array<i64: 6, 11>}, {pipeline_mode = #tpu.pipeline_mode<synchronous>, transform_indices = @transform_12, window_bounds = array<i64: 5, 11>}, {pipeline_mode = #tpu.pipeline_mode<synchronous>, transform_indices = @transform_13, window_bounds = array<i64: 8, 64>}, {pipeline_mode = #tpu.pipeline_mode<synchronous>, transform_indices = @transform_14, window_bounds = array<i64: 8, 48>}, {pipeline_mode = #tpu.pipeline_mode<synchronous>, transform_indices = @transform_15, window_bounds = array<i64: 14, 27>}, {pipeline_mode = #tpu.pipeline_mode<synchronous>, transform_indices = @transform_16, window_bounds = array<i64: 13, 27>}, {pipeline_mode = #tpu.pipeline_mode<synchronous>, transform_indices = @transform_17, window_bounds = array<i64: 4, 32>}, {pipeline_mode = #tpu.pipeline_mode<synchronous>, transform_indices = @transform_18, window_bounds = array<i64: 4, 24>}, {pipeline_mode = #tpu.pipeline_mode<synchronous>, transform_indices = @transform_19, window_bounds = array<i64: 30, 59>}, {pipeline_mode = #tpu.pipeline_mode<synchronous>, transform_indices = @transform_20, window_bounds = array<i64: 29, 59>}, {pipeline_mode = #tpu.pipeline_mode<synchronous>, transform_indices = @transform_21, window_bounds = array<i64: 1, 16>}, {pipeline_mode = #tpu.pipeline_mode<synchronous>, transform_indices = @transform_22, window_bounds = array<i64: 1, 12>}, {pipeline_mode = #tpu.pipeline_mode<synchronous>, transform_indices = @transform_23, window_bounds = array<i64: 62, 123>}, {pipeline_mode = #tpu.pipeline_mode<synchronous>, transform_indices = @transform_24, window_bounds = array<i64: 61, 123>}, {pipeline_mode = #tpu.pipeline_mode<synchronous>, transform_indices = @transform_25, window_bounds = array<i64: 1, 1>}, {transform_indices = @transform_26, window_bounds = array<i64: 1, 1, 128>}]} {
    %c0 = arith.constant 0 : index
    %c0_0 = arith.constant 0 : index
    %c0_1 = arith.constant 0 : index
    %0 = vector.load %arg1[%c0, %c0_0, %c0_1] : memref<1x2x128xf32, #tpu.memory_space<vmem>>, vector<1x2x128xf32>
    %1 = vector.shape_cast %0 : vector<1x2x128xf32> to vector<2x128xf32>
    %2 = math.tanh %1 : vector<2x128xf32>
    %3 = vector.extract_strided_slice %2 {offsets = [0, 0], sizes = [2, 122], strides = [1, 1]} : vector<2x128xf32> to vector<2x122xf32>
    %c0_2 = arith.constant 0 : index
    %c0_3 = arith.constant 0 : index
    %4 = vector.load %arg28[%c0_2, %c0_3] : memref<128x128xf32, #tpu.memory_space<vmem>>, vector<2x122xf32>
    tpu.vector_store %arg28[%c0_2, %c0_3], %3 {strides = array<i32>} : memref<128x128xf32, #tpu.memory_space<vmem>>, vector<2x122xf32>,
    %5 = vector.extract_strided_slice %2 {offsets = [0, 1], sizes = [2, 122], strides = [1, 1]} : vector<2x128xf32> to vector<2x122xf32>
    %c2 = arith.constant 2 : index
    %c0_4 = arith.constant 0 : index
    %6 = vector.load %arg28[%c2, %c0_4] : memref<128x128xf32, #tpu.memory_space<vmem>>, vector<2x122xf32>
    tpu.vector_store %arg28[%c2, %c0_4], %5 {strides = array<i32>} : memref<128x128xf32, #tpu.memory_space<vmem>>, vector<2x122xf32>,
    %7 = vector.extract_strided_slice %2 {offsets = [0, 2], sizes = [2, 122], strides = [1, 1]} : vector<2x128xf32> to vector<2x122xf32>
    %c4 = arith.constant 4 : index
    %c0_5 = arith.constant 0 : index
    %8 = vector.load %arg28[%c4, %c0_5] : memref<128x128xf32, #tpu.memory_space<vmem>>, vector<2x122xf32>
    tpu.vector_store %arg28[%c4, %c0_5], %7 {strides = array<i32>} : memref<128x128xf32, #tpu.memory_space<vmem>>, vector<2x122xf32>,
    %9 = vector.extract_strided_slice %2 {offsets = [0, 3], sizes = [2, 122], strides = [1, 1]} : vector<2x128xf32> to vector<2x122xf32>
    %c6 = arith.constant 6 : index
    %c0_6 = arith.constant 0 : index
    %10 = vector.load %arg28[%c6, %c0_6] : memref<128x128xf32, #tpu.memory_space<vmem>>, vector<2x122xf32>
    tpu.vector_store %arg28[%c6, %c0_6], %9 {strides = array<i32>} : memref<128x128xf32, #tpu.memory_space<vmem>>, vector<2x122xf32>,
    %11 = vector.extract_strided_slice %2 {offsets = [0, 4], sizes = [2, 122], strides = [1, 1]} : vector<2x128xf32> to vector<2x122xf32>
    %c8 = arith.constant 8 : index
    %c0_7 = arith.constant 0 : index
    %12 = vector.load %arg28[%c8, %c0_7] : memref<128x128xf32, #tpu.memory_space<vmem>>, vector<2x122xf32>
    tpu.vector_store %arg28[%c8, %c0_7], %11 {strides = array<i32>} : memref<128x128xf32, #tpu.memory_space<vmem>>, vector<2x122xf32>,
    %13 = vector.extract_strided_slice %2 {offsets = [0, 5], sizes = [2, 122], strides = [1, 1]} : vector<2x128xf32> to vector<2x122xf32>
    %c10 = arith.constant 10 : index
    %c0_8 = arith.constant 0 : index
    %14 = vector.load %arg28[%c10, %c0_8] : memref<128x128xf32, #tpu.memory_space<vmem>>, vector<2x122xf32>
    tpu.vector_store %arg28[%c10, %c0_8], %13 {strides = array<i32>} : memref<128x128xf32, #tpu.memory_space<vmem>>, vector<2x122xf32>,
    %15 = vector.extract_strided_slice %2 {offsets = [0, 6], sizes = [2, 122], strides = [1, 1]} : vector<2x128xf32> to vector<2x122xf32>
    %c12 = arith.constant 12 : index
    %c0_9 = arith.constant 0 : index
    %16 = vector.load %arg28[%c12, %c0_9] : memref<128x128xf32, #tpu.memory_space<vmem>>, vector<2x122xf32>
    tpu.vector_store %arg28[%c12, %c0_9], %15 {strides = array<i32>} : memref<128x128xf32, #tpu.memory_space<vmem>>, vector<2x122xf32>,
    %c0_10 = arith.constant 0 : index
    %c0_11 = arith.constant 0 : index
    %17 = vector.load %arg28[%c0_10, %c0_11] : memref<128x128xf32, #tpu.memory_space<vmem>>, vector<14x122xf32>
    %c0_12 = arith.constant 0 : index
    %c0_13 = arith.constant 0 : index
    %18 = vector.load %arg2[%c0_12, %c0_13] : memref<4x14xf32, #tpu.memory_space<vmem>>, vector<4x14xf32>
    %cst = arith.constant dense<0.000000e+00> : vector<4x122xf32>
    %19 = tpu.matmul %18, %17, %cst {dimension_numbers = #tpu.dot_dimension_numbers<[1], [0], [0], [1], [0, 0, 1, 1], [], []>} : vector<4x14xf32>, vector<14x122xf32>, vector<4x122xf32> -> vector<4x122xf32>
    %c0_14 = arith.constant 0 : index
    %c0_15 = arith.constant 0 : index
    %20 = vector.load %arg3[%c0_14, %c0_15] : memref<122x61xf32, #tpu.memory_space<vmem>>, vector<122x61xf32>
    %cst_16 = arith.constant dense<0.000000e+00> : vector<4x61xf32>
    %21 = tpu.matmul %19, %20, %cst_16 {dimension_numbers = #tpu.dot_dimension_numbers<[1], [0], [0], [1], [0, 0, 1, 1], [], []>} : vector<4x122xf32>, vector<122x61xf32>, vector<4x61xf32> -> vector<4x61xf32>
    %cst_17 = arith.constant dense<0.000000e+00> : vector<4xf32>
    %22 = vector.multi_reduction <add>, %21, %cst_17 [1] : vector<4x61xf32> to vector<4xf32>
    %23 = vector.shape_cast %22 : vector<4xf32> to vector<4x1xf32>
    %24 = arith.mulf %21, %21 : vector<4x61xf32>
    %cst_18 = arith.constant dense<0.000000e+00> : vector<4xf32>
    %25 = vector.multi_reduction <add>, %24, %cst_18 [1] : vector<4x61xf32> to vector<4xf32>
    %26 = vector.shape_cast %25 : vector<4xf32> to vector<4x1xf32>
    %cst_19 = arith.constant 0.0163934417 : f32
    %27 = vector.broadcast %cst_19 : f32 to vector<4x1xf32>
    %28 = arith.mulf %23, %27 : vector<4x1xf32>
    %cst_20 = arith.constant 0.0163934417 : f32
    %29 = vector.broadcast %cst_20 : f32 to vector<4x1xf32>
    %30 = arith.mulf %26, %29 : vector<4x1xf32>
    %31 = arith.mulf %28, %28 : vector<4x1xf32>
    %32 = arith.subf %30, %31 : vector<4x1xf32>
    %33 = vector.broadcast %28 : vector<4x1xf32> to vector<4x61xf32>
    %34 = arith.subf %21, %33 : vector<4x61xf32>
    %cst_21 = arith.constant 9.99999974E-6 : f32
    %35 = vector.broadcast %cst_21 : f32 to vector<4x1xf32>
    %36 = arith.addf %32, %35 : vector<4x1xf32>
    %37 = math.rsqrt %36 : vector<4x1xf32>
    %38 = vector.broadcast %37 : vector<4x1xf32> to vector<4x61xf32>
    %39 = arith.mulf %34, %38 : vector<4x61xf32>
    %cst_22 = arith.constant 0.000000e+00 : f32
    %40 = vector.broadcast %cst_22 : f32 to vector<4x61xf32>
    %41 = arith.maximumf %39, %40 : vector<4x61xf32>
    %42 = vector.extract_strided_slice %41 {offsets = [0, 0], sizes = [4, 55], strides = [1, 1]} : vector<4x61xf32> to vector<4x55xf32>
    %c0_23 = arith.constant 0 : index
    %c0_24 = arith.constant 0 : index
    %43 = vector.load %arg28[%c0_23, %c0_24] : memref<128x128xf32, #tpu.memory_space<vmem>>, vector<4x55xf32>
    tpu.vector_store %arg28[%c0_23, %c0_24], %42 {strides = array<i32>} : memref<128x128xf32, #tpu.memory_space<vmem>>, vector<4x55xf32>,
    %44 = vector.extract_strided_slice %41 {offsets = [0, 1], sizes = [4, 55], strides = [1, 1]} : vector<4x61xf32> to vector<4x55xf32>
    %c4_25 = arith.constant 4 : index
    %c0_26 = arith.constant 0 : index
    %45 = vector.load %arg28[%c4_25, %c0_26] : memref<128x128xf32, #tpu.memory_space<vmem>>, vector<4x55xf32>
    tpu.vector_store %arg28[%c4_25, %c0_26], %44 {strides = array<i32>} : memref<128x128xf32, #tpu.memory_space<vmem>>, vector<4x55xf32>,
    %46 = vector.extract_strided_slice %41 {offsets = [0, 2], sizes = [4, 55], strides = [1, 1]} : vector<4x61xf32> to vector<4x55xf32>
    %c8_27 = arith.constant 8 : index
    %c0_28 = arith.constant 0 : index
    %47 = vector.load %arg28[%c8_27, %c0_28] : memref<128x128xf32, #tpu.memory_space<vmem>>, vector<4x55xf32>
    tpu.vector_store %arg28[%c8_27, %c0_28], %46 {strides = array<i32>} : memref<128x128xf32, #tpu.memory_space<vmem>>, vector<4x55xf32>,
    %48 = vector.extract_strided_slice %41 {offsets = [0, 3], sizes = [4, 55], strides = [1, 1]} : vector<4x61xf32> to vector<4x55xf32>
    %c12_29 = arith.constant 12 : index
    %c0_30 = arith.constant 0 : index
    %49 = vector.load %arg28[%c12_29, %c0_30] : memref<128x128xf32, #tpu.memory_space<vmem>>, vector<4x55xf32>
    tpu.vector_store %arg28[%c12_29, %c0_30], %48 {strides = array<i32>} : memref<128x128xf32, #tpu.memory_space<vmem>>, vector<4x55xf32>,
    %50 = vector.extract_strided_slice %41 {offsets = [0, 4], sizes = [4, 55], strides = [1, 1]} : vector<4x61xf32> to vector<4x55xf32>
    %c16 = arith.constant 16 : index
    %c0_31 = arith.constant 0 : index
    %51 = vector.load %arg28[%c16, %c0_31] : memref<128x128xf32, #tpu.memory_space<vmem>>, vector<4x55xf32>
    tpu.vector_store %arg28[%c16, %c0_31], %50 {strides = array<i32>} : memref<128x128xf32, #tpu.memory_space<vmem>>, vector<4x55xf32>,
    %52 = vector.extract_strided_slice %41 {offsets = [0, 5], sizes = [4, 55], strides = [1, 1]} : vector<4x61xf32> to vector<4x55xf32>
    %c20 = arith.constant 20 : index
    %c0_32 = arith.constant 0 : index
    %53 = vector.load %arg28[%c20, %c0_32] : memref<128x128xf32, #tpu.memory_space<vmem>>, vector<4x55xf32>
    tpu.vector_store %arg28[%c20, %c0_32], %52 {strides = array<i32>} : memref<128x128xf32, #tpu.memory_space<vmem>>, vector<4x55xf32>,
    %54 = vector.extract_strided_slice %41 {offsets = [0, 6], sizes = [4, 55], strides = [1, 1]} : vector<4x61xf32> to vector<4x55xf32>
    %c24 = arith.constant 24 : index
    %c0_33 = arith.constant 0 : index
    %55 = vector.load %arg28[%c24, %c0_33] : memref<128x128xf32, #tpu.memory_space<vmem>>, vector<4x55xf32>
    tpu.vector_store %arg28[%c24, %c0_33], %54 {strides = array<i32>} : memref<128x128xf32, #tpu.memory_space<vmem>>, vector<4x55xf32>,
    %c0_34 = arith.constant 0 : index
    %c0_35 = arith.constant 0 : index
    %56 = vector.load %arg28[%c0_34, %c0_35] : memref<128x128xf32, #tpu.memory_space<vmem>>, vector<28x55xf32>
    %c0_36 = arith.constant 0 : index
    %c0_37 = arith.constant 0 : index
    %57 = vector.load %arg4[%c0_36, %c0_37] : memref<8x28xf32, #tpu.memory_space<vmem>>, vector<8x28xf32>
    %cst_38 = arith.constant dense<0.000000e+00> : vector<8x55xf32>
    %58 = tpu.matmul %57, %56, %cst_38 {dimension_numbers = #tpu.dot_dimension_numbers<[1], [0], [0], [1], [0, 0, 1, 1], [], []>} : vector<8x28xf32>, vector<28x55xf32>, vector<8x55xf32> -> vector<8x55xf32>
    %c0_39 = arith.constant 0 : index
    %c0_40 = arith.constant 0 : index
    %59 = vector.load %arg5[%c0_39, %c0_40] : memref<55x28xf32, #tpu.memory_space<vmem>>, vector<55x28xf32>
    %cst_41 = arith.constant dense<0.000000e+00> : vector<8x28xf32>
    %60 = tpu.matmul %58, %59, %cst_41 {dimension_numbers = #tpu.dot_dimension_numbers<[1], [0], [0], [1], [0, 0, 1, 1], [], []>} : vector<8x55xf32>, vector<55x28xf32>, vector<8x28xf32> -> vector<8x28xf32>
    %cst_42 = arith.constant dense<0.000000e+00> : vector<8xf32>
    %61 = vector.multi_reduction <add>, %60, %cst_42 [1] : vector<8x28xf32> to vector<8xf32>
    %62 = vector.shape_cast %61 : vector<8xf32> to vector<8x1xf32>
    %63 = arith.mulf %60, %60 : vector<8x28xf32>
    %cst_43 = arith.constant dense<0.000000e+00> : vector<8xf32>
    %64 = vector.multi_reduction <add>, %63, %cst_43 [1] : vector<8x28xf32> to vector<8xf32>
    %65 = vector.shape_cast %64 : vector<8xf32> to vector<8x1xf32>
    %cst_44 = arith.constant 0.0357142873 : f32
    %66 = vector.broadcast %cst_44 : f32 to vector<8x1xf32>
    %67 = arith.mulf %62, %66 : vector<8x1xf32>
    %cst_45 = arith.constant 0.0357142873 : f32
    %68 = vector.broadcast %cst_45 : f32 to vector<8x1xf32>
    %69 = arith.mulf %65, %68 : vector<8x1xf32>
    %70 = arith.mulf %67, %67 : vector<8x1xf32>
    %71 = arith.subf %69, %70 : vector<8x1xf32>
    %72 = vector.broadcast %67 : vector<8x1xf32> to vector<8x28xf32>
    %73 = arith.subf %60, %72 : vector<8x28xf32>
    %cst_46 = arith.constant 9.99999974E-6 : f32
    %74 = vector.broadcast %cst_46 : f32 to vector<8x1xf32>
    %75 = arith.addf %71, %74 : vector<8x1xf32>
    %76 = math.rsqrt %75 : vector<8x1xf32>
    %77 = vector.broadcast %76 : vector<8x1xf32> to vector<8x28xf32>
    %78 = arith.mulf %73, %77 : vector<8x28xf32>
    %cst_47 = arith.constant 0.000000e+00 : f32
    %79 = vector.broadcast %cst_47 : f32 to vector<8x28xf32>
    %80 = arith.maximumf %78, %79 : vector<8x28xf32>
    %81 = vector.extract_strided_slice %80 {offsets = [0, 0], sizes = [8, 22], strides = [1, 1]} : vector<8x28xf32> to vector<8x22xf32>
    %c0_48 = arith.constant 0 : index
    %c0_49 = arith.constant 0 : index
    %82 = vector.load %arg28[%c0_48, %c0_49] : memref<128x128xf32, #tpu.memory_space<vmem>>, vector<8x22xf32>
    tpu.vector_store %arg28[%c0_48, %c0_49], %81 {strides = array<i32>} : memref<128x128xf32, #tpu.memory_space<vmem>>, vector<8x22xf32>,
    %83 = vector.extract_strided_slice %80 {offsets = [0, 1], sizes = [8, 22], strides = [1, 1]} : vector<8x28xf32> to vector<8x22xf32>
    %c8_50 = arith.constant 8 : index
    %c0_51 = arith.constant 0 : index
    %84 = vector.load %arg28[%c8_50, %c0_51] : memref<128x128xf32, #tpu.memory_space<vmem>>, vector<8x22xf32>
    tpu.vector_store %arg28[%c8_50, %c0_51], %83 {strides = array<i32>} : memref<128x128xf32, #tpu.memory_space<vmem>>, vector<8x22xf32>,
    %85 = vector.extract_strided_slice %80 {offsets = [0, 2], sizes = [8, 22], strides = [1, 1]} : vector<8x28xf32> to vector<8x22xf32>
    %c16_52 = arith.constant 16 : index
    %c0_53 = arith.constant 0 : index
    %86 = vector.load %arg28[%c16_52, %c0_53] : memref<128x128xf32, #tpu.memory_space<vmem>>, vector<8x22xf32>
    tpu.vector_store %arg28[%c16_52, %c0_53], %85 {strides = array<i32>} : memref<128x128xf32, #tpu.memory_space<vmem>>, vector<8x22xf32>,
    %87 = vector.extract_strided_slice %80 {offsets = [0, 3], sizes = [8, 22], strides = [1, 1]} : vector<8x28xf32> to vector<8x22xf32>
    %c24_54 = arith.constant 24 : index
    %c0_55 = arith.constant 0 : index
    %88 = vector.load %arg28[%c24_54, %c0_55] : memref<128x128xf32, #tpu.memory_space<vmem>>, vector<8x22xf32>
    tpu.vector_store %arg28[%c24_54, %c0_55], %87 {strides = array<i32>} : memref<128x128xf32, #tpu.memory_space<vmem>>, vector<8x22xf32>,
    %89 = vector.extract_strided_slice %80 {offsets = [0, 4], sizes = [8, 22], strides = [1, 1]} : vector<8x28xf32> to vector<8x22xf32>
    %c32 = arith.constant 32 : index
    %c0_56 = arith.constant 0 : index
    %90 = vector.load %arg28[%c32, %c0_56] : memref<128x128xf32, #tpu.memory_space<vmem>>, vector<8x22xf32>
    tpu.vector_store %arg28[%c32, %c0_56], %89 {strides = array<i32>} : memref<128x128xf32, #tpu.memory_space<vmem>>, vector<8x22xf32>,
    %91 = vector.extract_strided_slice %80 {offsets = [0, 5], sizes = [8, 22], strides = [1, 1]} : vector<8x28xf32> to vector<8x22xf32>
    %c40 = arith.constant 40 : index
    %c0_57 = arith.constant 0 : index
    %92 = vector.load %arg28[%c40, %c0_57] : memref<128x128xf32, #tpu.memory_space<vmem>>, vector<8x22xf32>
    tpu.vector_store %arg28[%c40, %c0_57], %91 {strides = array<i32>} : memref<128x128xf32, #tpu.memory_space<vmem>>, vector<8x22xf32>,
    %93 = vector.extract_strided_slice %80 {offsets = [0, 6], sizes = [8, 22], strides = [1, 1]} : vector<8x28xf32> to vector<8x22xf32>
    %c48 = arith.constant 48 : index
    %c0_58 = arith.constant 0 : index
    %94 = vector.load %arg28[%c48, %c0_58] : memref<128x128xf32, #tpu.memory_space<vmem>>, vector<8x22xf32>
    tpu.vector_store %arg28[%c48, %c0_58], %93 {strides = array<i32>} : memref<128x128xf32, #tpu.memory_space<vmem>>, vector<8x22xf32>,
    %c0_59 = arith.constant 0 : index
    %c0_60 = arith.constant 0 : index
    %95 = vector.load %arg28[%c0_59, %c0_60] : memref<128x128xf32, #tpu.memory_space<vmem>>, vector<56x22xf32>
    %c0_61 = arith.constant 0 : index
    %c0_62 = arith.constant 0 : index
    %96 = vector.load %arg6[%c0_61, %c0_62] : memref<16x56xf32, #tpu.memory_space<vmem>>, vector<16x56xf32>
    %cst_63 = arith.constant dense<0.000000e+00> : vector<16x22xf32>
    %97 = tpu.matmul %96, %95, %cst_63 {dimension_numbers = #tpu.dot_dimension_numbers<[1], [0], [0], [1], [0, 0, 1, 1], [], []>} : vector<16x56xf32>, vector<56x22xf32>, vector<16x22xf32> -> vector<16x22xf32>
    %c0_64 = arith.constant 0 : index
    %c0_65 = arith.constant 0 : index
    %98 = vector.load %arg7[%c0_64, %c0_65] : memref<22x11xf32, #tpu.memory_space<vmem>>, vector<22x11xf32>
    %cst_66 = arith.constant dense<0.000000e+00> : vector<16x11xf32>
    %99 = tpu.matmul %97, %98, %cst_66 {dimension_numbers = #tpu.dot_dimension_numbers<[1], [0], [0], [1], [0, 0, 1, 1], [], []>} : vector<16x22xf32>, vector<22x11xf32>, vector<16x11xf32> -> vector<16x11xf32>
    %cst_67 = arith.constant dense<0.000000e+00> : vector<16xf32>
    %100 = vector.multi_reduction <add>, %99, %cst_67 [1] : vector<16x11xf32> to vector<16xf32>
    %101 = vector.shape_cast %100 : vector<16xf32> to vector<16x1xf32>
    %102 = arith.mulf %99, %99 : vector<16x11xf32>
    %cst_68 = arith.constant dense<0.000000e+00> : vector<16xf32>
    %103 = vector.multi_reduction <add>, %102, %cst_68 [1] : vector<16x11xf32> to vector<16xf32>
    %104 = vector.shape_cast %103 : vector<16xf32> to vector<16x1xf32>
    %cst_69 = arith.constant 0.0909090936 : f32
    %105 = vector.broadcast %cst_69 : f32 to vector<16x1xf32>
    %106 = arith.mulf %101, %105 : vector<16x1xf32>
    %cst_70 = arith.constant 0.0909090936 : f32
    %107 = vector.broadcast %cst_70 : f32 to vector<16x1xf32>
    %108 = arith.mulf %104, %107 : vector<16x1xf32>
    %109 = arith.mulf %106, %106 : vector<16x1xf32>
    %110 = arith.subf %108, %109 : vector<16x1xf32>
    %111 = vector.broadcast %106 : vector<16x1xf32> to vector<16x11xf32>
    %112 = arith.subf %99, %111 : vector<16x11xf32>
    %cst_71 = arith.constant 9.99999974E-6 : f32
    %113 = vector.broadcast %cst_71 : f32 to vector<16x1xf32>
    %114 = arith.addf %110, %113 : vector<16x1xf32>
    %115 = math.rsqrt %114 : vector<16x1xf32>
    %116 = vector.broadcast %115 : vector<16x1xf32> to vector<16x11xf32>
    %117 = arith.mulf %112, %116 : vector<16x11xf32>
    %cst_72 = arith.constant 0.000000e+00 : f32
    %118 = vector.broadcast %cst_72 : f32 to vector<16x11xf32>
    %119 = arith.maximumf %117, %118 : vector<16x11xf32>
    %120 = vector.extract_strided_slice %119 {offsets = [0, 0], sizes = [16, 5], strides = [1, 1]} : vector<16x11xf32> to vector<16x5xf32>
    %c0_73 = arith.constant 0 : index
    %c0_74 = arith.constant 0 : index
    %121 = vector.load %arg28[%c0_73, %c0_74] : memref<128x128xf32, #tpu.memory_space<vmem>>, vector<16x5xf32>
    tpu.vector_store %arg28[%c0_73, %c0_74], %120 {strides = array<i32>} : memref<128x128xf32, #tpu.memory_space<vmem>>, vector<16x5xf32>,
    %122 = vector.extract_strided_slice %119 {offsets = [0, 1], sizes = [16, 5], strides = [1, 1]} : vector<16x11xf32> to vector<16x5xf32>
    %c16_75 = arith.constant 16 : index
    %c0_76 = arith.constant 0 : index
    %123 = vector.load %arg28[%c16_75, %c0_76] : memref<128x128xf32, #tpu.memory_space<vmem>>, vector<16x5xf32>
    tpu.vector_store %arg28[%c16_75, %c0_76], %122 {strides = array<i32>} : memref<128x128xf32, #tpu.memory_space<vmem>>, vector<16x5xf32>,
    %124 = vector.extract_strided_slice %119 {offsets = [0, 2], sizes = [16, 5], strides = [1, 1]} : vector<16x11xf32> to vector<16x5xf32>
    %c32_77 = arith.constant 32 : index
    %c0_78 = arith.constant 0 : index
    %125 = vector.load %arg28[%c32_77, %c0_78] : memref<128x128xf32, #tpu.memory_space<vmem>>, vector<16x5xf32>
    tpu.vector_store %arg28[%c32_77, %c0_78], %124 {strides = array<i32>} : memref<128x128xf32, #tpu.memory_space<vmem>>, vector<16x5xf32>,
    %126 = vector.extract_strided_slice %119 {offsets = [0, 3], sizes = [16, 5], strides = [1, 1]} : vector<16x11xf32> to vector<16x5xf32>
    %c48_79 = arith.constant 48 : index
    %c0_80 = arith.constant 0 : index
    %127 = vector.load %arg28[%c48_79, %c0_80] : memref<128x128xf32, #tpu.memory_space<vmem>>, vector<16x5xf32>
    tpu.vector_store %arg28[%c48_79, %c0_80], %126 {strides = array<i32>} : memref<128x128xf32, #tpu.memory_space<vmem>>, vector<16x5xf32>,
    %128 = vector.extract_strided_slice %119 {offsets = [0, 4], sizes = [16, 5], strides = [1, 1]} : vector<16x11xf32> to vector<16x5xf32>
    %c64 = arith.constant 64 : index
    %c0_81 = arith.constant 0 : index
    %129 = vector.load %arg28[%c64, %c0_81] : memref<128x128xf32, #tpu.memory_space<vmem>>, vector<16x5xf32>
    tpu.vector_store %arg28[%c64, %c0_81], %128 {strides = array<i32>} : memref<128x128xf32, #tpu.memory_space<vmem>>, vector<16x5xf32>,
    %130 = vector.extract_strided_slice %119 {offsets = [0, 5], sizes = [16, 5], strides = [1, 1]} : vector<16x11xf32> to vector<16x5xf32>
    %c80 = arith.constant 80 : index
    %c0_82 = arith.constant 0 : index
    %131 = vector.load %arg28[%c80, %c0_82] : memref<128x128xf32, #tpu.memory_space<vmem>>, vector<16x5xf32>
    tpu.vector_store %arg28[%c80, %c0_82], %130 {strides = array<i32>} : memref<128x128xf32, #tpu.memory_space<vmem>>, vector<16x5xf32>,
    %132 = vector.extract_strided_slice %119 {offsets = [0, 6], sizes = [16, 5], strides = [1, 1]} : vector<16x11xf32> to vector<16x5xf32>
    %c96 = arith.constant 96 : index
    %c0_83 = arith.constant 0 : index
    %133 = vector.load %arg28[%c96, %c0_83] : memref<128x128xf32, #tpu.memory_space<vmem>>, vector<16x5xf32>
    tpu.vector_store %arg28[%c96, %c0_83], %132 {strides = array<i32>} : memref<128x128xf32, #tpu.memory_space<vmem>>, vector<16x5xf32>,
    %c0_84 = arith.constant 0 : index
    %c0_85 = arith.constant 0 : index
    %134 = vector.load %arg28[%c0_84, %c0_85] : memref<128x128xf32, #tpu.memory_space<vmem>>, vector<112x5xf32>
    %c0_86 = arith.constant 0 : index
    %c0_87 = arith.constant 0 : index
    %135 = vector.load %arg8[%c0_86, %c0_87] : memref<32x112xf32, #tpu.memory_space<vmem>>, vector<32x112xf32>
    %cst_88 = arith.constant dense<0.000000e+00> : vector<32x5xf32>
    %136 = tpu.matmul %135, %134, %cst_88 {dimension_numbers = #tpu.dot_dimension_numbers<[1], [0], [0], [1], [0, 0, 1, 1], [], []>} : vector<32x112xf32>, vector<112x5xf32>, vector<32x5xf32> -> vector<32x5xf32>
    %c0_89 = arith.constant 0 : index
    %c0_90 = arith.constant 0 : index
    %137 = vector.load %arg9[%c0_89, %c0_90] : memref<5x3xf32, #tpu.memory_space<vmem>>, vector<5x3xf32>
    %cst_91 = arith.constant dense<0.000000e+00> : vector<32x3xf32>
    %138 = tpu.matmul %136, %137, %cst_91 {dimension_numbers = #tpu.dot_dimension_numbers<[1], [0], [0], [1], [0, 0, 1, 1], [], []>} : vector<32x5xf32>, vector<5x3xf32>, vector<32x3xf32> -> vector<32x3xf32>
    %cst_92 = arith.constant dense<0.000000e+00> : vector<32xf32>
    %139 = vector.multi_reduction <add>, %138, %cst_92 [1] : vector<32x3xf32> to vector<32xf32>
    %140 = vector.shape_cast %139 : vector<32xf32> to vector<32x1xf32>
    %141 = arith.mulf %138, %138 : vector<32x3xf32>
    %cst_93 = arith.constant dense<0.000000e+00> : vector<32xf32>
    %142 = vector.multi_reduction <add>, %141, %cst_93 [1] : vector<32x3xf32> to vector<32xf32>
    %143 = vector.shape_cast %142 : vector<32xf32> to vector<32x1xf32>
    %cst_94 = arith.constant 0.333333343 : f32
    %144 = vector.broadcast %cst_94 : f32 to vector<32x1xf32>
    %145 = arith.mulf %140, %144 : vector<32x1xf32>
    %cst_95 = arith.constant 0.333333343 : f32
    %146 = vector.broadcast %cst_95 : f32 to vector<32x1xf32>
    %147 = arith.mulf %143, %146 : vector<32x1xf32>
    %148 = arith.mulf %145, %145 : vector<32x1xf32>
    %149 = arith.subf %147, %148 : vector<32x1xf32>
    %150 = vector.broadcast %145 : vector<32x1xf32> to vector<32x3xf32>
    %151 = arith.subf %138, %150 : vector<32x3xf32>
    %cst_96 = arith.constant 9.99999974E-6 : f32
    %152 = vector.broadcast %cst_96 : f32 to vector<32x1xf32>
    %153 = arith.addf %149, %152 : vector<32x1xf32>
    %154 = math.rsqrt %153 : vector<32x1xf32>
    %155 = vector.broadcast %154 : vector<32x1xf32> to vector<32x3xf32>
    %156 = arith.mulf %151, %155 : vector<32x3xf32>
    %cst_97 = arith.constant 0.000000e+00 : f32
    %157 = vector.broadcast %cst_97 : f32 to vector<32x3xf32>
    %158 = arith.maximumf %156, %157 : vector<32x3xf32>
    %cst_98 = arith.constant 0.000000e+00 : f32
    %159 = vector.broadcast %cst_98 : f32 to vector<128x6xf32>
    %c0_99 = arith.constant 0 : index
    %c0_100 = arith.constant 0 : index
    %160 = vector.load %arg28[%c0_99, %c0_100] : memref<128x128xf32, #tpu.memory_space<vmem>>, vector<128x6xf32>
    tpu.vector_store %arg28[%c0_99, %c0_100], %159 {strides = array<i32>} : memref<128x128xf32, #tpu.memory_space<vmem>>, vector<128x6xf32>,
    %c0_101 = arith.constant 0 : index
    %c3 = arith.constant 3 : index
    %161 = vector.load %arg28[%c0_101, %c3] : memref<128x128xf32, #tpu.memory_space<vmem>>, vector<32x3xf32>
    tpu.vector_store %arg28[%c0_101, %c3], %158 {strides = array<i32>} : memref<128x128xf32, #tpu.memory_space<vmem>>, vector<32x3xf32>,
    %c32_102 = arith.constant 32 : index
    %c2_103 = arith.constant 2 : index
    %162 = vector.load %arg28[%c32_102, %c2_103] : memref<128x128xf32, #tpu.memory_space<vmem>>, vector<32x3xf32>
    tpu.vector_store %arg28[%c32_102, %c2_103], %158 {strides = array<i32>} : memref<128x128xf32, #tpu.memory_space<vmem>>, vector<32x3xf32>,
    %c64_104 = arith.constant 64 : index
    %c1 = arith.constant 1 : index
    %163 = vector.load %arg28[%c64_104, %c1] : memref<128x128xf32, #tpu.memory_space<vmem>>, vector<32x3xf32>
    tpu.vector_store %arg28[%c64_104, %c1], %158 {strides = array<i32>} : memref<128x128xf32, #tpu.memory_space<vmem>>, vector<32x3xf32>,
    %c96_105 = arith.constant 96 : index
    %c0_106 = arith.constant 0 : index
    %164 = vector.load %arg28[%c96_105, %c0_106] : memref<128x128xf32, #tpu.memory_space<vmem>>, vector<32x3xf32>
    tpu.vector_store %arg28[%c96_105, %c0_106], %158 {strides = array<i32>} : memref<128x128xf32, #tpu.memory_space<vmem>>, vector<32x3xf32>,
    %c0_107 = arith.constant 0 : index
    %c0_108 = arith.constant 0 : index
    %165 = vector.load %arg10[%c0_107, %c0_108] : memref<16x128xf32, #tpu.memory_space<vmem>>, vector<16x128xf32>
    %c0_109 = arith.constant 0 : index
    %c0_110 = arith.constant 0 : index
    %166 = vector.load %arg28[%c0_109, %c0_110] : memref<128x128xf32, #tpu.memory_space<vmem>>, vector<128x6xf32>
    %cst_111 = arith.constant dense<0.000000e+00> : vector<16x6xf32>
    %167 = tpu.matmul %165, %166, %cst_111 {dimension_numbers = #tpu.dot_dimension_numbers<[1], [0], [0], [1], [0, 0, 1, 1], [], []>} : vector<16x128xf32>, vector<128x6xf32>, vector<16x6xf32> -> vector<16x6xf32>
    %cst_112 = arith.constant 0.000000e+00 : f32
    %168 = vector.broadcast %cst_112 : f32 to vector<96x5xf32>
    %c0_113 = arith.constant 0 : index
    %c0_114 = arith.constant 0 : index
    %169 = vector.load %arg28[%c0_113, %c0_114] : memref<128x128xf32, #tpu.memory_space<vmem>>, vector<96x5xf32>
    tpu.vector_store %arg28[%c0_113, %c0_114], %168 {strides = array<i32>} : memref<128x128xf32, #tpu.memory_space<vmem>>, vector<96x5xf32>,
    %c0_115 = arith.constant 0 : index
    %c2_116 = arith.constant 2 : index
    %170 = vector.load %arg28[%c0_115, %c2_116] : memref<128x128xf32, #tpu.memory_space<vmem>>, vector<32x3xf32>
    tpu.vector_store %arg28[%c0_115, %c2_116], %158 {strides = array<i32>} : memref<128x128xf32, #tpu.memory_space<vmem>>, vector<32x3xf32>,
    %c32_117 = arith.constant 32 : index
    %c1_118 = arith.constant 1 : index
    %171 = vector.load %arg28[%c32_117, %c1_118] : memref<128x128xf32, #tpu.memory_space<vmem>>, vector<32x3xf32>
    tpu.vector_store %arg28[%c32_117, %c1_118], %158 {strides = array<i32>} : memref<128x128xf32, #tpu.memory_space<vmem>>, vector<32x3xf32>,
    %c64_119 = arith.constant 64 : index
    %c0_120 = arith.constant 0 : index
    %172 = vector.load %arg28[%c64_119, %c0_120] : memref<128x128xf32, #tpu.memory_space<vmem>>, vector<32x3xf32>
    tpu.vector_store %arg28[%c64_119, %c0_120], %158 {strides = array<i32>} : memref<128x128xf32, #tpu.memory_space<vmem>>, vector<32x3xf32>,
    %c0_121 = arith.constant 0 : index
    %c0_122 = arith.constant 0 : index
    %173 = vector.load %arg11[%c0_121, %c0_122] : memref<16x96xf32, #tpu.memory_space<vmem>>, vector<16x96xf32>
    %c0_123 = arith.constant 0 : index
    %c0_124 = arith.constant 0 : index
    %174 = vector.load %arg28[%c0_123, %c0_124] : memref<128x128xf32, #tpu.memory_space<vmem>>, vector<96x5xf32>
    %cst_125 = arith.constant dense<0.000000e+00> : vector<16x5xf32>
    %175 = tpu.matmul %173, %174, %cst_125 {dimension_numbers = #tpu.dot_dimension_numbers<[1], [0], [0], [1], [0, 0, 1, 1], [], []>} : vector<16x96xf32>, vector<96x5xf32>, vector<16x5xf32> -> vector<16x5xf32>
    %c0_126 = arith.constant 0 : index
    %c0_127 = arith.constant 0 : index
    %176 = vector.load %arg12[%c0_126, %c0_127] : memref<6x11xf32, #tpu.memory_space<vmem>>, vector<6x11xf32>
    %cst_128 = arith.constant dense<0.000000e+00> : vector<16x11xf32>
    %177 = tpu.matmul %167, %176, %cst_128 {dimension_numbers = #tpu.dot_dimension_numbers<[1], [0], [0], [1], [0, 0, 1, 1], [], []>} : vector<16x6xf32>, vector<6x11xf32>, vector<16x11xf32> -> vector<16x11xf32>
    %c0_129 = arith.constant 0 : index
    %c0_130 = arith.constant 0 : index
    %178 = vector.load %arg13[%c0_129, %c0_130] : memref<5x11xf32, #tpu.memory_space<vmem>>, vector<5x11xf32>
    %cst_131 = arith.constant dense<0.000000e+00> : vector<16x11xf32>
    %179 = tpu.matmul %175, %178, %cst_131 {dimension_numbers = #tpu.dot_dimension_numbers<[1], [0], [0], [1], [0, 0, 1, 1], [], []>} : vector<16x5xf32>, vector<5x11xf32>, vector<16x11xf32> -> vector<16x11xf32>
    %180 = arith.addf %177, %179 : vector<16x11xf32>
    %cst_132 = arith.constant dense<0.000000e+00> : vector<16xf32>
    %181 = vector.multi_reduction <add>, %180, %cst_132 [1] : vector<16x11xf32> to vector<16xf32>
    %182 = vector.shape_cast %181 : vector<16xf32> to vector<16x1xf32>
    %183 = arith.mulf %180, %180 : vector<16x11xf32>
    %cst_133 = arith.constant dense<0.000000e+00> : vector<16xf32>
    %184 = vector.multi_reduction <add>, %183, %cst_133 [1] : vector<16x11xf32> to vector<16xf32>
    %185 = vector.shape_cast %184 : vector<16xf32> to vector<16x1xf32>
    %cst_134 = arith.constant 0.0909090936 : f32
    %186 = vector.broadcast %cst_134 : f32 to vector<16x1xf32>
    %187 = arith.mulf %182, %186 : vector<16x1xf32>
    %cst_135 = arith.constant 0.0909090936 : f32
    %188 = vector.broadcast %cst_135 : f32 to vector<16x1xf32>
    %189 = arith.mulf %185, %188 : vector<16x1xf32>
    %190 = arith.mulf %187, %187 : vector<16x1xf32>
    %191 = arith.subf %189, %190 : vector<16x1xf32>
    %192 = vector.broadcast %187 : vector<16x1xf32> to vector<16x11xf32>
    %193 = arith.subf %180, %192 : vector<16x11xf32>
    %cst_136 = arith.constant 9.99999974E-6 : f32
    %194 = vector.broadcast %cst_136 : f32 to vector<16x1xf32>
    %195 = arith.addf %191, %194 : vector<16x1xf32>
    %196 = math.rsqrt %195 : vector<16x1xf32>
    %197 = vector.broadcast %196 : vector<16x1xf32> to vector<16x11xf32>
    %198 = arith.mulf %193, %197 : vector<16x11xf32>
    %cst_137 = arith.constant 0.000000e+00 : f32
    %199 = vector.broadcast %cst_137 : f32 to vector<16x11xf32>
    %200 = arith.maximumf %198, %199 : vector<16x11xf32>
    %cst_138 = arith.constant 0.000000e+00 : f32
    %201 = vector.broadcast %cst_138 : f32 to vector<64x14xf32>
    %c0_139 = arith.constant 0 : index
    %c0_140 = arith.constant 0 : index
    %202 = vector.load %arg28[%c0_139, %c0_140] : memref<128x128xf32, #tpu.memory_space<vmem>>, vector<64x14xf32>
    tpu.vector_store %arg28[%c0_139, %c0_140], %201 {strides = array<i32>} : memref<128x128xf32, #tpu.memory_space<vmem>>, vector<64x14xf32>,
    %c0_141 = arith.constant 0 : index
    %c3_142 = arith.constant 3 : index
    %203 = vector.load %arg28[%c0_141, %c3_142] : memref<128x128xf32, #tpu.memory_space<vmem>>, vector<16x11xf32>
    tpu.vector_store %arg28[%c0_141, %c3_142], %200 {strides = array<i32>} : memref<128x128xf32, #tpu.memory_space<vmem>>, vector<16x11xf32>,
    %c16_143 = arith.constant 16 : index
    %c2_144 = arith.constant 2 : index
    %204 = vector.load %arg28[%c16_143, %c2_144] : memref<128x128xf32, #tpu.memory_space<vmem>>, vector<16x11xf32>
    tpu.vector_store %arg28[%c16_143, %c2_144], %200 {strides = array<i32>} : memref<128x128xf32, #tpu.memory_space<vmem>>, vector<16x11xf32>,
    %c32_145 = arith.constant 32 : index
    %c1_146 = arith.constant 1 : index
    %205 = vector.load %arg28[%c32_145, %c1_146] : memref<128x128xf32, #tpu.memory_space<vmem>>, vector<16x11xf32>
    tpu.vector_store %arg28[%c32_145, %c1_146], %200 {strides = array<i32>} : memref<128x128xf32, #tpu.memory_space<vmem>>, vector<16x11xf32>,
    %c48_147 = arith.constant 48 : index
    %c0_148 = arith.constant 0 : index
    %206 = vector.load %arg28[%c48_147, %c0_148] : memref<128x128xf32, #tpu.memory_space<vmem>>, vector<16x11xf32>
    tpu.vector_store %arg28[%c48_147, %c0_148], %200 {strides = array<i32>} : memref<128x128xf32, #tpu.memory_space<vmem>>, vector<16x11xf32>,
    %c0_149 = arith.constant 0 : index
    %c0_150 = arith.constant 0 : index
    %207 = vector.load %arg14[%c0_149, %c0_150] : memref<8x64xf32, #tpu.memory_space<vmem>>, vector<8x64xf32>
    %c0_151 = arith.constant 0 : index
    %c0_152 = arith.constant 0 : index
    %208 = vector.load %arg28[%c0_151, %c0_152] : memref<128x128xf32, #tpu.memory_space<vmem>>, vector<64x14xf32>
    %cst_153 = arith.constant dense<0.000000e+00> : vector<8x14xf32>
    %209 = tpu.matmul %207, %208, %cst_153 {dimension_numbers = #tpu.dot_dimension_numbers<[1], [0], [0], [1], [0, 0, 1, 1], [], []>} : vector<8x64xf32>, vector<64x14xf32>, vector<8x14xf32> -> vector<8x14xf32>
    %cst_154 = arith.constant 0.000000e+00 : f32
    %210 = vector.broadcast %cst_154 : f32 to vector<48x13xf32>
    %c0_155 = arith.constant 0 : index
    %c0_156 = arith.constant 0 : index
    %211 = vector.load %arg28[%c0_155, %c0_156] : memref<128x128xf32, #tpu.memory_space<vmem>>, vector<48x13xf32>
    tpu.vector_store %arg28[%c0_155, %c0_156], %210 {strides = array<i32>} : memref<128x128xf32, #tpu.memory_space<vmem>>, vector<48x13xf32>,
    %c0_157 = arith.constant 0 : index
    %c2_158 = arith.constant 2 : index
    %212 = vector.load %arg28[%c0_157, %c2_158] : memref<128x128xf32, #tpu.memory_space<vmem>>, vector<16x11xf32>
    tpu.vector_store %arg28[%c0_157, %c2_158], %200 {strides = array<i32>} : memref<128x128xf32, #tpu.memory_space<vmem>>, vector<16x11xf32>,
    %c16_159 = arith.constant 16 : index
    %c1_160 = arith.constant 1 : index
    %213 = vector.load %arg28[%c16_159, %c1_160] : memref<128x128xf32, #tpu.memory_space<vmem>>, vector<16x11xf32>
    tpu.vector_store %arg28[%c16_159, %c1_160], %200 {strides = array<i32>} : memref<128x128xf32, #tpu.memory_space<vmem>>, vector<16x11xf32>,
    %c32_161 = arith.constant 32 : index
    %c0_162 = arith.constant 0 : index
    %214 = vector.load %arg28[%c32_161, %c0_162] : memref<128x128xf32, #tpu.memory_space<vmem>>, vector<16x11xf32>
    tpu.vector_store %arg28[%c32_161, %c0_162], %200 {strides = array<i32>} : memref<128x128xf32, #tpu.memory_space<vmem>>, vector<16x11xf32>,
    %c0_163 = arith.constant 0 : index
    %c0_164 = arith.constant 0 : index
    %215 = vector.load %arg15[%c0_163, %c0_164] : memref<8x48xf32, #tpu.memory_space<vmem>>, vector<8x48xf32>
    %c0_165 = arith.constant 0 : index
    %c0_166 = arith.constant 0 : index
    %216 = vector.load %arg28[%c0_165, %c0_166] : memref<128x128xf32, #tpu.memory_space<vmem>>, vector<48x13xf32>
    %cst_167 = arith.constant dense<0.000000e+00> : vector<8x13xf32>
    %217 = tpu.matmul %215, %216, %cst_167 {dimension_numbers = #tpu.dot_dimension_numbers<[1], [0], [0], [1], [0, 0, 1, 1], [], []>} : vector<8x48xf32>, vector<48x13xf32>, vector<8x13xf32> -> vector<8x13xf32>
    %c0_168 = arith.constant 0 : index
    %c0_169 = arith.constant 0 : index
    %218 = vector.load %arg16[%c0_168, %c0_169] : memref<14x27xf32, #tpu.memory_space<vmem>>, vector<14x27xf32>
    %cst_170 = arith.constant dense<0.000000e+00> : vector<8x27xf32>
    %219 = tpu.matmul %209, %218, %cst_170 {dimension_numbers = #tpu.dot_dimension_numbers<[1], [0], [0], [1], [0, 0, 1, 1], [], []>} : vector<8x14xf32>, vector<14x27xf32>, vector<8x27xf32> -> vector<8x27xf32>
    %c0_171 = arith.constant 0 : index
    %c0_172 = arith.constant 0 : index
    %220 = vector.load %arg17[%c0_171, %c0_172] : memref<13x27xf32, #tpu.memory_space<vmem>>, vector<13x27xf32>
    %cst_173 = arith.constant dense<0.000000e+00> : vector<8x27xf32>
    %221 = tpu.matmul %217, %220, %cst_173 {dimension_numbers = #tpu.dot_dimension_numbers<[1], [0], [0], [1], [0, 0, 1, 1], [], []>} : vector<8x13xf32>, vector<13x27xf32>, vector<8x27xf32> -> vector<8x27xf32>
    %222 = arith.addf %219, %221 : vector<8x27xf32>
    %cst_174 = arith.constant dense<0.000000e+00> : vector<8xf32>
    %223 = vector.multi_reduction <add>, %222, %cst_174 [1] : vector<8x27xf32> to vector<8xf32>
    %224 = vector.shape_cast %223 : vector<8xf32> to vector<8x1xf32>
    %225 = arith.mulf %222, %222 : vector<8x27xf32>
    %cst_175 = arith.constant dense<0.000000e+00> : vector<8xf32>
    %226 = vector.multi_reduction <add>, %225, %cst_175 [1] : vector<8x27xf32> to vector<8xf32>
    %227 = vector.shape_cast %226 : vector<8xf32> to vector<8x1xf32>
    %cst_176 = arith.constant 0.0370370373 : f32
    %228 = vector.broadcast %cst_176 : f32 to vector<8x1xf32>
    %229 = arith.mulf %224, %228 : vector<8x1xf32>
    %cst_177 = arith.constant 0.0370370373 : f32
    %230 = vector.broadcast %cst_177 : f32 to vector<8x1xf32>
    %231 = arith.mulf %227, %230 : vector<8x1xf32>
    %232 = arith.mulf %229, %229 : vector<8x1xf32>
    %233 = arith.subf %231, %232 : vector<8x1xf32>
    %234 = vector.broadcast %229 : vector<8x1xf32> to vector<8x27xf32>
    %235 = arith.subf %222, %234 : vector<8x27xf32>
    %cst_178 = arith.constant 9.99999974E-6 : f32
    %236 = vector.broadcast %cst_178 : f32 to vector<8x1xf32>
    %237 = arith.addf %233, %236 : vector<8x1xf32>
    %238 = math.rsqrt %237 : vector<8x1xf32>
    %239 = vector.broadcast %238 : vector<8x1xf32> to vector<8x27xf32>
    %240 = arith.mulf %235, %239 : vector<8x27xf32>
    %cst_179 = arith.constant 0.000000e+00 : f32
    %241 = vector.broadcast %cst_179 : f32 to vector<8x27xf32>
    %242 = arith.maximumf %240, %241 : vector<8x27xf32>
    %cst_180 = arith.constant 0.000000e+00 : f32
    %243 = vector.broadcast %cst_180 : f32 to vector<32x30xf32>
    %c0_181 = arith.constant 0 : index
    %c0_182 = arith.constant 0 : index
    %244 = vector.load %arg28[%c0_181, %c0_182] : memref<128x128xf32, #tpu.memory_space<vmem>>, vector<32x30xf32>
    tpu.vector_store %arg28[%c0_181, %c0_182], %243 {strides = array<i32>} : memref<128x128xf32, #tpu.memory_space<vmem>>, vector<32x30xf32>,
    %c0_183 = arith.constant 0 : index
    %c3_184 = arith.constant 3 : index
    %245 = vector.load %arg28[%c0_183, %c3_184] : memref<128x128xf32, #tpu.memory_space<vmem>>, vector<8x27xf32>
    tpu.vector_store %arg28[%c0_183, %c3_184], %242 {strides = array<i32>} : memref<128x128xf32, #tpu.memory_space<vmem>>, vector<8x27xf32>,
    %c8_185 = arith.constant 8 : index
    %c2_186 = arith.constant 2 : index
    %246 = vector.load %arg28[%c8_185, %c2_186] : memref<128x128xf32, #tpu.memory_space<vmem>>, vector<8x27xf32>
    tpu.vector_store %arg28[%c8_185, %c2_186], %242 {strides = array<i32>} : memref<128x128xf32, #tpu.memory_space<vmem>>, vector<8x27xf32>,
    %c16_187 = arith.constant 16 : index
    %c1_188 = arith.constant 1 : index
    %247 = vector.load %arg28[%c16_187, %c1_188] : memref<128x128xf32, #tpu.memory_space<vmem>>, vector<8x27xf32>
    tpu.vector_store %arg28[%c16_187, %c1_188], %242 {strides = array<i32>} : memref<128x128xf32, #tpu.memory_space<vmem>>, vector<8x27xf32>,
    %c24_189 = arith.constant 24 : index
    %c0_190 = arith.constant 0 : index
    %248 = vector.load %arg28[%c24_189, %c0_190] : memref<128x128xf32, #tpu.memory_space<vmem>>, vector<8x27xf32>
    tpu.vector_store %arg28[%c24_189, %c0_190], %242 {strides = array<i32>} : memref<128x128xf32, #tpu.memory_space<vmem>>, vector<8x27xf32>,
    %c0_191 = arith.constant 0 : index
    %c0_192 = arith.constant 0 : index
    %249 = vector.load %arg18[%c0_191, %c0_192] : memref<4x32xf32, #tpu.memory_space<vmem>>, vector<4x32xf32>
    %c0_193 = arith.constant 0 : index
    %c0_194 = arith.constant 0 : index
    %250 = vector.load %arg28[%c0_193, %c0_194] : memref<128x128xf32, #tpu.memory_space<vmem>>, vector<32x30xf32>
    %cst_195 = arith.constant dense<0.000000e+00> : vector<4x30xf32>
    %251 = tpu.matmul %249, %250, %cst_195 {dimension_numbers = #tpu.dot_dimension_numbers<[1], [0], [0], [1], [0, 0, 1, 1], [], []>} : vector<4x32xf32>, vector<32x30xf32>, vector<4x30xf32> -> vector<4x30xf32>
    %cst_196 = arith.constant 0.000000e+00 : f32
    %252 = vector.broadcast %cst_196 : f32 to vector<24x29xf32>
    %c0_197 = arith.constant 0 : index
    %c0_198 = arith.constant 0 : index
    %253 = vector.load %arg28[%c0_197, %c0_198] : memref<128x128xf32, #tpu.memory_space<vmem>>, vector<24x29xf32>
    tpu.vector_store %arg28[%c0_197, %c0_198], %252 {strides = array<i32>} : memref<128x128xf32, #tpu.memory_space<vmem>>, vector<24x29xf32>,
    %c0_199 = arith.constant 0 : index
    %c2_200 = arith.constant 2 : index
    %254 = vector.load %arg28[%c0_199, %c2_200] : memref<128x128xf32, #tpu.memory_space<vmem>>, vector<8x27xf32>
    tpu.vector_store %arg28[%c0_199, %c2_200], %242 {strides = array<i32>} : memref<128x128xf32, #tpu.memory_space<vmem>>, vector<8x27xf32>,
    %c8_201 = arith.constant 8 : index
    %c1_202 = arith.constant 1 : index
    %255 = vector.load %arg28[%c8_201, %c1_202] : memref<128x128xf32, #tpu.memory_space<vmem>>, vector<8x27xf32>
    tpu.vector_store %arg28[%c8_201, %c1_202], %242 {strides = array<i32>} : memref<128x128xf32, #tpu.memory_space<vmem>>, vector<8x27xf32>,
    %c16_203 = arith.constant 16 : index
    %c0_204 = arith.constant 0 : index
    %256 = vector.load %arg28[%c16_203, %c0_204] : memref<128x128xf32, #tpu.memory_space<vmem>>, vector<8x27xf32>
    tpu.vector_store %arg28[%c16_203, %c0_204], %242 {strides = array<i32>} : memref<128x128xf32, #tpu.memory_space<vmem>>, vector<8x27xf32>,
    %c0_205 = arith.constant 0 : index
    %c0_206 = arith.constant 0 : index
    %257 = vector.load %arg19[%c0_205, %c0_206] : memref<4x24xf32, #tpu.memory_space<vmem>>, vector<4x24xf32>
    %c0_207 = arith.constant 0 : index
    %c0_208 = arith.constant 0 : index
    %258 = vector.load %arg28[%c0_207, %c0_208] : memref<128x128xf32, #tpu.memory_space<vmem>>, vector<24x29xf32>
    %cst_209 = arith.constant dense<0.000000e+00> : vector<4x29xf32>
    %259 = tpu.matmul %257, %258, %cst_209 {dimension_numbers = #tpu.dot_dimension_numbers<[1], [0], [0], [1], [0, 0, 1, 1], [], []>} : vector<4x24xf32>, vector<24x29xf32>, vector<4x29xf32> -> vector<4x29xf32>
    %c0_210 = arith.constant 0 : index
    %c0_211 = arith.constant 0 : index
    %260 = vector.load %arg20[%c0_210, %c0_211] : memref<30x59xf32, #tpu.memory_space<vmem>>, vector<30x59xf32>
    %cst_212 = arith.constant dense<0.000000e+00> : vector<4x59xf32>
    %261 = tpu.matmul %251, %260, %cst_212 {dimension_numbers = #tpu.dot_dimension_numbers<[1], [0], [0], [1], [0, 0, 1, 1], [], []>} : vector<4x30xf32>, vector<30x59xf32>, vector<4x59xf32> -> vector<4x59xf32>
    %c0_213 = arith.constant 0 : index
    %c0_214 = arith.constant 0 : index
    %262 = vector.load %arg21[%c0_213, %c0_214] : memref<29x59xf32, #tpu.memory_space<vmem>>, vector<29x59xf32>
    %cst_215 = arith.constant dense<0.000000e+00> : vector<4x59xf32>
    %263 = tpu.matmul %259, %262, %cst_215 {dimension_numbers = #tpu.dot_dimension_numbers<[1], [0], [0], [1], [0, 0, 1, 1], [], []>} : vector<4x29xf32>, vector<29x59xf32>, vector<4x59xf32> -> vector<4x59xf32>
    %264 = arith.addf %261, %263 : vector<4x59xf32>
    %cst_216 = arith.constant dense<0.000000e+00> : vector<4xf32>
    %265 = vector.multi_reduction <add>, %264, %cst_216 [1] : vector<4x59xf32> to vector<4xf32>
    %266 = vector.shape_cast %265 : vector<4xf32> to vector<4x1xf32>
    %267 = arith.mulf %264, %264 : vector<4x59xf32>
    %cst_217 = arith.constant dense<0.000000e+00> : vector<4xf32>
    %268 = vector.multi_reduction <add>, %267, %cst_217 [1] : vector<4x59xf32> to vector<4xf32>
    %269 = vector.shape_cast %268 : vector<4xf32> to vector<4x1xf32>
    %cst_218 = arith.constant 0.0169491526 : f32
    %270 = vector.broadcast %cst_218 : f32 to vector<4x1xf32>
    %271 = arith.mulf %266, %270 : vector<4x1xf32>
    %cst_219 = arith.constant 0.0169491526 : f32
    %272 = vector.broadcast %cst_219 : f32 to vector<4x1xf32>
    %273 = arith.mulf %269, %272 : vector<4x1xf32>
    %274 = arith.mulf %271, %271 : vector<4x1xf32>
    %275 = arith.subf %273, %274 : vector<4x1xf32>
    %276 = vector.broadcast %271 : vector<4x1xf32> to vector<4x59xf32>
    %277 = arith.subf %264, %276 : vector<4x59xf32>
    %cst_220 = arith.constant 9.99999974E-6 : f32
    %278 = vector.broadcast %cst_220 : f32 to vector<4x1xf32>
    %279 = arith.addf %275, %278 : vector<4x1xf32>
    %280 = math.rsqrt %279 : vector<4x1xf32>
    %281 = vector.broadcast %280 : vector<4x1xf32> to vector<4x59xf32>
    %282 = arith.mulf %277, %281 : vector<4x59xf32>
    %cst_221 = arith.constant 0.000000e+00 : f32
    %283 = vector.broadcast %cst_221 : f32 to vector<4x59xf32>
    %284 = arith.maximumf %282, %283 : vector<4x59xf32>
    %cst_222 = arith.constant 0.000000e+00 : f32
    %285 = vector.broadcast %cst_222 : f32 to vector<16x62xf32>
    %c0_223 = arith.constant 0 : index
    %c0_224 = arith.constant 0 : index
    %286 = vector.load %arg28[%c0_223, %c0_224] : memref<128x128xf32, #tpu.memory_space<vmem>>, vector<16x62xf32>
    tpu.vector_store %arg28[%c0_223, %c0_224], %285 {strides = array<i32>} : memref<128x128xf32, #tpu.memory_space<vmem>>, vector<16x62xf32>,
    %c0_225 = arith.constant 0 : index
    %c3_226 = arith.constant 3 : index
    %287 = vector.load %arg28[%c0_225, %c3_226] : memref<128x128xf32, #tpu.memory_space<vmem>>, vector<4x59xf32>
    tpu.vector_store %arg28[%c0_225, %c3_226], %284 {strides = array<i32>} : memref<128x128xf32, #tpu.memory_space<vmem>>, vector<4x59xf32>,
    %c4_227 = arith.constant 4 : index
    %c2_228 = arith.constant 2 : index
    %288 = vector.load %arg28[%c4_227, %c2_228] : memref<128x128xf32, #tpu.memory_space<vmem>>, vector<4x59xf32>
    tpu.vector_store %arg28[%c4_227, %c2_228], %284 {strides = array<i32>} : memref<128x128xf32, #tpu.memory_space<vmem>>, vector<4x59xf32>,
    %c8_229 = arith.constant 8 : index
    %c1_230 = arith.constant 1 : index
    %289 = vector.load %arg28[%c8_229, %c1_230] : memref<128x128xf32, #tpu.memory_space<vmem>>, vector<4x59xf32>
    tpu.vector_store %arg28[%c8_229, %c1_230], %284 {strides = array<i32>} : memref<128x128xf32, #tpu.memory_space<vmem>>, vector<4x59xf32>,
    %c12_231 = arith.constant 12 : index
    %c0_232 = arith.constant 0 : index
    %290 = vector.load %arg28[%c12_231, %c0_232] : memref<128x128xf32, #tpu.memory_space<vmem>>, vector<4x59xf32>
    tpu.vector_store %arg28[%c12_231, %c0_232], %284 {strides = array<i32>} : memref<128x128xf32, #tpu.memory_space<vmem>>, vector<4x59xf32>,
    %c0_233 = arith.constant 0 : index
    %c0_234 = arith.constant 0 : index
    %291 = vector.load %arg22[%c0_233, %c0_234] : memref<1x16xf32, #tpu.memory_space<vmem>>, vector<1x16xf32>
    %c0_235 = arith.constant 0 : index
    %c0_236 = arith.constant 0 : index
    %292 = vector.load %arg28[%c0_235, %c0_236] : memref<128x128xf32, #tpu.memory_space<vmem>>, vector<16x62xf32>
    %cst_237 = arith.constant dense<0.000000e+00> : vector<1x62xf32>
    %293 = tpu.matmul %291, %292, %cst_237 {dimension_numbers = #tpu.dot_dimension_numbers<[1], [0], [0], [1], [0, 0, 1, 1], [], []>} : vector<1x16xf32>, vector<16x62xf32>, vector<1x62xf32> -> vector<1x62xf32>
    %cst_238 = arith.constant 0.000000e+00 : f32
    %294 = vector.broadcast %cst_238 : f32 to vector<12x61xf32>
    %c0_239 = arith.constant 0 : index
    %c0_240 = arith.constant 0 : index
    %295 = vector.load %arg28[%c0_239, %c0_240] : memref<128x128xf32, #tpu.memory_space<vmem>>, vector<12x61xf32>
    tpu.vector_store %arg28[%c0_239, %c0_240], %294 {strides = array<i32>} : memref<128x128xf32, #tpu.memory_space<vmem>>, vector<12x61xf32>,
    %c0_241 = arith.constant 0 : index
    %c2_242 = arith.constant 2 : index
    %296 = vector.load %arg28[%c0_241, %c2_242] : memref<128x128xf32, #tpu.memory_space<vmem>>, vector<4x59xf32>
    tpu.vector_store %arg28[%c0_241, %c2_242], %284 {strides = array<i32>} : memref<128x128xf32, #tpu.memory_space<vmem>>, vector<4x59xf32>,
    %c4_243 = arith.constant 4 : index
    %c1_244 = arith.constant 1 : index
    %297 = vector.load %arg28[%c4_243, %c1_244] : memref<128x128xf32, #tpu.memory_space<vmem>>, vector<4x59xf32>
    tpu.vector_store %arg28[%c4_243, %c1_244], %284 {strides = array<i32>} : memref<128x128xf32, #tpu.memory_space<vmem>>, vector<4x59xf32>,
    %c8_245 = arith.constant 8 : index
    %c0_246 = arith.constant 0 : index
    %298 = vector.load %arg28[%c8_245, %c0_246] : memref<128x128xf32, #tpu.memory_space<vmem>>, vector<4x59xf32>
    tpu.vector_store %arg28[%c8_245, %c0_246], %284 {strides = array<i32>} : memref<128x128xf32, #tpu.memory_space<vmem>>, vector<4x59xf32>,
    %c0_247 = arith.constant 0 : index
    %c0_248 = arith.constant 0 : index
    %299 = vector.load %arg23[%c0_247, %c0_248] : memref<1x12xf32, #tpu.memory_space<vmem>>, vector<1x12xf32>
    %c0_249 = arith.constant 0 : index
    %c0_250 = arith.constant 0 : index
    %300 = vector.load %arg28[%c0_249, %c0_250] : memref<128x128xf32, #tpu.memory_space<vmem>>, vector<12x61xf32>
    %cst_251 = arith.constant dense<0.000000e+00> : vector<1x61xf32>
    %301 = tpu.matmul %299, %300, %cst_251 {dimension_numbers = #tpu.dot_dimension_numbers<[1], [0], [0], [1], [0, 0, 1, 1], [], []>} : vector<1x12xf32>, vector<12x61xf32>, vector<1x61xf32> -> vector<1x61xf32>
    %c0_252 = arith.constant 0 : index
    %c0_253 = arith.constant 0 : index
    %302 = vector.load %arg24[%c0_252, %c0_253] : memref<62x123xf32, #tpu.memory_space<vmem>>, vector<62x123xf32>
    %cst_254 = arith.constant dense<0.000000e+00> : vector<1x123xf32>
    %303 = tpu.matmul %293, %302, %cst_254 {dimension_numbers = #tpu.dot_dimension_numbers<[1], [0], [0], [1], [0, 0, 1, 1], [], []>} : vector<1x62xf32>, vector<62x123xf32>, vector<1x123xf32> -> vector<1x123xf32>
    %c0_255 = arith.constant 0 : index
    %c0_256 = arith.constant 0 : index
    %304 = vector.load %arg25[%c0_255, %c0_256] : memref<61x123xf32, #tpu.memory_space<vmem>>, vector<61x123xf32>
    %cst_257 = arith.constant dense<0.000000e+00> : vector<1x123xf32>
    %305 = tpu.matmul %301, %304, %cst_257 {dimension_numbers = #tpu.dot_dimension_numbers<[1], [0], [0], [1], [0, 0, 1, 1], [], []>} : vector<1x61xf32>, vector<61x123xf32>, vector<1x123xf32> -> vector<1x123xf32>
    %306 = arith.addf %303, %305 : vector<1x123xf32>
    %c0_258 = arith.constant 0 : index
    %c0_259 = arith.constant 0 : index
    %307 = vector.load %arg26[%c0_258, %c0_259] : memref<1x1xf32, #tpu.memory_space<vmem>>, vector<1x1xf32>
    %308 = vector.broadcast %307 : vector<1x1xf32> to vector<1x123xf32>
    %309 = arith.addf %306, %308 : vector<1x123xf32>
    %cst_260 = arith.constant 0.000000e+00 : f32
    %310 = vector.broadcast %cst_260 : f32 to vector<1x1x128xf32>
    %c0_261 = arith.constant 0 : index
    %c0_262 = arith.constant 0 : index
    %c0_263 = arith.constant 0 : index
    %311 = vector.load %arg27[%c0_261, %c0_262, %c0_263] : memref<1x1x128xf32, #tpu.memory_space<vmem>>, vector<1x1x128xf32>
    tpu.vector_store %arg27[%c0_261, %c0_262, %c0_263], %310 {strides = array<i32>} : memref<1x1x128xf32, #tpu.memory_space<vmem>>, vector<1x1x128xf32>,
    %312 = vector.shape_cast %309 : vector<1x123xf32> to vector<1x1x123xf32>
    %c0_264 = arith.constant 0 : index
    %c0_265 = arith.constant 0 : index
    %c0_266 = arith.constant 0 : index
    %313 = vector.load %arg27[%c0_264, %c0_265, %c0_266] : memref<1x1x128xf32, #tpu.memory_space<vmem>>, vector<1x1x123xf32>
    tpu.vector_store %arg27[%c0_264, %c0_265, %c0_266], %312 {strides = array<i32>} : memref<1x1x128xf32, #tpu.memory_space<vmem>>, vector<1x1x123xf32>,
    return
  }
  func.func @transform_0(%arg0: i32) -> (i32, i32, i32) {
    %c0_i32 = arith.constant 0 : i32
    %c0_i32_0 = arith.constant 0 : i32
    %c0_i32_1 = arith.constant 0 : i32
    return %arg0, %c0_i32, %c0_i32_0 : i32, i32, i32
  }
  func.func @transform_1(%arg0: i32) -> (i32, i32) {
    %c0_i32 = arith.constant 0 : i32
    %c0_i32_0 = arith.constant 0 : i32
    %c0_i32_1 = arith.constant 0 : i32
    return %c0_i32, %c0_i32_0 : i32, i32
  }
  func.func @transform_2(%arg0: i32) -> (i32, i32) {
    %c0_i32 = arith.constant 0 : i32
    %c0_i32_0 = arith.constant 0 : i32
    %c0_i32_1 = arith.constant 0 : i32
    return %c0_i32, %c0_i32_0 : i32, i32
  }
  func.func @transform_3(%arg0: i32) -> (i32, i32) {
    %c0_i32 = arith.constant 0 : i32
    %c0_i32_0 = arith.constant 0 : i32
    %c0_i32_1 = arith.constant 0 : i32
    return %c0_i32, %c0_i32_0 : i32, i32
  }
  func.func @transform_4(%arg0: i32) -> (i32, i32) {
    %c0_i32 = arith.constant 0 : i32
    %c0_i32_0 = arith.constant 0 : i32
    %c0_i32_1 = arith.constant 0 : i32
    return %c0_i32, %c0_i32_0 : i32, i32
  }
  func.func @transform_5(%arg0: i32) -> (i32, i32) {
    %c0_i32 = arith.constant 0 : i32
    %c0_i32_0 = arith.constant 0 : i32
    %c0_i32_1 = arith.constant 0 : i32
    return %c0_i32, %c0_i32_0 : i32, i32
  }
  func.func @transform_6(%arg0: i32) -> (i32, i32) {
    %c0_i32 = arith.constant 0 : i32
    %c0_i32_0 = arith.constant 0 : i32
    %c0_i32_1 = arith.constant 0 : i32
    return %c0_i32, %c0_i32_0 : i32, i32
  }
  func.func @transform_7(%arg0: i32) -> (i32, i32) {
    %c0_i32 = arith.constant 0 : i32
    %c0_i32_0 = arith.constant 0 : i32
    %c0_i32_1 = arith.constant 0 : i32
    return %c0_i32, %c0_i32_0 : i32, i32
  }
  func.func @transform_8(%arg0: i32) -> (i32, i32) {
    %c0_i32 = arith.constant 0 : i32
    %c0_i32_0 = arith.constant 0 : i32
    %c0_i32_1 = arith.constant 0 : i32
    return %c0_i32, %c0_i32_0 : i32, i32
  }
  func.func @transform_9(%arg0: i32) -> (i32, i32) {
    %c0_i32 = arith.constant 0 : i32
    %c0_i32_0 = arith.constant 0 : i32
    %c0_i32_1 = arith.constant 0 : i32
    return %c0_i32, %c0_i32_0 : i32, i32
  }
  func.func @transform_10(%arg0: i32) -> (i32, i32) {
    %c0_i32 = arith.constant 0 : i32
    %c0_i32_0 = arith.constant 0 : i32
    %c0_i32_1 = arith.constant 0 : i32
    return %c0_i32, %c0_i32_0 : i32, i32
  }
  func.func @transform_11(%arg0: i32) -> (i32, i32) {
    %c0_i32 = arith.constant 0 : i32
    %c0_i32_0 = arith.constant 0 : i32
    %c0_i32_1 = arith.constant 0 : i32
    return %c0_i32, %c0_i32_0 : i32, i32
  }
  func.func @transform_12(%arg0: i32) -> (i32, i32) {
    %c0_i32 = arith.constant 0 : i32
    %c0_i32_0 = arith.constant 0 : i32
    %c0_i32_1 = arith.constant 0 : i32
    return %c0_i32, %c0_i32_0 : i32, i32
  }
  func.func @transform_13(%arg0: i32) -> (i32, i32) {
    %c0_i32 = arith.constant 0 : i32
    %c0_i32_0 = arith.constant 0 : i32
    %c0_i32_1 = arith.constant 0 : i32
    return %c0_i32, %c0_i32_0 : i32, i32
  }
  func.func @transform_14(%arg0: i32) -> (i32, i32) {
    %c0_i32 = arith.constant 0 : i32
    %c0_i32_0 = arith.constant 0 : i32
    %c0_i32_1 = arith.constant 0 : i32
    return %c0_i32, %c0_i32_0 : i32, i32
  }
  func.func @transform_15(%arg0: i32) -> (i32, i32) {
    %c0_i32 = arith.constant 0 : i32
    %c0_i32_0 = arith.constant 0 : i32
    %c0_i32_1 = arith.constant 0 : i32
    return %c0_i32, %c0_i32_0 : i32, i32
  }
  func.func @transform_16(%arg0: i32) -> (i32, i32) {
    %c0_i32 = arith.constant 0 : i32
    %c0_i32_0 = arith.constant 0 : i32
    %c0_i32_1 = arith.constant 0 : i32
    return %c0_i32, %c0_i32_0 : i32, i32
  }
  func.func @transform_17(%arg0: i32) -> (i32, i32) {
    %c0_i32 = arith.constant 0 : i32
    %c0_i32_0 = arith.constant 0 : i32
    %c0_i32_1 = arith.constant 0 : i32
    return %c0_i32, %c0_i32_0 : i32, i32
  }
  func.func @transform_18(%arg0: i32) -> (i32, i32) {
    %c0_i32 = arith.constant 0 : i32
    %c0_i32_0 = arith.constant 0 : i32
    %c0_i32_1 = arith.constant 0 : i32
    return %c0_i32, %c0_i32_0 : i32, i32
  }
  func.func @transform_19(%arg0: i32) -> (i32, i32) {
    %c0_i32 = arith.constant 0 : i32
    %c0_i32_0 = arith.constant 0 : i32
    %c0_i32_1 = arith.constant 0 : i32
    return %c0_i32, %c0_i32_0 : i32, i32
  }
  func.func @transform_20(%arg0: i32) -> (i32, i32) {
    %c0_i32 = arith.constant 0 : i32
    %c0_i32_0 = arith.constant 0 : i32
    %c0_i32_1 = arith.constant 0 : i32
    return %c0_i32, %c0_i32_0 : i32, i32
  }
  func.func @transform_21(%arg0: i32) -> (i32, i32) {
    %c0_i32 = arith.constant 0 : i32
    %c0_i32_0 = arith.constant 0 : i32
    %c0_i32_1 = arith.constant 0 : i32
    return %c0_i32, %c0_i32_0 : i32, i32
  }
  func.func @transform_22(%arg0: i32) -> (i32, i32) {
    %c0_i32 = arith.constant 0 : i32
    %c0_i32_0 = arith.constant 0 : i32
    %c0_i32_1 = arith.constant 0 : i32
    return %c0_i32, %c0_i32_0 : i32, i32
  }
  func.func @transform_23(%arg0: i32) -> (i32, i32) {
    %c0_i32 = arith.constant 0 : i32
    %c0_i32_0 = arith.constant 0 : i32
    %c0_i32_1 = arith.constant 0 : i32
    return %c0_i32, %c0_i32_0 : i32, i32
  }
  func.func @transform_24(%arg0: i32) -> (i32, i32) {
    %c0_i32 = arith.constant 0 : i32
    %c0_i32_0 = arith.constant 0 : i32
    %c0_i32_1 = arith.constant 0 : i32
    return %c0_i32, %c0_i32_0 : i32, i32
  }
  func.func @transform_25(%arg0: i32) -> (i32, i32) {
    %c0_i32 = arith.constant 0 : i32
    %c0_i32_0 = arith.constant 0 : i32
    %c0_i32_1 = arith.constant 0 : i32
    return %c0_i32, %c0_i32_0 : i32, i32
  }
  func.func @transform_26(%arg0: i32) -> (i32, i32, i32) {
    %c0_i32 = arith.constant 0 : i32
    %c0_i32_0 = arith.constant 0 : i32
    %c0_i32_1 = arith.constant 0 : i32
    return %arg0, %c0_i32, %c0_i32_0 : i32, i32, i32
  }
}

</mosaic_0001>

<llo_original>
// kernel: conv_8_layer_forward.1
$region0: #{conv_8_layer_forward.1}
  #allocation0 [shape = 'u32[]', space=smem, size = 0x4, offset = 0x4, fixed_abs, tag = 'smem constant byte address 0x4 - core index']
  #allocation1 [shape = 'u32[144,128]{1,0:T(1,128)}', space=vmem, size = 0x12000, scoped, tag = 'internal scratch']
  #allocation2 [shape = 'f32[128,128]{1,0:T(8,128)}', space=vmem, size = 0x10000, scoped, tag = 'scratch operand']
  #allocation3 [shape = 'f32[1,1]{1,0:T(1,128)S(1)}', space=vmem, size = 0x200, scoped, tag = 'scoped memory for conv_8_layer_forward.1']
  %s0 = inlined_call_operand.vmem [shape: f32[2,2,128], index: 0, kind: input, shape index: {}]
  %s1 = inlined_call_operand.hbm [shape: f32[4,14], index: 1, kind: input, shape index: {}]
  %s2 = inlined_call_operand.vmem [shape: f32[122,61], index: 2, kind: input, shape index: {}]
  %s3 = inlined_call_operand.hbm [shape: f32[8,28], index: 3, kind: input, shape index: {}]
  %s4 = inlined_call_operand.vmem [shape: f32[55,28], index: 4, kind: input, shape index: {}]
  %s5 = inlined_call_operand.vmem [shape: f32[16,56], index: 5, kind: input, shape index: {}]
  %s6 = inlined_call_operand.vmem [shape: f32[22,11], index: 6, kind: input, shape index: {}]
  %s7 = inlined_call_operand.vmem [shape: f32[32,112], index: 7, kind: input, shape index: {}]
  %s8 = inlined_call_operand.vmem [shape: f32[5,3], index: 8, kind: input, shape index: {}]
  %s9 = inlined_call_operand.vmem [shape: f32[16,128], index: 9, kind: input, shape index: {}]
  %s10 = inlined_call_operand.vmem [shape: f32[16,96], index: 10, kind: input, shape index: {}]
  %s11 = inlined_call_operand.hbm [shape: f32[6,11], index: 11, kind: input, shape index: {}]
  %s12 = inlined_call_operand.hbm [shape: f32[5,11], index: 12, kind: input, shape index: {}]
  %s13 = inlined_call_operand.hbm [shape: f32[8,64], index: 13, kind: input, shape index: {}]
  %s14 = inlined_call_operand.hbm [shape: f32[8,48], index: 14, kind: input, shape index: {}]
  %s15 = inlined_call_operand.vmem [shape: f32[14,27], index: 15, kind: input, shape index: {}]
  %s16 = inlined_call_operand.vmem [shape: f32[13,27], index: 16, kind: input, shape index: {}]
  %s17 = inlined_call_operand.hbm [shape: f32[4,32], index: 17, kind: input, shape index: {}]
  %s18 = inlined_call_operand.vmem [shape: f32[4,24], index: 18, kind: input, shape index: {}]
  %s19 = inlined_call_operand.vmem [shape: f32[30,59], index: 19, kind: input, shape index: {}]
  %s20 = inlined_call_operand.vmem [shape: f32[29,59], index: 20, kind: input, shape index: {}]
  %s21 = inlined_call_operand.vmem [shape: f32[1,16], index: 21, kind: input, shape index: {}]
  %s22 = inlined_call_operand.vmem [shape: f32[1,12], index: 22, kind: input, shape index: {}]
  %s23 = inlined_call_operand.vmem [shape: f32[62,123], index: 23, kind: input, shape index: {}]
  %s24 = inlined_call_operand.vmem [shape: f32[61,123], index: 24, kind: input, shape index: {}]
  %s25 = inlined_call_operand.<no memory space> [shape: f32[1,1], index: 25, kind: input, shape index: {}]
  %s26 = inlined_call_operand.hbm [shape: f32[2,1,128], index: 26, kind: output, shape index: {}]
  %s27 = sld [smem:[#allocation0]]
  $region165: #{conv_8_layer_forward.1} parent=0
    _
  %s29 = ssub.s32 1, %s27
  %s30 = scalar_select 0, %s29, %s27
  %v31 = vstv %s25
  %32 = vst [vmem:[#allocation3] sm:$0x1] %v31
  $region1: #{conv_8_layer_forward.1} parent=0
    #allocation4 [shape = 'u8[2048]{0}', space=vmem, size = 0x800, scoped, tag = 'input window, operand 1, single buffered']
    #allocation5 [shape = 's32[2]{0}', space=sflag, size = 0x8, scoped, tag = 'scoped memory for conv_8_layer_forward.1']
    #allocation6 [shape = 's32[2]{0}', space=sflag, size = 0x8, scoped, tag = 'scoped memory for conv_8_layer_forward.1']
    #allocation7 [shape = 'u8[4096]{0}', space=vmem, size = 0x1000, scoped, tag = 'input window, operand 3, single buffered']
    #allocation8 [shape = 's32[1]{0}', space=sflag, size = 0x4, scoped, tag = 'scoped memory for conv_8_layer_forward.1']
    #allocation9 [shape = 'u8[4096]{0}', space=vmem, size = 0x1000, scoped, tag = 'input window, operand 11, single buffered']
    #allocation10 [shape = 'u8[4096]{0}', space=vmem, size = 0x1000, scoped, tag = 'input window, operand 12, single buffered']
    #allocation11 [shape = 's32[1]{0}', space=sflag, size = 0x4, scoped, tag = 'scoped memory for conv_8_layer_forward.1']
    #allocation12 [shape = 'u8[4096]{0}', space=vmem, size = 0x1000, scoped, tag = 'input window, operand 13, single buffered']
    #allocation13 [shape = 'u8[4096]{0}', space=vmem, size = 0x1000, scoped, tag = 'input window, operand 14, single buffered']
    #allocation14 [shape = 's32[1]{0}', space=sflag, size = 0x4, scoped, tag = 'scoped memory for conv_8_layer_forward.1']
    #allocation15 [shape = 'u8[2048]{0}', space=vmem, size = 0x800, scoped, tag = 'input window, operand 17, single buffered']
    #allocation16 [shape = 'u8[1024]{0}', space=vmem, size = 0x400, scoped, tag = 'output window, operand 0']
    %33 = vsyncpa [#allocation5], 0
    %34 = vsyncpa [#allocation8], 0
    %35 = vsyncpa [#allocation11], 0
    %36 = vsyncpa [#allocation14], 0
    %37 = vsyncpa [#allocation6], 0
    %s38 = scalar_lea.sflag [#allocation6], 1
    %39 = vsyncpa %s38, 0
    loop: start=0, step=1, limit=4
    $region2: #{conv_8_layer_forward.1} parent=1 // loop_pre_header
      _
    $region3: #{conv_8_layer_forward.1} parent=1 // loop_header
      %s41 = sphi 0, %s45
      %p42 = scmp.ge.s32.totalorder %s41, 4
      %s51 = sphi 0, %s53
      %s54 = sphi 0, %s51
      %s55 = sphi 0, %s54
      %s71 = sphi 0, %s55
      %s75 = sphi 0, %s75
      %s77 = sphi 0, %s75
      %s78 = sphi 0, %s77
      %s92 = sphi 0, %s78
      %s96 = sphi 0, %s96
      %s98 = sphi 0, %s96
      %s99 = sphi 0, %s98
      %s113 = sphi 0, %s99
      %s117 = sphi 0, %s117
      %s119 = sphi 0, %s117
      %s120 = sphi 0, %s119
      %s134 = sphi 0, %s120
      %s138 = sphi 0, %s138
      %s140 = sphi 0, %s138
      %s141 = sphi 0, %s140
      %s155 = sphi 0, %s141
      %s159 = sphi 0, %s159
      %s161 = sphi 0, %s159
      %s162 = sphi 0, %s161
      %s176 = sphi 0, %s162
      %s180 = sphi 0, %s180
      %s182 = sphi 0, %s180
      %s183 = sphi 0, %s182
      %s197 = sphi 0, %s183
      %s201 = sphi 0, %s201
      %s203 = sphi 0, %s201
      %s204 = sphi 0, %s203
      %s218 = sphi 0, %s204
      %s222 = sphi 0, %s222
      %s224 = sphi 0, %s222
      %s225 = sphi 0, %s224
      %s239 = sphi 0, %s225
      %s243 = sphi 0, %s243
      %s245 = sphi 0, %s243
      %s246 = sphi 0, %s245
      %s260 = sphi 0, %s246
      %s264 = sphi 0, %s264
      %s266 = sphi 0, %s264
      %s267 = sphi 0, %s266
      %s281 = sphi 0, %s267
      %s285 = sphi 0, %s285
      %s287 = sphi 0, %s285
      %s288 = sphi 0, %s287
      %s302 = sphi 0, %s288
      %s306 = sphi 0, %s306
      %s308 = sphi 0, %s306
      %s309 = sphi 0, %s308
      %s323 = sphi 0, %s309
      %s327 = sphi 0, %s327
      %s329 = sphi 0, %s327
      %s330 = sphi 0, %s329
      %s344 = sphi 0, %s330
      %s348 = sphi 0, %s348
      %s350 = sphi 0, %s348
      %s351 = sphi 0, %s350
      %s365 = sphi 0, %s351
      %s369 = sphi 0, %s369
      %s371 = sphi 0, %s369
      %s372 = sphi 0, %s371
      %s386 = sphi 0, %s372
      %s390 = sphi 0, %s390
      %s392 = sphi 0, %s390
      %s393 = sphi 0, %s392
      %s407 = sphi 0, %s393
      %s411 = sphi 0, %s411
      %s413 = sphi 0, %s411
      %s414 = sphi 0, %s413
      %s428 = sphi 0, %s414
      %s432 = sphi 0, %s432
      %s434 = sphi 0, %s432
      %s435 = sphi 0, %s434
      %s449 = sphi 0, %s435
      %s453 = sphi 0, %s453
      %s455 = sphi 0, %s453
      %s456 = sphi 0, %s455
      %s470 = sphi 0, %s456
      %s474 = sphi 0, %s474
      %s476 = sphi 0, %s474
      %s477 = sphi 0, %s476
      %s491 = sphi 0, %s477
      %s495 = sphi 0, %s495
      %s497 = sphi 0, %s495
      %s498 = sphi 0, %s497
      %s512 = sphi 0, %s498
      %s516 = sphi 0, %s516
      %s518 = sphi 0, %s516
      %s519 = sphi 0, %s518
      %s533 = sphi 0, %s519
      %s537 = sphi 0, %s537
      %s539 = sphi 0, %s537
      %s540 = sphi 0, %s539
      %s554 = sphi 0, %s540
      %s558 = sphi 0, %s558
      %s560 = sphi 0, %s558
      %s561 = sphi 0, %s560
      %s575 = sphi 0, %s561
      %s579 = sphi 0, %s579
      %s581 = sphi 0, %s579
      %s582 = sphi 0, %s581
      %s596 = sphi 0, %s582
      %s602 = sphi 0, %s604
      %s605 = sphi 0, %s602
      %s606 = sphi 0, %s605
      %s622 = sphi 0, %s606
    $region4: #{conv_8_layer_forward.1} parent=1 // loop_header_branch
      %44 = sbr.rel (%p42) target = $region8
    $region5: #{conv_8_layer_forward.1} parent=1 // loop_body
      %s46 = ssub.s32 %s41, 1
      %s47 = ssub.s32 %s41, 2
      %s48 = sadd.s32 %s41, 1
      %s49 = ssub.s32 %s41, %s48
      %p50 = scmp.eq.s32.totalorder %s49, 0
      %s52 = sadd.s32 %s51, 1
      %s53 = scalar_select %p50, %s51, %s52
      %p56 = pneg %p50
      %p57 = scmp.eq.s32.totalorder %s41, 1
      %p58 = por %p56, %p57
      %p59 = scmp.ne.s32.totalorder %s51, %s54
      %p60 = scmp.eq.s32.totalorder %s41, 0
      %p61 = por %p59, %p60
      %p62 = scmp.ne.s32.totalorder %s51, %s54
      %p63 = scmp.eq.s32.totalorder %s46, 1
      %p64 = por %p62, %p63
      %p65 = scmp.ne.s32.totalorder %s54, %s55
      %p66 = scmp.eq.s32.totalorder %s46, 0
      %p67 = por %p65, %p66
      %p68 = scmp.ne.s32.totalorder %s54, %s55
      %p69 = scmp.eq.s32.totalorder %s47, 1
      %p70 = por %p68, %p69
      %p72 = scmp.ne.s32.totalorder %s55, %s71
      %p73 = scmp.eq.s32.totalorder %s47, 0
      %p74 = por %p72, %p73
      %s76 = sadd.s32 %s75, 1
      %p79 = scmp.eq.s32.totalorder %s41, 1
      %p80 = scmp.ne.s32.totalorder %s75, %s77
      %p81 = scmp.eq.s32.totalorder %s41, 0
      %p82 = por %p80, %p81
      %p83 = scmp.ne.s32.totalorder %s75, %s77
      %p84 = scmp.eq.s32.totalorder %s46, 1
      %p85 = por %p83, %p84
      %p86 = scmp.ne.s32.totalorder %s77, %s78
      %p87 = scmp.eq.s32.totalorder %s46, 0
      %p88 = por %p86, %p87
      %p89 = scmp.ne.s32.totalorder %s77, %s78
      %p90 = scmp.eq.s32.totalorder %s47, 1
      %p91 = por %p89, %p90
      %p93 = scmp.ne.s32.totalorder %s78, %s92
      %p94 = scmp.eq.s32.totalorder %s47, 0
      %p95 = por %p93, %p94
      %s97 = sadd.s32 %s96, 1
      %p100 = scmp.eq.s32.totalorder %s41, 1
      %p101 = scmp.ne.s32.totalorder %s96, %s98
      %p102 = scmp.eq.s32.totalorder %s41, 0
      %p103 = por %p101, %p102
      %p104 = scmp.ne.s32.totalorder %s96, %s98
      %p105 = scmp.eq.s32.totalorder %s46, 1
      %p106 = por %p104, %p105
      %p107 = scmp.ne.s32.totalorder %s98, %s99
      %p108 = scmp.eq.s32.totalorder %s46, 0
      %p109 = por %p107, %p108
      %p110 = scmp.ne.s32.totalorder %s98, %s99
      %p111 = scmp.eq.s32.totalorder %s47, 1
      %p112 = por %p110, %p111
      %p114 = scmp.ne.s32.totalorder %s99, %s113
      %p115 = scmp.eq.s32.totalorder %s47, 0
      %p116 = por %p114, %p115
      %s118 = sadd.s32 %s117, 1
      %p121 = scmp.eq.s32.totalorder %s41, 1
      %p122 = scmp.ne.s32.totalorder %s117, %s119
      %p123 = scmp.eq.s32.totalorder %s41, 0
      %p124 = por %p122, %p123
      %p125 = scmp.ne.s32.totalorder %s117, %s119
      %p126 = scmp.eq.s32.totalorder %s46, 1
      %p127 = por %p125, %p126
      %p128 = scmp.ne.s32.totalorder %s119, %s120
      %p129 = scmp.eq.s32.totalorder %s46, 0
      %p130 = por %p128, %p129
      %p131 = scmp.ne.s32.totalorder %s119, %s120
      %p132 = scmp.eq.s32.totalorder %s47, 1
      %p133 = por %p131, %p132
      %p135 = scmp.ne.s32.totalorder %s120, %s134
      %p136 = scmp.eq.s32.totalorder %s47, 0
      %p137 = por %p135, %p136
      %s139 = sadd.s32 %s138, 1
      %p142 = scmp.eq.s32.totalorder %s41, 1
      %p143 = scmp.ne.s32.totalorder %s138, %s140
      %p144 = scmp.eq.s32.totalorder %s41, 0
      %p145 = por %p143, %p144
      %p146 = scmp.ne.s32.totalorder %s138, %s140
      %p147 = scmp.eq.s32.totalorder %s46, 1
      %p148 = por %p146, %p147
      %p149 = scmp.ne.s32.totalorder %s140, %s141
      %p150 = scmp.eq.s32.totalorder %s46, 0
      %p151 = por %p149, %p150
      %p152 = scmp.ne.s32.totalorder %s140, %s141
      %p153 = scmp.eq.s32.totalorder %s47, 1
      %p154 = por %p152, %p153
      %p156 = scmp.ne.s32.totalorder %s141, %s155
      %p157 = scmp.eq.s32.totalorder %s47, 0
      %p158 = por %p156, %p157
      %s160 = sadd.s32 %s159, 1
      %p163 = scmp.eq.s32.totalorder %s41, 1
      %p164 = scmp.ne.s32.totalorder %s159, %s161
      %p165 = scmp.eq.s32.totalorder %s41, 0
      %p166 = por %p164, %p165
      %p167 = scmp.ne.s32.totalorder %s159, %s161
      %p168 = scmp.eq.s32.totalorder %s46, 1
      %p169 = por %p167, %p168
      %p170 = scmp.ne.s32.totalorder %s161, %s162
      %p171 = scmp.eq.s32.totalorder %s46, 0
      %p172 = por %p170, %p171
      %p173 = scmp.ne.s32.totalorder %s161, %s162
      %p174 = scmp.eq.s32.totalorder %s47, 1
      %p175 = por %p173, %p174
      %p177 = scmp.ne.s32.totalorder %s162, %s176
      %p178 = scmp.eq.s32.totalorder %s47, 0
      %p179 = por %p177, %p178
      %s181 = sadd.s32 %s180, 1
      %p184 = scmp.eq.s32.totalorder %s41, 1
      %p185 = scmp.ne.s32.totalorder %s180, %s182
      %p186 = scmp.eq.s32.totalorder %s41, 0
      %p187 = por %p185, %p186
      %p188 = scmp.ne.s32.totalorder %s180, %s182
      %p189 = scmp.eq.s32.totalorder %s46, 1
      %p190 = por %p188, %p189
      %p191 = scmp.ne.s32.totalorder %s182, %s183
      %p192 = scmp.eq.s32.totalorder %s46, 0
      %p193 = por %p191, %p192
      %p194 = scmp.ne.s32.totalorder %s182, %s183
      %p195 = scmp.eq.s32.totalorder %s47, 1
      %p196 = por %p194, %p195
      %p198 = scmp.ne.s32.totalorder %s183, %s197
      %p199 = scmp.eq.s32.totalorder %s47, 0
      %p200 = por %p198, %p199
      %s202 = sadd.s32 %s201, 1
      %p205 = scmp.eq.s32.totalorder %s41, 1
      %p206 = scmp.ne.s32.totalorder %s201, %s203
      %p207 = scmp.eq.s32.totalorder %s41, 0
      %p208 = por %p206, %p207
      %p209 = scmp.ne.s32.totalorder %s201, %s203
      %p210 = scmp.eq.s32.totalorder %s46, 1
      %p211 = por %p209, %p210
      %p212 = scmp.ne.s32.totalorder %s203, %s204
      %p213 = scmp.eq.s32.totalorder %s46, 0
      %p214 = por %p212, %p213
      %p215 = scmp.ne.s32.totalorder %s203, %s204
      %p216 = scmp.eq.s32.totalorder %s47, 1
      %p217 = por %p215, %p216
      %p219 = scmp.ne.s32.totalorder %s204, %s218
      %p220 = scmp.eq.s32.totalorder %s47, 0
      %p221 = por %p219, %p220
      %s223 = sadd.s32 %s222, 1
      %p226 = scmp.eq.s32.totalorder %s41, 1
      %p227 = scmp.ne.s32.totalorder %s222, %s224
      %p228 = scmp.eq.s32.totalorder %s41, 0
      %p229 = por %p227, %p228
      %p230 = scmp.ne.s32.totalorder %s222, %s224
      %p231 = scmp.eq.s32.totalorder %s46, 1
      %p232 = por %p230, %p231
      %p233 = scmp.ne.s32.totalorder %s224, %s225
      %p234 = scmp.eq.s32.totalorder %s46, 0
      %p235 = por %p233, %p234
      %p236 = scmp.ne.s32.totalorder %s224, %s225
      %p237 = scmp.eq.s32.totalorder %s47, 1
      %p238 = por %p236, %p237
      %p240 = scmp.ne.s32.totalorder %s225, %s239
      %p241 = scmp.eq.s32.totalorder %s47, 0
      %p242 = por %p240, %p241
      %s244 = sadd.s32 %s243, 1
      %p247 = scmp.eq.s32.totalorder %s41, 1
      %p248 = scmp.ne.s32.totalorder %s243, %s245
      %p249 = scmp.eq.s32.totalorder %s41, 0
      %p250 = por %p248, %p249
      %p251 = scmp.ne.s32.totalorder %s243, %s245
      %p252 = scmp.eq.s32.totalorder %s46, 1
      %p253 = por %p251, %p252
      %p254 = scmp.ne.s32.totalorder %s245, %s246
      %p255 = scmp.eq.s32.totalorder %s46, 0
      %p256 = por %p254, %p255
      %p257 = scmp.ne.s32.totalorder %s245, %s246
      %p258 = scmp.eq.s32.totalorder %s47, 1
      %p259 = por %p257, %p258
      %p261 = scmp.ne.s32.totalorder %s246, %s260
      %p262 = scmp.eq.s32.totalorder %s47, 0
      %p263 = por %p261, %p262
      %s265 = sadd.s32 %s264, 1
      %p268 = scmp.eq.s32.totalorder %s41, 1
      %p269 = scmp.ne.s32.totalorder %s264, %s266
      %p270 = scmp.eq.s32.totalorder %s41, 0
      %p271 = por %p269, %p270
      %p272 = scmp.ne.s32.totalorder %s264, %s266
      %p273 = scmp.eq.s32.totalorder %s46, 1
      %p274 = por %p272, %p273
      %p275 = scmp.ne.s32.totalorder %s266, %s267
      %p276 = scmp.eq.s32.totalorder %s46, 0
      %p277 = por %p275, %p276
      %p278 = scmp.ne.s32.totalorder %s266, %s267
      %p279 = scmp.eq.s32.totalorder %s47, 1
      %p280 = por %p278, %p279
      %p282 = scmp.ne.s32.totalorder %s267, %s281
      %p283 = scmp.eq.s32.totalorder %s47, 0
      %p284 = por %p282, %p283
      %s286 = sadd.s32 %s285, 1
      %p289 = scmp.eq.s32.totalorder %s41, 1
      %p290 = scmp.ne.s32.totalorder %s285, %s287
      %p291 = scmp.eq.s32.totalorder %s41, 0
      %p292 = por %p290, %p291
      %p293 = scmp.ne.s32.totalorder %s285, %s287
      %p294 = scmp.eq.s32.totalorder %s46, 1
      %p295 = por %p293, %p294
      %p296 = scmp.ne.s32.totalorder %s287, %s288
      %p297 = scmp.eq.s32.totalorder %s46, 0
      %p298 = por %p296, %p297
      %p299 = scmp.ne.s32.totalorder %s287, %s288
      %p300 = scmp.eq.s32.totalorder %s47, 1
      %p301 = por %p299, %p300
      %p303 = scmp.ne.s32.totalorder %s288, %s302
      %p304 = scmp.eq.s32.totalorder %s47, 0
      %p305 = por %p303, %p304
      %s307 = sadd.s32 %s306, 1
      %p310 = scmp.eq.s32.totalorder %s41, 1
      %p311 = scmp.ne.s32.totalorder %s306, %s308
      %p312 = scmp.eq.s32.totalorder %s41, 0
      %p313 = por %p311, %p312
      %p314 = scmp.ne.s32.totalorder %s306, %s308
      %p315 = scmp.eq.s32.totalorder %s46, 1
      %p316 = por %p314, %p315
      %p317 = scmp.ne.s32.totalorder %s308, %s309
      %p318 = scmp.eq.s32.totalorder %s46, 0
      %p319 = por %p317, %p318
      %p320 = scmp.ne.s32.totalorder %s308, %s309
      %p321 = scmp.eq.s32.totalorder %s47, 1
      %p322 = por %p320, %p321
      %p324 = scmp.ne.s32.totalorder %s309, %s323
      %p325 = scmp.eq.s32.totalorder %s47, 0
      %p326 = por %p324, %p325
      %s328 = sadd.s32 %s327, 1
      %p331 = scmp.eq.s32.totalorder %s41, 1
      %p332 = scmp.ne.s32.totalorder %s327, %s329
      %p333 = scmp.eq.s32.totalorder %s41, 0
      %p334 = por %p332, %p333
      %p335 = scmp.ne.s32.totalorder %s327, %s329
      %p336 = scmp.eq.s32.totalorder %s46, 1
      %p337 = por %p335, %p336
      %p338 = scmp.ne.s32.totalorder %s329, %s330
      %p339 = scmp.eq.s32.totalorder %s46, 0
      %p340 = por %p338, %p339
      %p341 = scmp.ne.s32.totalorder %s329, %s330
      %p342 = scmp.eq.s32.totalorder %s47, 1
      %p343 = por %p341, %p342
      %p345 = scmp.ne.s32.totalorder %s330, %s344
      %p346 = scmp.eq.s32.totalorder %s47, 0
      %p347 = por %p345, %p346
      %s349 = sadd.s32 %s348, 1
      %p352 = scmp.eq.s32.totalorder %s41, 1
      %p353 = scmp.ne.s32.totalorder %s348, %s350
      %p354 = scmp.eq.s32.totalorder %s41, 0
      %p355 = por %p353, %p354
      %p356 = scmp.ne.s32.totalorder %s348, %s350
      %p357 = scmp.eq.s32.totalorder %s46, 1
      %p358 = por %p356, %p357
      %p359 = scmp.ne.s32.totalorder %s350, %s351
      %p360 = scmp.eq.s32.totalorder %s46, 0
      %p361 = por %p359, %p360
      %p362 = scmp.ne.s32.totalorder %s350, %s351
      %p363 = scmp.eq.s32.totalorder %s47, 1
      %p364 = por %p362, %p363
      %p366 = scmp.ne.s32.totalorder %s351, %s365
      %p367 = scmp.eq.s32.totalorder %s47, 0
      %p368 = por %p366, %p367
      %s370 = sadd.s32 %s369, 1
      %p373 = scmp.eq.s32.totalorder %s41, 1
      %p374 = scmp.ne.s32.totalorder %s369, %s371
      %p375 = scmp.eq.s32.totalorder %s41, 0
      %p376 = por %p374, %p375
      %p377 = scmp.ne.s32.totalorder %s369, %s371
      %p378 = scmp.eq.s32.totalorder %s46, 1
      %p379 = por %p377, %p378
      %p380 = scmp.ne.s32.totalorder %s371, %s372
      %p381 = scmp.eq.s32.totalorder %s46, 0
      %p382 = por %p380, %p381
      %p383 = scmp.ne.s32.totalorder %s371, %s372
      %p384 = scmp.eq.s32.totalorder %s47, 1
      %p385 = por %p383, %p384
      %p387 = scmp.ne.s32.totalorder %s372, %s386
      %p388 = scmp.eq.s32.totalorder %s47, 0
      %p389 = por %p387, %p388
      %s391 = sadd.s32 %s390, 1
      %p394 = scmp.eq.s32.totalorder %s41, 1
      %p395 = scmp.ne.s32.totalorder %s390, %s392
      %p396 = scmp.eq.s32.totalorder %s41, 0
      %p397 = por %p395, %p396
      %p398 = scmp.ne.s32.totalorder %s390, %s392
      %p399 = scmp.eq.s32.totalorder %s46, 1
      %p400 = por %p398, %p399
      %p401 = scmp.ne.s32.totalorder %s392, %s393
      %p402 = scmp.eq.s32.totalorder %s46, 0
      %p403 = por %p401, %p402
      %p404 = scmp.ne.s32.totalorder %s392, %s393
      %p405 = scmp.eq.s32.totalorder %s47, 1
      %p406 = por %p404, %p405
      %p408 = scmp.ne.s32.totalorder %s393, %s407
      %p409 = scmp.eq.s32.totalorder %s47, 0
      %p410 = por %p408, %p409
      %s412 = sadd.s32 %s411, 1
      %p415 = scmp.eq.s32.totalorder %s41, 1
      %p416 = scmp.ne.s32.totalorder %s411, %s413
      %p417 = scmp.eq.s32.totalorder %s41, 0
      %p418 = por %p416, %p417
      %p419 = scmp.ne.s32.totalorder %s411, %s413
      %p420 = scmp.eq.s32.totalorder %s46, 1
      %p421 = por %p419, %p420
      %p422 = scmp.ne.s32.totalorder %s413, %s414
      %p423 = scmp.eq.s32.totalorder %s46, 0
      %p424 = por %p422, %p423
      %p425 = scmp.ne.s32.totalorder %s413, %s414
      %p426 = scmp.eq.s32.totalorder %s47, 1
      %p427 = por %p425, %p426
      %p429 = scmp.ne.s32.totalorder %s414, %s428
      %p430 = scmp.eq.s32.totalorder %s47, 0
      %p431 = por %p429, %p430
      %s433 = sadd.s32 %s432, 1
      %p436 = scmp.eq.s32.totalorder %s41, 1
      %p437 = scmp.ne.s32.totalorder %s432, %s434
      %p438 = scmp.eq.s32.totalorder %s41, 0
      %p439 = por %p437, %p438
      %p440 = scmp.ne.s32.totalorder %s432, %s434
      %p441 = scmp.eq.s32.totalorder %s46, 1
      %p442 = por %p440, %p441
      %p443 = scmp.ne.s32.totalorder %s434, %s435
      %p444 = scmp.eq.s32.totalorder %s46, 0
      %p445 = por %p443, %p444
      %p446 = scmp.ne.s32.totalorder %s434, %s435
      %p447 = scmp.eq.s32.totalorder %s47, 1
      %p448 = por %p446, %p447
      %p450 = scmp.ne.s32.totalorder %s435, %s449
      %p451 = scmp.eq.s32.totalorder %s47, 0
      %p452 = por %p450, %p451
      %s454 = sadd.s32 %s453, 1
      %p457 = scmp.eq.s32.totalorder %s41, 1
      %p458 = scmp.ne.s32.totalorder %s453, %s455
      %p459 = scmp.eq.s32.totalorder %s41, 0
      %p460 = por %p458, %p459
      %p461 = scmp.ne.s32.totalorder %s453, %s455
      %p462 = scmp.eq.s32.totalorder %s46, 1
      %p463 = por %p461, %p462
      %p464 = scmp.ne.s32.totalorder %s455, %s456
      %p465 = scmp.eq.s32.totalorder %s46, 0
      %p466 = por %p464, %p465
      %p467 = scmp.ne.s32.totalorder %s455, %s456
      %p468 = scmp.eq.s32.totalorder %s47, 1
      %p469 = por %p467, %p468
      %p471 = scmp.ne.s32.totalorder %s456, %s470
      %p472 = scmp.eq.s32.totalorder %s47, 0
      %p473 = por %p471, %p472
      %s475 = sadd.s32 %s474, 1
      %p478 = scmp.eq.s32.totalorder %s41, 1
      %p479 = scmp.ne.s32.totalorder %s474, %s476
      %p480 = scmp.eq.s32.totalorder %s41, 0
      %p481 = por %p479, %p480
      %p482 = scmp.ne.s32.totalorder %s474, %s476
      %p483 = scmp.eq.s32.totalorder %s46, 1
      %p484 = por %p482, %p483
      %p485 = scmp.ne.s32.totalorder %s476, %s477
      %p486 = scmp.eq.s32.totalorder %s46, 0
      %p487 = por %p485, %p486
      %p488 = scmp.ne.s32.totalorder %s476, %s477
      %p489 = scmp.eq.s32.totalorder %s47, 1
      %p490 = por %p488, %p489
      %p492 = scmp.ne.s32.totalorder %s477, %s491
      %p493 = scmp.eq.s32.totalorder %s47, 0
      %p494 = por %p492, %p493
      %s496 = sadd.s32 %s495, 1
      %p499 = scmp.eq.s32.totalorder %s41, 1
      %p500 = scmp.ne.s32.totalorder %s495, %s497
      %p501 = scmp.eq.s32.totalorder %s41, 0
      %p502 = por %p500, %p501
      %p503 = scmp.ne.s32.totalorder %s495, %s497
      %p504 = scmp.eq.s32.totalorder %s46, 1
      %p505 = por %p503, %p504
      %p506 = scmp.ne.s32.totalorder %s497, %s498
      %p507 = scmp.eq.s32.totalorder %s46, 0
      %p508 = por %p506, %p507
      %p509 = scmp.ne.s32.totalorder %s497, %s498
      %p510 = scmp.eq.s32.totalorder %s47, 1
      %p511 = por %p509, %p510
      %p513 = scmp.ne.s32.totalorder %s498, %s512
      %p514 = scmp.eq.s32.totalorder %s47, 0
      %p515 = por %p513, %p514
      %s517 = sadd.s32 %s516, 1
      %p520 = scmp.eq.s32.totalorder %s41, 1
      %p521 = scmp.ne.s32.totalorder %s516, %s518
      %p522 = scmp.eq.s32.totalorder %s41, 0
      %p523 = por %p521, %p522
      %p524 = scmp.ne.s32.totalorder %s516, %s518
      %p525 = scmp.eq.s32.totalorder %s46, 1
      %p526 = por %p524, %p525
      %p527 = scmp.ne.s32.totalorder %s518, %s519
      %p528 = scmp.eq.s32.totalorder %s46, 0
      %p529 = por %p527, %p528
      %p530 = scmp.ne.s32.totalorder %s518, %s519
      %p531 = scmp.eq.s32.totalorder %s47, 1
      %p532 = por %p530, %p531
      %p534 = scmp.ne.s32.totalorder %s519, %s533
      %p535 = scmp.eq.s32.totalorder %s47, 0
      %p536 = por %p534, %p535
      %s538 = sadd.s32 %s537, 1
      %p541 = scmp.eq.s32.totalorder %s41, 1
      %p542 = scmp.ne.s32.totalorder %s537, %s539
      %p543 = scmp.eq.s32.totalorder %s41, 0
      %p544 = por %p542, %p543
      %p545 = scmp.ne.s32.totalorder %s537, %s539
      %p546 = scmp.eq.s32.totalorder %s46, 1
      %p547 = por %p545, %p546
      %p548 = scmp.ne.s32.totalorder %s539, %s540
      %p549 = scmp.eq.s32.totalorder %s46, 0
      %p550 = por %p548, %p549
      %p551 = scmp.ne.s32.totalorder %s539, %s540
      %p552 = scmp.eq.s32.totalorder %s47, 1
      %p553 = por %p551, %p552
      %p555 = scmp.ne.s32.totalorder %s540, %s554
      %p556 = scmp.eq.s32.totalorder %s47, 0
      %p557 = por %p555, %p556
      %s559 = sadd.s32 %s558, 1
      %p562 = scmp.eq.s32.totalorder %s41, 1
      %p563 = scmp.ne.s32.totalorder %s558, %s560
      %p564 = scmp.eq.s32.totalorder %s41, 0
      %p565 = por %p563, %p564
      %p566 = scmp.ne.s32.totalorder %s558, %s560
      %p567 = scmp.eq.s32.totalorder %s46, 1
      %p568 = por %p566, %p567
      %p569 = scmp.ne.s32.totalorder %s560, %s561
      %p570 = scmp.eq.s32.totalorder %s46, 0
      %p571 = por %p569, %p570
      %p572 = scmp.ne.s32.totalorder %s560, %s561
      %p573 = scmp.eq.s32.totalorder %s47, 1
      %p574 = por %p572, %p573
      %p576 = scmp.ne.s32.totalorder %s561, %s575
      %p577 = scmp.eq.s32.totalorder %s47, 0
      %p578 = por %p576, %p577
      %s580 = sadd.s32 %s579, 1
      %p583 = scmp.eq.s32.totalorder %s41, 1
      %p584 = scmp.ne.s32.totalorder %s579, %s581
      %p585 = scmp.eq.s32.totalorder %s41, 0
      %p586 = por %p584, %p585
      %p587 = scmp.ne.s32.totalorder %s579, %s581
      %p588 = scmp.eq.s32.totalorder %s46, 1
      %p589 = por %p587, %p588
      %p590 = scmp.ne.s32.totalorder %s581, %s582
      %p591 = scmp.eq.s32.totalorder %s46, 0
      %p592 = por %p590, %p591
      %p593 = scmp.ne.s32.totalorder %s581, %s582
      %p594 = scmp.eq.s32.totalorder %s47, 1
      %p595 = por %p593, %p594
      %p597 = scmp.ne.s32.totalorder %s582, %s596
      %p598 = scmp.eq.s32.totalorder %s47, 0
      %p599 = por %p597, %p598
      %s600 = ssub.s32 %s41, %s48
      %p601 = scmp.eq.s32.totalorder %s600, 0
      %s603 = sadd.s32 %s602, 1
      %s604 = scalar_select %p601, %s602, %s603
      %p607 = pneg %p601
      %p608 = scmp.eq.s32.totalorder %s41, 1
      %p609 = por %p607, %p608
      %p610 = scmp.ne.s32.totalorder %s602, %s605
      %p611 = scmp.eq.s32.totalorder %s41, 0
      %p612 = por %p610, %p611
      %p613 = scmp.ne.s32.totalorder %s602, %s605
      %p614 = scmp.eq.s32.totalorder %s46, 1
      %p615 = por %p613, %p614
      %p616 = scmp.ne.s32.totalorder %s605, %s606
      %p617 = scmp.eq.s32.totalorder %s46, 0
      %p618 = por %p616, %p617
      %p619 = scmp.ne.s32.totalorder %s605, %s606
      %p620 = scmp.eq.s32.totalorder %s47, 1
      %p621 = por %p619, %p620
      %p623 = scmp.ne.s32.totalorder %s606, %s622
      %p624 = scmp.eq.s32.totalorder %s47, 0
      %p625 = por %p623, %p624
      %p626 = scmp.le.s32.totalorder 1, %s41
      %p627 = scmp.lt.s32.totalorder %s41, 3
      %p628 = pnand %p626, %p627
      %p629 = pneg %p628
      // Predicated region
      $region9: #{conv_8_layer_forward.1} parent=5 // pred_check
        _
      $region10: #{conv_8_layer_forward.1} parent=5 // pred_check_branch
        %631 = sbr.rel (%p628) target = $region12
      $region11: #{conv_8_layer_forward.1} parent=5 // pred_region
        %s632 = ssub.s32 %s41, 1
        // Predicated region
        $region13: #{conv_8_layer_forward.1} parent=11 // pred_check
          %p633 = pneg %p88
        $region14: #{conv_8_layer_forward.1} parent=11 // pred_check_branch
          %635 = sbr.rel (%p633) target = $region16
        $region15: #{conv_8_layer_forward.1} parent=11 // pred_region
          %s637 = ssub.s32 64, 64
          %638 = vsyncadd [#allocation5], %s637
          %s640 = sshll.u32 [#allocation4], 4
          %s641 = int_to_ptr.vmem [resolvable:$true] %s640
          %643 = dma.hbm_to_vmem [thread:$0]  %s1, 64, %s641, [#allocation5]
        $region16: #{conv_8_layer_forward.1} parent=11 // pred_fallthru
          _
        // Predicated region
        $region17: #{conv_8_layer_forward.1} parent=11 // pred_check
          %p644 = pneg %p109
        $region18: #{conv_8_layer_forward.1} parent=11 // pred_check_branch
          %646 = sbr.rel (%p644) target = $region20
        $region19: #{conv_8_layer_forward.1} parent=11 // pred_region
          _
        $region20: #{conv_8_layer_forward.1} parent=11 // pred_fallthru
          _
        // Predicated region
        $region21: #{conv_8_layer_forward.1} parent=11 // pred_check
          %p647 = pneg %p130
        $region22: #{conv_8_layer_forward.1} parent=11 // pred_check_branch
          %649 = sbr.rel (%p647) target = $region24
        $region23: #{conv_8_layer_forward.1} parent=11 // pred_region
          %s651 = ssub.s32 128, 128
          %652 = vsyncadd [#allocation8], %s651
          %s654 = sshll.u32 [#allocation7], 4
          %s655 = int_to_ptr.vmem [resolvable:$true] %s654
          %657 = dma.hbm_to_vmem [thread:$0]  %s3, 128, %s655, [#allocation8]
        $region24: #{conv_8_layer_forward.1} parent=11 // pred_fallthru
          _
        // Predicated region
        $region25: #{conv_8_layer_forward.1} parent=11 // pred_check
          %p658 = pneg %p151
        $region26: #{conv_8_layer_forward.1} parent=11 // pred_check_branch
          %660 = sbr.rel (%p658) target = $region28
        $region27: #{conv_8_layer_forward.1} parent=11 // pred_region
          _
        $region28: #{conv_8_layer_forward.1} parent=11 // pred_fallthru
          _
        // Predicated region
        $region29: #{conv_8_layer_forward.1} parent=11 // pred_check
          %p661 = pneg %p172
        $region30: #{conv_8_layer_forward.1} parent=11 // pred_check_branch
          %663 = sbr.rel (%p661) target = $region32
        $region31: #{conv_8_layer_forward.1} parent=11 // pred_region
          _
        $region32: #{conv_8_layer_forward.1} parent=11 // pred_fallthru
          _
        // Predicated region
        $region33: #{conv_8_layer_forward.1} parent=11 // pred_check
          %p664 = pneg %p193
        $region34: #{conv_8_layer_forward.1} parent=11 // pred_check_branch
          %666 = sbr.rel (%p664) target = $region36
        $region35: #{conv_8_layer_forward.1} parent=11 // pred_region
          _
        $region36: #{conv_8_layer_forward.1} parent=11 // pred_fallthru
          _
        // Predicated region
        $region37: #{conv_8_layer_forward.1} parent=11 // pred_check
          %p667 = pneg %p214
        $region38: #{conv_8_layer_forward.1} parent=11 // pred_check_branch
          %669 = sbr.rel (%p667) target = $region40
        $region39: #{conv_8_layer_forward.1} parent=11 // pred_region
          _
        $region40: #{conv_8_layer_forward.1} parent=11 // pred_fallthru
          _
        // Predicated region
        $region41: #{conv_8_layer_forward.1} parent=11 // pred_check
          %p670 = pneg %p235
        $region42: #{conv_8_layer_forward.1} parent=11 // pred_check_branch
          %672 = sbr.rel (%p670) target = $region44
        $region43: #{conv_8_layer_forward.1} parent=11 // pred_region
          _
        $region44: #{conv_8_layer_forward.1} parent=11 // pred_fallthru
          _
        // Predicated region
        $region45: #{conv_8_layer_forward.1} parent=11 // pred_check
          %p673 = pneg %p256
        $region46: #{conv_8_layer_forward.1} parent=11 // pred_check_branch
          %675 = sbr.rel (%p673) target = $region48
        $region47: #{conv_8_layer_forward.1} parent=11 // pred_region
          _
        $region48: #{conv_8_layer_forward.1} parent=11 // pred_fallthru
          _
        // Predicated region
        $region49: #{conv_8_layer_forward.1} parent=11 // pred_check
          %p676 = pneg %p277
        $region50: #{conv_8_layer_forward.1} parent=11 // pred_check_branch
          %678 = sbr.rel (%p676) target = $region52
        $region51: #{conv_8_layer_forward.1} parent=11 // pred_region
          _
        $region52: #{conv_8_layer_forward.1} parent=11 // pred_fallthru
          _
        // Predicated region
        $region53: #{conv_8_layer_forward.1} parent=11 // pred_check
          %p679 = pneg %p298
        $region54: #{conv_8_layer_forward.1} parent=11 // pred_check_branch
          %681 = sbr.rel (%p679) target = $region56
        $region55: #{conv_8_layer_forward.1} parent=11 // pred_region
          %s683 = ssub.s32 128, 128
          %684 = vsyncadd [#allocation8], %s683
          %s686 = sshll.u32 [#allocation9], 4
          %s687 = int_to_ptr.vmem [resolvable:$true] %s686
          %689 = dma.hbm_to_vmem [thread:$0]  %s11, 128, %s687, [#allocation8]
        $region56: #{conv_8_layer_forward.1} parent=11 // pred_fallthru
          _
        // Predicated region
        $region57: #{conv_8_layer_forward.1} parent=11 // pred_check
          %p690 = pneg %p319
        $region58: #{conv_8_layer_forward.1} parent=11 // pred_check_branch
          %692 = sbr.rel (%p690) target = $region60
        $region59: #{conv_8_layer_forward.1} parent=11 // pred_region
          %s694 = ssub.s32 128, 128
          %695 = vsyncadd [#allocation11], %s694
          %s697 = sshll.u32 [#allocation10], 4
          %s698 = int_to_ptr.vmem [resolvable:$true] %s697
          %700 = dma.hbm_to_vmem [thread:$0]  %s12, 128, %s698, [#allocation11]
        $region60: #{conv_8_layer_forward.1} parent=11 // pred_fallthru
          _
        // Predicated region
        $region61: #{conv_8_layer_forward.1} parent=11 // pred_check
          %p701 = pneg %p340
        $region62: #{conv_8_layer_forward.1} parent=11 // pred_check_branch
          %703 = sbr.rel (%p701) target = $region64
        $region63: #{conv_8_layer_forward.1} parent=11 // pred_region
          %s705 = ssub.s32 128, 128
          %706 = vsyncadd [#allocation11], %s705
          %s708 = sshll.u32 [#allocation12], 4
          %s709 = int_to_ptr.vmem [resolvable:$true] %s708
          %711 = dma.hbm_to_vmem [thread:$0]  %s13, 128, %s709, [#allocation11]
        $region64: #{conv_8_layer_forward.1} parent=11 // pred_fallthru
          _
        // Predicated region
        $region65: #{conv_8_layer_forward.1} parent=11 // pred_check
          %p712 = pneg %p361
        $region66: #{conv_8_layer_forward.1} parent=11 // pred_check_branch
          %714 = sbr.rel (%p712) target = $region68
        $region67: #{conv_8_layer_forward.1} parent=11 // pred_region
          %s716 = ssub.s32 128, 128
          %717 = vsyncadd [#allocation14], %s716
          %s719 = sshll.u32 [#allocation13], 4
          %s720 = int_to_ptr.vmem [resolvable:$true] %s719
          %722 = dma.hbm_to_vmem [thread:$0]  %s14, 128, %s720, [#allocation14]
        $region68: #{conv_8_layer_forward.1} parent=11 // pred_fallthru
          _
        // Predicated region
        $region69: #{conv_8_layer_forward.1} parent=11 // pred_check
          %p723 = pneg %p382
        $region70: #{conv_8_layer_forward.1} parent=11 // pred_check_branch
          %725 = sbr.rel (%p723) target = $region72
        $region71: #{conv_8_layer_forward.1} parent=11 // pred_region
          _
        $region72: #{conv_8_layer_forward.1} parent=11 // pred_fallthru
          _
        // Predicated region
        $region73: #{conv_8_layer_forward.1} parent=11 // pred_check
          %p726 = pneg %p403
        $region74: #{conv_8_layer_forward.1} parent=11 // pred_check_branch
          %728 = sbr.rel (%p726) target = $region76
        $region75: #{conv_8_layer_forward.1} parent=11 // pred_region
          _
        $region76: #{conv_8_layer_forward.1} parent=11 // pred_fallthru
          _
        // Predicated region
        $region77: #{conv_8_layer_forward.1} parent=11 // pred_check
          %p729 = pneg %p424
        $region78: #{conv_8_layer_forward.1} parent=11 // pred_check_branch
          %731 = sbr.rel (%p729) target = $region80
        $region79: #{conv_8_layer_forward.1} parent=11 // pred_region
          %s733 = ssub.s32 64, 64
          %734 = vsyncadd [#allocation14], %s733
          %s736 = sshll.u32 [#allocation15], 4
          %s737 = int_to_ptr.vmem [resolvable:$true] %s736
          %739 = dma.hbm_to_vmem [thread:$0]  %s17, 64, %s737, [#allocation14]
        $region80: #{conv_8_layer_forward.1} parent=11 // pred_fallthru
          _
        // Predicated region
        $region81: #{conv_8_layer_forward.1} parent=11 // pred_check
          %p740 = pneg %p445
        $region82: #{conv_8_layer_forward.1} parent=11 // pred_check_branch
          %742 = sbr.rel (%p740) target = $region84
        $region83: #{conv_8_layer_forward.1} parent=11 // pred_region
          _
        $region84: #{conv_8_layer_forward.1} parent=11 // pred_fallthru
          _
        // Predicated region
        $region85: #{conv_8_layer_forward.1} parent=11 // pred_check
          %p743 = pneg %p466
        $region86: #{conv_8_layer_forward.1} parent=11 // pred_check_branch
          %745 = sbr.rel (%p743) target = $region88
        $region87: #{conv_8_layer_forward.1} parent=11 // pred_region
          _
        $region88: #{conv_8_layer_forward.1} parent=11 // pred_fallthru
          _
        // Predicated region
        $region89: #{conv_8_layer_forward.1} parent=11 // pred_check
          %p746 = pneg %p487
        $region90: #{conv_8_layer_forward.1} parent=11 // pred_check_branch
          %748 = sbr.rel (%p746) target = $region92
        $region91: #{conv_8_layer_forward.1} parent=11 // pred_region
          _
        $region92: #{conv_8_layer_forward.1} parent=11 // pred_fallthru
          _
        // Predicated region
        $region93: #{conv_8_layer_forward.1} parent=11 // pred_check
          %p749 = pneg %p508
        $region94: #{conv_8_layer_forward.1} parent=11 // pred_check_branch
          %751 = sbr.rel (%p749) target = $region96
        $region95: #{conv_8_layer_forward.1} parent=11 // pred_region
          _
        $region96: #{conv_8_layer_forward.1} parent=11 // pred_fallthru
          _
        // Predicated region
        $region97: #{conv_8_layer_forward.1} parent=11 // pred_check
          %p752 = pneg %p529
        $region98: #{conv_8_layer_forward.1} parent=11 // pred_check_branch
          %754 = sbr.rel (%p752) target = $region100
        $region99: #{conv_8_layer_forward.1} parent=11 // pred_region
          _
        $region100: #{conv_8_layer_forward.1} parent=11 // pred_fallthru
          _
        // Predicated region
        $region101: #{conv_8_layer_forward.1} parent=11 // pred_check
          %p755 = pneg %p550
        $region102: #{conv_8_layer_forward.1} parent=11 // pred_check_branch
          %757 = sbr.rel (%p755) target = $region104
        $region103: #{conv_8_layer_forward.1} parent=11 // pred_region
          _
        $region104: #{conv_8_layer_forward.1} parent=11 // pred_fallthru
          _
        // Predicated region
        $region105: #{conv_8_layer_forward.1} parent=11 // pred_check
          %p758 = pneg %p571
        $region106: #{conv_8_layer_forward.1} parent=11 // pred_check_branch
          %760 = sbr.rel (%p758) target = $region108
        $region107: #{conv_8_layer_forward.1} parent=11 // pred_region
          _
        $region108: #{conv_8_layer_forward.1} parent=11 // pred_fallthru
          _
        // Predicated region
        $region109: #{conv_8_layer_forward.1} parent=11 // pred_check
          %p761 = pneg %p592
        $region110: #{conv_8_layer_forward.1} parent=11 // pred_check_branch
          %763 = sbr.rel (%p761) target = $region112
        $region111: #{conv_8_layer_forward.1} parent=11 // pred_region
          _
        $region112: #{conv_8_layer_forward.1} parent=11 // pred_fallthru
          _
      $region12: #{conv_8_layer_forward.1} parent=5 // pred_fallthru
        _
      %p764 = scmp.lt.s32.totalorder %s41, 2
      // Predicated region
      $region113: #{conv_8_layer_forward.1} parent=5 // pred_check
        %p765 = pneg %p764
      $region114: #{conv_8_layer_forward.1} parent=5 // pred_check_branch
        %767 = sbr.rel (%p765) target = $region116
      $region115: #{conv_8_layer_forward.1} parent=5 // pred_region
        // Predicated region
        $region117: #{conv_8_layer_forward.1} parent=115 // pred_check
          %p768 = pneg %p61
        $region118: #{conv_8_layer_forward.1} parent=115 // pred_check_branch
          %770 = sbr.rel (%p768) target = $region120
        $region119: #{conv_8_layer_forward.1} parent=115 // pred_region
          %p771 = scmp.lt.s32.totalorder %s41, 1
          %s772 = scalar_select %p771, %s41, 1
          %s773 = smul.addr %s772, 2
          %s774 = scalar_lea.vmem %s0, %s773
        $region120: #{conv_8_layer_forward.1} parent=115 // pred_fallthru
          _
      $region116: #{conv_8_layer_forward.1} parent=5 // pred_fallthru
        _
      %p775 = scmp.le.s32.totalorder 1, %s41
      %p776 = scmp.lt.s32.totalorder %s41, 3
      %p777 = pnand %p775, %p776
      %p778 = pneg %p777
      // Predicated region
      $region121: #{conv_8_layer_forward.1} parent=5 // pred_check
        _
      $region122: #{conv_8_layer_forward.1} parent=5 // pred_check_branch
        %780 = sbr.rel (%p777) target = $region124
      $region123: #{conv_8_layer_forward.1} parent=5 // pred_region
        %s781 = ssub.s32 %s41, 1
        // Predicated region
        $region125: #{conv_8_layer_forward.1} parent=123 // pred_check
          %p782 = pneg %p88
        $region126: #{conv_8_layer_forward.1} parent=123 // pred_check_branch
          %784 = sbr.rel (%p782) target = $region128
        $region127: #{conv_8_layer_forward.1} parent=123 // pred_region
          %785 = dma.done [#allocation5], 64
        $region128: #{conv_8_layer_forward.1} parent=123 // pred_fallthru
          _
        // Predicated region
        $region129: #{conv_8_layer_forward.1} parent=123 // pred_check
          %p786 = pneg %p130
        $region130: #{conv_8_layer_forward.1} parent=123 // pred_check_branch
          %788 = sbr.rel (%p786) target = $region132
        $region131: #{conv_8_layer_forward.1} parent=123 // pred_region
          %789 = dma.done [#allocation8], 128
        $region132: #{conv_8_layer_forward.1} parent=123 // pred_fallthru
          _
        // Predicated region
        $region133: #{conv_8_layer_forward.1} parent=123 // pred_check
          %p790 = pneg %p298
        $region134: #{conv_8_layer_forward.1} parent=123 // pred_check_branch
          %792 = sbr.rel (%p790) target = $region136
        $region135: #{conv_8_layer_forward.1} parent=123 // pred_region
          %793 = dma.done [#allocation8], 128
        $region136: #{conv_8_layer_forward.1} parent=123 // pred_fallthru
          _
        // Predicated region
        $region137: #{conv_8_layer_forward.1} parent=123 // pred_check
          %p794 = pneg %p319
        $region138: #{conv_8_layer_forward.1} parent=123 // pred_check_branch
          %796 = sbr.rel (%p794) target = $region140
        $region139: #{conv_8_layer_forward.1} parent=123 // pred_region
          %797 = dma.done [#allocation11], 128
        $region140: #{conv_8_layer_forward.1} parent=123 // pred_fallthru
          _
        // Predicated region
        $region141: #{conv_8_layer_forward.1} parent=123 // pred_check
          %p798 = pneg %p340
        $region142: #{conv_8_layer_forward.1} parent=123 // pred_check_branch
          %800 = sbr.rel (%p798) target = $region144
        $region143: #{conv_8_layer_forward.1} parent=123 // pred_region
          %801 = dma.done [#allocation11], 128
        $region144: #{conv_8_layer_forward.1} parent=123 // pred_fallthru
          _
        // Predicated region
        $region145: #{conv_8_layer_forward.1} parent=123 // pred_check
          %p802 = pneg %p361
        $region146: #{conv_8_layer_forward.1} parent=123 // pred_check_branch
          %804 = sbr.rel (%p802) target = $region148
        $region147: #{conv_8_layer_forward.1} parent=123 // pred_region
          %805 = dma.done [#allocation14], 128
        $region148: #{conv_8_layer_forward.1} parent=123 // pred_fallthru
          _
        // Predicated region
        $region149: #{conv_8_layer_forward.1} parent=123 // pred_check
          %p806 = pneg %p424
        $region150: #{conv_8_layer_forward.1} parent=123 // pred_check_branch
          %808 = sbr.rel (%p806) target = $region152
        $region151: #{conv_8_layer_forward.1} parent=123 // pred_region
          %809 = dma.done [#allocation14], 64
        $region152: #{conv_8_layer_forward.1} parent=123 // pred_fallthru
          _
        %p810 = scmp.lt.s32.totalorder %s46, 1
        %s811 = scalar_select %p810, %s46, 1
        %s812 = smul.addr %s811, 2
        %s813 = scalar_lea.vmem %s0, %s812
        %p814 = pneg %p67
        %p815 = pneg %p64
        %p816 = pneg %p88
        %p817 = pneg %p85
        %p818 = pneg %p109
        %p819 = pneg %p106
        %p820 = pneg %p130
        %p821 = pneg %p127
        %p822 = pneg %p151
        %p823 = pneg %p148
        %p824 = pneg %p172
        %p825 = pneg %p169
        %p826 = pneg %p193
        %p827 = pneg %p190
        %p828 = pneg %p214
        %p829 = pneg %p211
        %p830 = pneg %p235
        %p831 = pneg %p232
        %p832 = pneg %p256
        %p833 = pneg %p253
        %p834 = pneg %p277
        %p835 = pneg %p274
        %p836 = pneg %p298
        %p837 = pneg %p295
        %p838 = pneg %p319
        %p839 = pneg %p316
        %p840 = pneg %p340
        %p841 = pneg %p337
        %p842 = pneg %p361
        %p843 = pneg %p358
        %p844 = pneg %p382
        %p845 = pneg %p379
        %p846 = pneg %p403
        %p847 = pneg %p400
        %p848 = pneg %p424
        %p849 = pneg %p421
        %p850 = pneg %p445
        %p851 = pneg %p442
        %p852 = pneg %p466
        %p853 = pneg %p463
        %p854 = pneg %p487
        %p855 = pneg %p484
        %p856 = pneg %p508
        %p857 = pneg %p505
        %p858 = pneg %p529
        %p859 = pneg %p526
        %p860 = pneg %p550
        %p861 = pneg %p547
        %p862 = pneg %p571
        %p863 = pneg %p568
        %p864 = pneg %p592
        %p865 = pneg %p589
        %p866 = pneg %p618
        %p867 = pneg %p615
        %s868 = sand.u32 %s605, 1
        %s869 = scalar_lea.sflag [#allocation6], %s868
        %s870 = sand.u32 %s605, 1
        %s871 = scalar_lea.vmem [#allocation16], %s870
        %p872 = scmp.lt.s32.totalorder %s46, 1
        %s873 = scalar_select %p872, %s46, 1
        %s874 = smul.addr %s873, 2
        %s875 = scalar_lea.vmem %s0, %s874
        %v876 = vld [vmem:[%s875] sm:$0x3]
        %v877 = vtanh.pop %v876
        %vm878 = vcmask 992256
        %879 = vst.msk [vmem:[#allocation2] sm:$0x3] %vm878, %v877
        %881 = vrot.lane.b32.xlu0 %v877, 127
        %v882 = vpop.permute.xlu0 %881
        %884 = vst.msk [vmem:[#allocation2 + $0x2] sm:$0x3] %vm878, %v882
        %885 = vrot.lane.b32.xlu0 %v877, 126
        %v886 = vpop.permute.xlu0 %885
        %888 = vst.msk [vmem:[#allocation2 + $0x4] sm:$0x3] %vm878, %v886
        %889 = vrot.lane.b32.xlu0 %v877, 125
        %v890 = vpop.permute.xlu0 %889
        %892 = vst.msk [vmem:[#allocation2 + $0x6] sm:$0x3] %vm878, %v890
        %893 = vrot.lane.b32.xlu0 %v877, 124
        %v894 = vpop.permute.xlu0 %893
        %896 = vst.msk [vmem:[#allocation2 + $0x8] sm:$0x3] %vm878, %v894
        %897 = vrot.lane.b32.xlu0 %v877, 123
        %v898 = vpop.permute.xlu0 %897
        %900 = vst.msk [vmem:[#allocation2 + $0xa] sm:$0x3] %vm878, %v898
        %901 = vrot.lane.b32.xlu0 %v877, 122
        %v902 = vpop.permute.xlu0 %901
        %904 = vst.msk [vmem:[#allocation2 + $0xc] sm:$0x3] %vm878, %v902
        %v905 = vld [vmem:[#allocation2] sm:$0xff]
        %v906 = vld [vmem:[#allocation2 + $0x8] sm:$0x3f]
        %v907 = vld [vmem:[#allocation4] sm:$0xf]
        %vm908 = vcmask 113664
        %v910 = vsel %vm908, %v907, 0
        %vm912 = vcmask 1045504
        %v914 = vsel %vm912, %v906, 0
        %916 = vmatprep.subr.mxu0 0.0
        %917 = vmatpush1.msra.mxu0 %v905
        %918 = vmatprep.subr.mxu0 0.0
        %919 = vmatpush1.msra.mxu0 %v914
        %920 = vmatprep.subr.mxu0 0.0
        %921 = vmatpush1.msra.mxu0 0.0
        %922 = vmatprep.subr.mxu0 0.0
        %923 = vmatpush1.msra.mxu0 0.0
        %924 = vmatprep.subr.mxu0 0.0
        %925 = vmatpush1.msra.mxu0 0.0
        %926 = vmatprep.subr.mxu0 0.0
        %927 = vmatpush1.msra.mxu0 0.0
        %928 = vmatprep.subr.mxu0 0.0
        %929 = vmatpush1.msra.mxu0 0.0
        %930 = vmatprep.subr.mxu0 0.0
        %931 = vmatpush1.msra.mxu0 0.0
        %932 = vmatprep.subr.mxu0 0.0
        %933 = vmatpush1.msra.mxu0 0.0
        %934 = vmatprep.subr.mxu0 0.0
        %935 = vmatpush1.msra.mxu0 0.0
        %936 = vmatprep.subr.mxu0 0.0
        %937 = vmatpush1.msra.mxu0 0.0
        %938 = vmatprep.subr.mxu0 0.0
        %939 = vmatpush1.msra.mxu0 0.0
        %940 = vmatprep.subr.mxu0 0.0
        %941 = vmatpush1.msra.mxu0 0.0
        %942 = vmatprep.subr.mxu0 0.0
        %943 = vmatpush1.msra.mxu0 0.0
        %944 = vmatprep.subr.mxu0 0.0
        %945 = vmatpush1.msra.mxu0 0.0
        %946 = vmatprep.subr.mxu0 0.0
        %947 = vmatpush1.msra.mxu0 0.0
        %948 = vmatprep.subr.mxu0 0.0
        %949 = vmatpush1.msra.mxu0 0.0
        %950 = vmatprep.subr.mxu0 0.0
        %951 = vmatpush1.msra.mxu0 0.0
        %952 = vmatprep.subr.mxu0 0.0
        %953 = vmatpush1.msra.mxu0 0.0
        %954 = vmatprep.subr.mxu0 0.0
        %955 = vmatpush1.msra.mxu0 0.0
        %956 = vmatprep.subr.mxu0 0.0
        %957 = vmatpush1.msra.mxu0 0.0
        %958 = vmatprep.subr.mxu0 0.0
        %959 = vmatpush1.msra.mxu0 0.0
        %960 = vmatprep.subr.mxu0 0.0
        %961 = vmatpush1.msra.mxu0 0.0
        %962 = vmatprep.subr.mxu0 0.0
        %963 = vmatpush1.msra.mxu0 0.0
        %964 = vmatprep.subr.mxu0 0.0
        %965 = vmatpush1.msra.mxu0 0.0
        %966 = vmatprep.subr.mxu0 0.0
        %967 = vmatpush1.msra.mxu0 0.0
        %968 = vmatprep.subr.mxu0 0.0
        %969 = vmatpush1.msra.mxu0 0.0
        %970 = vmatprep.subr.mxu0 0.0
        %971 = vmatpush1.msra.mxu0 0.0
        %972 = vmatprep.subr.mxu0 0.0
        %973 = vmatpush1.msra.mxu0 0.0
        %974 = vmatprep.subr.mxu0 0.0
        %975 = vmatpush1.msra.mxu0 0.0
        %976 = vmatprep.subr.mxu0 0.0
        %977 = vmatpush1.msra.mxu0 0.0
        %978 = vmatprep.subr.mxu0 0.0
        %979 = vmatpush1.msra.mxu0 0.0
        %980 = vmatprep.mubr.f32.mxu0 0.0
        %981 = vmatmul.mubr.f32.gmra.mrb[0].mxu0 %v910
        %v982 = vpop.f32.mrb[0].mxu0
        %v983 = vadd.f32 0.0, %v982
        %v984 = vpop.f32.mrb[0].mxu0
        %985 = vdwg.mxu0
        %v986 = vld [vmem:[%s2] sm:$0xff]
        %v987 = vld [vmem:[%s2 + $0x8] sm:$0xff]
        %v988 = vld [vmem:[%s2 + $0x10] sm:$0xff]
        %v989 = vld [vmem:[%s2 + $0x18] sm:$0xff]
        %v990 = vld [vmem:[%s2 + $0x20] sm:$0xff]
        %v991 = vld [vmem:[%s2 + $0x28] sm:$0xff]
        %v992 = vld [vmem:[%s2 + $0x30] sm:$0xff]
        %v993 = vld [vmem:[%s2 + $0x38] sm:$0xff]
        %v994 = vld [vmem:[%s2 + $0x40] sm:$0xff]
        %v995 = vld [vmem:[%s2 + $0x48] sm:$0xff]
        %v996 = vld [vmem:[%s2 + $0x50] sm:$0xff]
        %v997 = vld [vmem:[%s2 + $0x58] sm:$0xff]
        %v998 = vld [vmem:[%s2 + $0x60] sm:$0xff]
        %v999 = vld [vmem:[%s2 + $0x68] sm:$0xff]
        %v1000 = vld [vmem:[%s2 + $0x70] sm:$0xff]
        %v1001 = vld [vmem:[%s2 + $0x78] sm:$0x3]
        %vm1002 = vcmask 998400
        %v1004 = vsel %vm1002, %v983, 0
        %vm1006 = vcmask 1041408
        %v1008 = vsel %vm1006, %v1001, 0
        %1010 = vmatprep.subr.mxu0 0.0
        %1011 = vmatpush1.msra.mxu0 %v986
        %1012 = vmatprep.subr.mxu0 0.0
        %1013 = vmatpush1.msra.mxu0 %v987
        %1014 = vmatprep.subr.mxu0 0.0
        %1015 = vmatpush1.msra.mxu0 %v988
        %1016 = vmatprep.subr.mxu0 0.0
        %1017 = vmatpush1.msra.mxu0 %v989
        %1018 = vmatprep.subr.mxu0 0.0
        %1019 = vmatpush1.msra.mxu0 %v990
        %1020 = vmatprep.subr.mxu0 0.0
        %1021 = vmatpush1.msra.mxu0 %v991
        %1022 = vmatprep.subr.mxu0 0.0
        %1023 = vmatpush1.msra.mxu0 %v992
        %1024 = vmatprep.subr.mxu0 0.0
        %1025 = vmatpush1.msra.mxu0 %v993
        %1026 = vmatprep.subr.mxu0 0.0
        %1027 = vmatpush1.msra.mxu0 %v994
        %1028 = vmatprep.subr.mxu0 0.0
        %1029 = vmatpush1.msra.mxu0 %v995
        %1030 = vmatprep.subr.mxu0 0.0
        %1031 = vmatpush1.msra.mxu0 %v996
        %1032 = vmatprep.subr.mxu0 0.0
        %1033 = vmatpush1.msra.mxu0 %v997
        %1034 = vmatprep.subr.mxu0 0.0
        %1035 = vmatpush1.msra.mxu0 %v998
        %1036 = vmatprep.subr.mxu0 0.0
        %1037 = vmatpush1.msra.mxu0 %v999
        %1038 = vmatprep.subr.mxu0 0.0
        %1039 = vmatpush1.msra.mxu0 %v1000
        %1040 = vmatprep.subr.mxu0 0.0
        %1041 = vmatpush1.msra.mxu0 %v1008
        %1042 = vmatprep.subr.mxu0 0.0
        %1043 = vmatpush1.msra.mxu0 0.0
        %1044 = vmatprep.subr.mxu0 0.0
        %1045 = vmatpush1.msra.mxu0 0.0
        %1046 = vmatprep.subr.mxu0 0.0
        %1047 = vmatpush1.msra.mxu0 0.0
        %1048 = vmatprep.subr.mxu0 0.0
        %1049 = vmatpush1.msra.mxu0 0.0
        %1050 = vmatprep.subr.mxu0 0.0
        %1051 = vmatpush1.msra.mxu0 0.0
        %1052 = vmatprep.subr.mxu0 0.0
        %1053 = vmatpush1.msra.mxu0 0.0
        %1054 = vmatprep.subr.mxu0 0.0
        %1055 = vmatpush1.msra.mxu0 0.0
        %1056 = vmatprep.subr.mxu0 0.0
        %1057 = vmatpush1.msra.mxu0 0.0
        %1058 = vmatprep.subr.mxu0 0.0
        %1059 = vmatpush1.msra.mxu0 0.0
        %1060 = vmatprep.subr.mxu0 0.0
        %1061 = vmatpush1.msra.mxu0 0.0
        %1062 = vmatprep.subr.mxu0 0.0
        %1063 = vmatpush1.msra.mxu0 0.0
        %1064 = vmatprep.subr.mxu0 0.0
        %1065 = vmatpush1.msra.mxu0 0.0
        %1066 = vmatprep.subr.mxu0 0.0
        %1067 = vmatpush1.msra.mxu0 0.0
        %1068 = vmatprep.subr.mxu0 0.0
        %1069 = vmatpush1.msra.mxu0 0.0
        %1070 = vmatprep.subr.mxu0 0.0
        %1071 = vmatpush1.msra.mxu0 0.0
        %1072 = vmatprep.subr.mxu0 0.0
        %1073 = vmatpush1.msra.mxu0 0.0
        %1074 = vmatprep.mubr.f32.mxu0 0.0
        %1075 = vmatmul.mubr.f32.gmra.mrb[0].mxu0 %v1004
        %v1076 = vpop.f32.mrb[0].mxu0
        %v1077 = vadd.f32 0.0, %v1076
        %v1078 = vpop.f32.mrb[0].mxu0
        %1079 = vdwg.mxu0
        %vm1080 = vcmask 494592
        %v1081 = vsel %vm1080, %v1077, 0.0
        %1082 = vadd.xlane.f32.xlu0 %v1081
        %v1083 = vpop.xlane.xlu0 %1082
        %v1084 = vmul.f32 %v1077, %v1077
        %v1085 = vsel %vm1080, %v1084, 0.0
        %1086 = vadd.xlane.f32.xlu0 %v1085
        %v1087 = vpop.xlane.xlu0 %1086
        %v1088 = vmul.f32 %v1083, 0.016393442
        %v1089 = vmul.f32 %v1087, 0.016393442
        %v1090 = vmul.f32 %v1088, %v1088
        %v1091 = vsub.f32 %v1089, %v1090
        %v1092 = vsub.f32 %v1077, %v1088
        %v1093 = vadd.f32 %v1091, 1e-05
        %v1094 = vrsqrt.pop %v1093
        %v1095 = vmul.f32 %v1092, %v1094
        %v1096 = vmax.f32 %v1095, 0.0
        %vm1097 = vcmask 445440
        %1098 = vst.msk [vmem:[#allocation2] sm:$0xf] %vm1097, %v1096
        %1100 = vrot.lane.b32.xlu0 %v1096, 127
        %v1101 = vpop.permute.xlu0 %1100
        %1103 = vst.msk [vmem:[#allocation2 + $0x4] sm:$0xf] %vm1097, %v1101
        %1104 = vrot.lane.b32.xlu0 %v1096, 126
        %v1105 = vpop.permute.xlu0 %1104
        %1107 = vst.msk [vmem:[#allocation2 + $0x8] sm:$0xf] %vm1097, %v1105
        %1108 = vrot.lane.b32.xlu0 %v1096, 125
        %v1109 = vpop.permute.xlu0 %1108
        %1111 = vst.msk [vmem:[#allocation2 + $0xc] sm:$0xf] %vm1097, %v1109
        %1112 = vrot.lane.b32.xlu0 %v1096, 124
        %v1113 = vpop.permute.xlu0 %1112
        %1115 = vst.msk [vmem:[#allocation2 + $0x10] sm:$0xf] %vm1097, %v1113
        %1116 = vrot.lane.b32.xlu0 %v1096, 123
        %v1117 = vpop.permute.xlu0 %1116
        %1119 = vst.msk [vmem:[#allocation2 + $0x14] sm:$0xf] %vm1097, %v1117
        %1120 = vrot.lane.b32.xlu0 %v1096, 122
        %v1121 = vpop.permute.xlu0 %1120
        %1123 = vst.msk [vmem:[#allocation2 + $0x18] sm:$0xf] %vm1097, %v1121
        %v1124 = vld [vmem:[#allocation2] sm:$0xff]
        %v1125 = vld [vmem:[#allocation2 + $0x8] sm:$0xff]
        %v1126 = vld [vmem:[#allocation2 + $0x10] sm:$0xff]
        %v1127 = vld [vmem:[#allocation2 + $0x18] sm:$0xf]
        %v1128 = vld [vmem:[#allocation7] sm:$0xff]
        %vm1129 = vcmask 228352
        %v1131 = vsel %vm1129, %v1128, 0
        %vm1133 = vcmask 1043456
        %v1135 = vsel %vm1133, %v1127, 0
        %1137 = vmatprep.subr.mxu0 0.0
        %1138 = vmatpush1.msra.mxu0 %v1124
        %1139 = vmatprep.subr.mxu0 0.0
        %1140 = vmatpush1.msra.mxu0 %v1125
        %1141 = vmatprep.subr.mxu0 0.0
        %1142 = vmatpush1.msra.mxu0 %v1126
        %1143 = vmatprep.subr.mxu0 0.0
        %1144 = vmatpush1.msra.mxu0 %v1135
        %1145 = vmatprep.subr.mxu0 0.0
        %1146 = vmatpush1.msra.mxu0 0.0
        %1147 = vmatprep.subr.mxu0 0.0
        %1148 = vmatpush1.msra.mxu0 0.0
        %1149 = vmatprep.subr.mxu0 0.0
        %1150 = vmatpush1.msra.mxu0 0.0
        %1151 = vmatprep.subr.mxu0 0.0
        %1152 = vmatpush1.msra.mxu0 0.0
        %1153 = vmatprep.subr.mxu0 0.0
        %1154 = vmatpush1.msra.mxu0 0.0
        %1155 = vmatprep.subr.mxu0 0.0
        %1156 = vmatpush1.msra.mxu0 0.0
        %1157 = vmatprep.subr.mxu0 0.0
        %1158 = vmatpush1.msra.mxu0 0.0
        %1159 = vmatprep.subr.mxu0 0.0
        %1160 = vmatpush1.msra.mxu0 0.0
        %1161 = vmatprep.subr.mxu0 0.0
        %1162 = vmatpush1.msra.mxu0 0.0
        %1163 = vmatprep.subr.mxu0 0.0
        %1164 = vmatpush1.msra.mxu0 0.0
        %1165 = vmatprep.subr.mxu0 0.0
        %1166 = vmatpush1.msra.mxu0 0.0
        %1167 = vmatprep.subr.mxu0 0.0
        %1168 = vmatpush1.msra.mxu0 0.0
        %1169 = vmatprep.subr.mxu0 0.0
        %1170 = vmatpush1.msra.mxu0 0.0
        %1171 = vmatprep.subr.mxu0 0.0
        %1172 = vmatpush1.msra.mxu0 0.0
        %1173 = vmatprep.subr.mxu0 0.0
        %1174 = vmatpush1.msra.mxu0 0.0
        %1175 = vmatprep.subr.mxu0 0.0
        %1176 = vmatpush1.msra.mxu0 0.0
        %1177 = vmatprep.subr.mxu0 0.0
        %1178 = vmatpush1.msra.mxu0 0.0
        %1179 = vmatprep.subr.mxu0 0.0
        %1180 = vmatpush1.msra.mxu0 0.0
        %1181 = vmatprep.subr.mxu0 0.0
        %1182 = vmatpush1.msra.mxu0 0.0
        %1183 = vmatprep.subr.mxu0 0.0
        %1184 = vmatpush1.msra.mxu0 0.0
        %1185 = vmatprep.subr.mxu0 0.0
        %1186 = vmatpush1.msra.mxu0 0.0
        %1187 = vmatprep.subr.mxu0 0.0
        %1188 = vmatpush1.msra.mxu0 0.0
        %1189 = vmatprep.subr.mxu0 0.0
        %1190 = vmatpush1.msra.mxu0 0.0
        %1191 = vmatprep.subr.mxu0 0.0
        %1192 = vmatpush1.msra.mxu0 0.0
        %1193 = vmatprep.subr.mxu0 0.0
        %1194 = vmatpush1.msra.mxu0 0.0
        %1195 = vmatprep.subr.mxu0 0.0
        %1196 = vmatpush1.msra.mxu0 0.0
        %1197 = vmatprep.subr.mxu0 0.0
        %1198 = vmatpush1.msra.mxu0 0.0
        %1199 = vmatprep.subr.mxu0 0.0
        %1200 = vmatpush1.msra.mxu0 0.0
        %1201 = vmatprep.mubr.f32.mxu0 0.0
        %1202 = vmatmul.mubr.f32.gmra.mrb[0].mxu0 %v1131
        %v1203 = vpop.f32.mrb[0].mxu0
        %v1204 = vadd.f32 0.0, %v1203
        %v1205 = vpop.f32.mrb[0].mxu0
        %1206 = vdwg.mxu0
        %v1207 = vld [vmem:[%s4] sm:$0xff]
        %v1208 = vld [vmem:[%s4 + $0x8] sm:$0xff]
        %v1209 = vld [vmem:[%s4 + $0x10] sm:$0xff]
        %v1210 = vld [vmem:[%s4 + $0x18] sm:$0xff]
        %v1211 = vld [vmem:[%s4 + $0x20] sm:$0xff]
        %v1212 = vld [vmem:[%s4 + $0x28] sm:$0xff]
        %v1213 = vld [vmem:[%s4 + $0x30] sm:$0x7f]
        %vm1214 = vcmask 449536
        %v1216 = vsel %vm1214, %v1204, 0
        %vm1218 = vcmask 1046528
        %v1220 = vsel %vm1218, %v1213, 0
        %1222 = vmatprep.subr.mxu0 0.0
        %1223 = vmatpush1.msra.mxu0 %v1207
        %1224 = vmatprep.subr.mxu0 0.0
        %1225 = vmatpush1.msra.mxu0 %v1208
        %1226 = vmatprep.subr.mxu0 0.0
        %1227 = vmatpush1.msra.mxu0 %v1209
        %1228 = vmatprep.subr.mxu0 0.0
        %1229 = vmatpush1.msra.mxu0 %v1210
        %1230 = vmatprep.subr.mxu0 0.0
        %1231 = vmatpush1.msra.mxu0 %v1211
        %1232 = vmatprep.subr.mxu0 0.0
        %1233 = vmatpush1.msra.mxu0 %v1212
        %1234 = vmatprep.subr.mxu0 0.0
        %1235 = vmatpush1.msra.mxu0 %v1220
        %1236 = vmatprep.subr.mxu0 0.0
        %1237 = vmatpush1.msra.mxu0 0.0
        %1238 = vmatprep.subr.mxu0 0.0
        %1239 = vmatpush1.msra.mxu0 0.0
        %1240 = vmatprep.subr.mxu0 0.0
        %1241 = vmatpush1.msra.mxu0 0.0
        %1242 = vmatprep.subr.mxu0 0.0
        %1243 = vmatpush1.msra.mxu0 0.0
        %1244 = vmatprep.subr.mxu0 0.0
        %1245 = vmatpush1.msra.mxu0 0.0
        %1246 = vmatprep.subr.mxu0 0.0
        %1247 = vmatpush1.msra.mxu0 0.0
        %1248 = vmatprep.subr.mxu0 0.0
        %1249 = vmatpush1.msra.mxu0 0.0
        %1250 = vmatprep.subr.mxu0 0.0
        %1251 = vmatpush1.msra.mxu0 0.0
        %1252 = vmatprep.subr.mxu0 0.0
        %1253 = vmatpush1.msra.mxu0 0.0
        %1254 = vmatprep.subr.mxu0 0.0
        %1255 = vmatpush1.msra.mxu0 0.0
        %1256 = vmatprep.subr.mxu0 0.0
        %1257 = vmatpush1.msra.mxu0 0.0
        %1258 = vmatprep.subr.mxu0 0.0
        %1259 = vmatpush1.msra.mxu0 0.0
        %1260 = vmatprep.subr.mxu0 0.0
        %1261 = vmatpush1.msra.mxu0 0.0
        %1262 = vmatprep.subr.mxu0 0.0
        %1263 = vmatpush1.msra.mxu0 0.0
        %1264 = vmatprep.subr.mxu0 0.0
        %1265 = vmatpush1.msra.mxu0 0.0
        %1266 = vmatprep.subr.mxu0 0.0
        %1267 = vmatpush1.msra.mxu0 0.0
        %1268 = vmatprep.subr.mxu0 0.0
        %1269 = vmatpush1.msra.mxu0 0.0
        %1270 = vmatprep.subr.mxu0 0.0
        %1271 = vmatpush1.msra.mxu0 0.0
        %1272 = vmatprep.subr.mxu0 0.0
        %1273 = vmatpush1.msra.mxu0 0.0
        %1274 = vmatprep.subr.mxu0 0.0
        %1275 = vmatpush1.msra.mxu0 0.0
        %1276 = vmatprep.subr.mxu0 0.0
        %1277 = vmatpush1.msra.mxu0 0.0
        %1278 = vmatprep.subr.mxu0 0.0
        %1279 = vmatpush1.msra.mxu0 0.0
        %1280 = vmatprep.subr.mxu0 0.0
        %1281 = vmatpush1.msra.mxu0 0.0
        %1282 = vmatprep.subr.mxu0 0.0
        %1283 = vmatpush1.msra.mxu0 0.0
        %1284 = vmatprep.subr.mxu0 0.0
        %1285 = vmatpush1.msra.mxu0 0.0
        %1286 = vmatprep.mubr.f32.mxu0 0.0
        %1287 = vmatmul.mubr.f32.gmra.mrb[0].mxu0 %v1216
        %v1288 = vpop.f32.mrb[0].mxu0
        %v1289 = vadd.f32 0.0, %v1288
        %v1290 = vpop.f32.mrb[0].mxu0
        %1291 = vdwg.mxu0
        %v1292 = vsel %vm1129, %v1289, 0.0
        %1293 = vadd.xlane.f32.xlu0 %v1292
        %v1294 = vpop.xlane.xlu0 %1293
        %v1295 = vmul.f32 %v1289, %v1289
        %v1296 = vsel %vm1129, %v1295, 0.0
        %1297 = vadd.xlane.f32.xlu0 %v1296
        %v1298 = vpop.xlane.xlu0 %1297
        %v1299 = vmul.f32 %v1294, 0.035714287
        %v1300 = vmul.f32 %v1298, 0.035714287
        %v1301 = vmul.f32 %v1299, %v1299
        %v1302 = vsub.f32 %v1300, %v1301
        %v1303 = vsub.f32 %v1289, %v1299
        %v1304 = vadd.f32 %v1302, 1e-05
        %v1305 = vrsqrt.pop %v1304
        %v1306 = vmul.f32 %v1303, %v1305
        %v1307 = vmax.f32 %v1306, 0.0
        %vm1308 = vcmask 179200
        %1309 = vst.msk [vmem:[#allocation2] sm:$0xff] %vm1308, %v1307
        %1311 = vrot.lane.b32.xlu0 %v1307, 127
        %v1312 = vpop.permute.xlu0 %1311
        %1314 = vst.msk [vmem:[#allocation2 + $0x8] sm:$0xff] %vm1308, %v1312
        %1315 = vrot.lane.b32.xlu0 %v1307, 126
        %v1316 = vpop.permute.xlu0 %1315
        %1318 = vst.msk [vmem:[#allocation2 + $0x10] sm:$0xff] %vm1308, %v1316
        %1319 = vrot.lane.b32.xlu0 %v1307, 125
        %v1320 = vpop.permute.xlu0 %1319
        %1322 = vst.msk [vmem:[#allocation2 + $0x18] sm:$0xff] %vm1308, %v1320
        %1323 = vrot.lane.b32.xlu0 %v1307, 124
        %v1324 = vpop.permute.xlu0 %1323
        %1326 = vst.msk [vmem:[#allocation2 + $0x20] sm:$0xff] %vm1308, %v1324
        %1327 = vrot.lane.b32.xlu0 %v1307, 123
        %v1328 = vpop.permute.xlu0 %1327
        %1330 = vst.msk [vmem:[#allocation2 + $0x28] sm:$0xff] %vm1308, %v1328
        %1331 = vrot.lane.b32.xlu0 %v1307, 122
        %v1332 = vpop.permute.xlu0 %1331
        %1334 = vst.msk [vmem:[#allocation2 + $0x30] sm:$0xff] %vm1308, %v1332
        %v1335 = vld [vmem:[#allocation2] sm:$0xff]
        %v1336 = vld [vmem:[#allocation2 + $0x8] sm:$0xff]
        %v1337 = vld [vmem:[#allocation2 + $0x10] sm:$0xff]
        %v1338 = vld [vmem:[#allocation2 + $0x18] sm:$0xff]
        %v1339 = vld [vmem:[#allocation2 + $0x20] sm:$0xff]
        %v1340 = vld [vmem:[#allocation2 + $0x28] sm:$0xff]
        %v1341 = vld [vmem:[#allocation2 + $0x30] sm:$0xff]
        %v1342 = vld [vmem:[%s5] sm:$0xff]
        %v1343 = vld [vmem:[%s5 + $0x8] sm:$0xff]
        %vm1344 = vcmask 457728
        %v1346 = vsel %vm1344, %v1342, 0
        %v1349 = vsel %vm1344, %v1343, 0
        %1351 = vmatprep.subr.mxu0 0.0
        %1352 = vmatpush1.msra.mxu0 %v1335
        %1353 = vmatprep.subr.mxu0 0.0
        %1354 = vmatpush1.msra.mxu0 %v1336
        %1355 = vmatprep.subr.mxu0 0.0
        %1356 = vmatpush1.msra.mxu0 %v1337
        %1357 = vmatprep.subr.mxu0 0.0
        %1358 = vmatpush1.msra.mxu0 %v1338
        %1359 = vmatprep.subr.mxu0 0.0
        %1360 = vmatpush1.msra.mxu0 %v1339
        %1361 = vmatprep.subr.mxu0 0.0
        %1362 = vmatpush1.msra.mxu0 %v1340
        %1363 = vmatprep.subr.mxu0 0.0
        %1364 = vmatpush1.msra.mxu0 %v1341
        %1365 = vmatprep.subr.mxu0 0.0
        %1366 = vmatpush1.msra.mxu0 0.0
        %1367 = vmatprep.subr.mxu0 0.0
        %1368 = vmatpush1.msra.mxu0 0.0
        %1369 = vmatprep.subr.mxu0 0.0
        %1370 = vmatpush1.msra.mxu0 0.0
        %1371 = vmatprep.subr.mxu0 0.0
        %1372 = vmatpush1.msra.mxu0 0.0
        %1373 = vmatprep.subr.mxu0 0.0
        %1374 = vmatpush1.msra.mxu0 0.0
        %1375 = vmatprep.subr.mxu0 0.0
        %1376 = vmatpush1.msra.mxu0 0.0
        %1377 = vmatprep.subr.mxu0 0.0
        %1378 = vmatpush1.msra.mxu0 0.0
        %1379 = vmatprep.subr.mxu0 0.0
        %1380 = vmatpush1.msra.mxu0 0.0
        %1381 = vmatprep.subr.mxu0 0.0
        %1382 = vmatpush1.msra.mxu0 0.0
        %1383 = vmatprep.subr.mxu0 0.0
        %1384 = vmatpush1.msra.mxu0 0.0
        %1385 = vmatprep.subr.mxu0 0.0
        %1386 = vmatpush1.msra.mxu0 0.0
        %1387 = vmatprep.subr.mxu0 0.0
        %1388 = vmatpush1.msra.mxu0 0.0
        %1389 = vmatprep.subr.mxu0 0.0
        %1390 = vmatpush1.msra.mxu0 0.0
        %1391 = vmatprep.subr.mxu0 0.0
        %1392 = vmatpush1.msra.mxu0 0.0
        %1393 = vmatprep.subr.mxu0 0.0
        %1394 = vmatpush1.msra.mxu0 0.0
        %1395 = vmatprep.subr.mxu0 0.0
        %1396 = vmatpush1.msra.mxu0 0.0
        %1397 = vmatprep.subr.mxu0 0.0
        %1398 = vmatpush1.msra.mxu0 0.0
        %1399 = vmatprep.subr.mxu0 0.0
        %1400 = vmatpush1.msra.mxu0 0.0
        %1401 = vmatprep.subr.mxu0 0.0
        %1402 = vmatpush1.msra.mxu0 0.0
        %1403 = vmatprep.subr.mxu0 0.0
        %1404 = vmatpush1.msra.mxu0 0.0
        %1405 = vmatprep.subr.mxu0 0.0
        %1406 = vmatpush1.msra.mxu0 0.0
        %1407 = vmatprep.subr.mxu0 0.0
        %1408 = vmatpush1.msra.mxu0 0.0
        %1409 = vmatprep.subr.mxu0 0.0
        %1410 = vmatpush1.msra.mxu0 0.0
        %1411 = vmatprep.subr.mxu0 0.0
        %1412 = vmatpush1.msra.mxu0 0.0
        %1413 = vmatprep.subr.mxu0 0.0
        %1414 = vmatpush1.msra.mxu0 0.0
        %1415 = vmatprep.mubr.f32.mxu0 0.0
        %1416 = vmatmul.mubr.f32.gmra.mrb[0].mxu0 %v1346
        %v1417 = vpop.f32.mrb[0].mxu0
        %v1418 = vadd.f32 0.0, %v1417
        %v1419 = vpop.f32.mrb[0].mxu0
        %1420 = vmatprep.mubr.f32.mxu0 0.0
        %1421 = vmatmul.mubr.f32.gmra.mrb[0].mxu0 %v1349
        %v1422 = vpop.f32.mrb[0].mxu0
        %v1423 = vadd.f32 0.0, %v1422
        %v1424 = vpop.f32.mrb[0].mxu0
        %1425 = vdwg.mxu0
        %v1426 = vld [vmem:[%s6] sm:$0xff]
        %v1427 = vld [vmem:[%s6 + $0x8] sm:$0xff]
        %v1428 = vld [vmem:[%s6 + $0x10] sm:$0x3f]
        %v1430 = vsel %vm1308, %v1418, 0
        %v1433 = vsel %vm1308, %v1423, 0
        %v1436 = vsel %vm912, %v1428, 0
        %1438 = vmatprep.subr.mxu0 0.0
        %1439 = vmatpush1.msra.mxu0 %v1426
        %1440 = vmatprep.subr.mxu0 0.0
        %1441 = vmatpush1.msra.mxu0 %v1427
        %1442 = vmatprep.subr.mxu0 0.0
        %1443 = vmatpush1.msra.mxu0 %v1436
        %1444 = vmatprep.subr.mxu0 0.0
        %1445 = vmatpush1.msra.mxu0 0.0
        %1446 = vmatprep.subr.mxu0 0.0
        %1447 = vmatpush1.msra.mxu0 0.0
        %1448 = vmatprep.subr.mxu0 0.0
        %1449 = vmatpush1.msra.mxu0 0.0
        %1450 = vmatprep.subr.mxu0 0.0
        %1451 = vmatpush1.msra.mxu0 0.0
        %1452 = vmatprep.subr.mxu0 0.0
        %1453 = vmatpush1.msra.mxu0 0.0
        %1454 = vmatprep.subr.mxu0 0.0
        %1455 = vmatpush1.msra.mxu0 0.0
        %1456 = vmatprep.subr.mxu0 0.0
        %1457 = vmatpush1.msra.mxu0 0.0
        %1458 = vmatprep.subr.mxu0 0.0
        %1459 = vmatpush1.msra.mxu0 0.0
        %1460 = vmatprep.subr.mxu0 0.0
        %1461 = vmatpush1.msra.mxu0 0.0
        %1462 = vmatprep.subr.mxu0 0.0
        %1463 = vmatpush1.msra.mxu0 0.0
        %1464 = vmatprep.subr.mxu0 0.0
        %1465 = vmatpush1.msra.mxu0 0.0
        %1466 = vmatprep.subr.mxu0 0.0
        %1467 = vmatpush1.msra.mxu0 0.0
        %1468 = vmatprep.subr.mxu0 0.0
        %1469 = vmatpush1.msra.mxu0 0.0
        %1470 = vmatprep.subr.mxu0 0.0
        %1471 = vmatpush1.msra.mxu0 0.0
        %1472 = vmatprep.subr.mxu0 0.0
        %1473 = vmatpush1.msra.mxu0 0.0
        %1474 = vmatprep.subr.mxu0 0.0
        %1475 = vmatpush1.msra.mxu0 0.0
        %1476 = vmatprep.subr.mxu0 0.0
        %1477 = vmatpush1.msra.mxu0 0.0
        %1478 = vmatprep.subr.mxu0 0.0
        %1479 = vmatpush1.msra.mxu0 0.0
        %1480 = vmatprep.subr.mxu0 0.0
        %1481 = vmatpush1.msra.mxu0 0.0
        %1482 = vmatprep.subr.mxu0 0.0
        %1483 = vmatpush1.msra.mxu0 0.0
        %1484 = vmatprep.subr.mxu0 0.0
        %1485 = vmatpush1.msra.mxu0 0.0
        %1486 = vmatprep.subr.mxu0 0.0
        %1487 = vmatpush1.msra.mxu0 0.0
        %1488 = vmatprep.subr.mxu0 0.0
        %1489 = vmatpush1.msra.mxu0 0.0
        %1490 = vmatprep.subr.mxu0 0.0
        %1491 = vmatpush1.msra.mxu0 0.0
        %1492 = vmatprep.subr.mxu0 0.0
        %1493 = vmatpush1.msra.mxu0 0.0
        %1494 = vmatprep.subr.mxu0 0.0
        %1495 = vmatpush1.msra.mxu0 0.0
        %1496 = vmatprep.subr.mxu0 0.0
        %1497 = vmatpush1.msra.mxu0 0.0
        %1498 = vmatprep.subr.mxu0 0.0
        %1499 = vmatpush1.msra.mxu0 0.0
        %1500 = vmatprep.subr.mxu0 0.0
        %1501 = vmatpush1.msra.mxu0 0.0
        %1502 = vmatprep.mubr.f32.mxu0 0.0
        %1503 = vmatmul.mubr.f32.gmra.mrb[0].mxu0 %v1430
        %v1504 = vpop.f32.mrb[0].mxu0
        %v1505 = vadd.f32 0.0, %v1504
        %v1506 = vpop.f32.mrb[0].mxu0
        %1507 = vmatprep.mubr.f32.mxu0 0.0
        %1508 = vmatmul.mubr.f32.gmra.mrb[0].mxu0 %v1433
        %v1509 = vpop.f32.mrb[0].mxu0
        %v1510 = vadd.f32 0.0, %v1509
        %v1511 = vpop.f32.mrb[0].mxu0
        %1512 = vdwg.mxu0
        %vm1513 = vcmask 89088
        %v1514 = vsel %vm1513, %v1505, 0.0
        %1515 = vadd.xlane.f32.xlu0 %v1514
        %v1516 = vpop.xlane.xlu0 %1515
        %v1517 = vsel %vm1513, %v1510, 0.0
        %1518 = vadd.xlane.f32.xlu0 %v1517
        %v1519 = vpop.xlane.xlu0 %1518
        %v1520 = vmul.f32 %v1505, %v1505
        %v1521 = vmul.f32 %v1510, %v1510
        %v1522 = vsel %vm1513, %v1520, 0.0
        %1523 = vadd.xlane.f32.xlu0 %v1522
        %v1524 = vpop.xlane.xlu0 %1523
        %v1525 = vsel %vm1513, %v1521, 0.0
        %1526 = vadd.xlane.f32.xlu0 %v1525
        %v1527 = vpop.xlane.xlu0 %1526
        %v1528 = vmul.f32 %v1516, 0.09090909
        %v1529 = vmul.f32 %v1519, 0.09090909
        %v1530 = vmul.f32 %v1524, 0.09090909
        %v1531 = vmul.f32 %v1527, 0.09090909
        %v1532 = vmul.f32 %v1528, %v1528
        %v1533 = vmul.f32 %v1529, %v1529
        %v1534 = vsub.f32 %v1530, %v1532
        %v1535 = vsub.f32 %v1531, %v1533
        %v1536 = vsub.f32 %v1505, %v1528
        %v1537 = vsub.f32 %v1510, %v1529
        %v1538 = vadd.f32 %v1534, 1e-05
        %v1539 = vadd.f32 %v1535, 1e-05
        %v1540 = vrsqrt.pop %v1538
        %v1541 = vrsqrt.pop %v1539
        %v1542 = vmul.f32 %v1536, %v1540
        %v1543 = vmul.f32 %v1537, %v1541
        %v1544 = vmax.f32 %v1542, 0.0
        %v1545 = vmax.f32 %v1543, 0.0
        %vm1546 = vcmask 39936
        %1547 = vst.msk [vmem:[#allocation2] sm:$0xff] %vm1546, %v1544
        %1548 = vst.msk [vmem:[#allocation2 + $0x8] sm:$0xff] %vm1546, %v1545
        %1551 = vrot.lane.b32.xlu0 %v1544, 127
        %v1552 = vpop.permute.xlu0 %1551
        %1553 = vrot.lane.b32.xlu0 %v1545, 127
        %v1554 = vpop.permute.xlu0 %1553
        %1557 = vst.msk [vmem:[#allocation2 + $0x10] sm:$0xff] %vm1546, %v1552
        %1558 = vst.msk [vmem:[#allocation2 + $0x18] sm:$0xff] %vm1546, %v1554
        %1559 = vrot.lane.b32.xlu0 %v1544, 126
        %v1560 = vpop.permute.xlu0 %1559
        %1561 = vrot.lane.b32.xlu0 %v1545, 126
        %v1562 = vpop.permute.xlu0 %1561
        %1565 = vst.msk [vmem:[#allocation2 + $0x20] sm:$0xff] %vm1546, %v1560
        %1566 = vst.msk [vmem:[#allocation2 + $0x28] sm:$0xff] %vm1546, %v1562
        %1567 = vrot.lane.b32.xlu0 %v1544, 125
        %v1568 = vpop.permute.xlu0 %1567
        %1569 = vrot.lane.b32.xlu0 %v1545, 125
        %v1570 = vpop.permute.xlu0 %1569
        %1573 = vst.msk [vmem:[#allocation2 + $0x30] sm:$0xff] %vm1546, %v1568
        %1574 = vst.msk [vmem:[#allocation2 + $0x38] sm:$0xff] %vm1546, %v1570
        %1575 = vrot.lane.b32.xlu0 %v1544, 124
        %v1576 = vpop.permute.xlu0 %1575
        %1577 = vrot.lane.b32.xlu0 %v1545, 124
        %v1578 = vpop.permute.xlu0 %1577
        %1581 = vst.msk [vmem:[#allocation2 + $0x40] sm:$0xff] %vm1546, %v1576
        %1582 = vst.msk [vmem:[#allocation2 + $0x48] sm:$0xff] %vm1546, %v1578
        %1583 = vrot.lane.b32.xlu0 %v1544, 123
        %v1584 = vpop.permute.xlu0 %1583
        %1585 = vrot.lane.b32.xlu0 %v1545, 123
        %v1586 = vpop.permute.xlu0 %1585
        %1589 = vst.msk [vmem:[#allocation2 + $0x50] sm:$0xff] %vm1546, %v1584
        %1590 = vst.msk [vmem:[#allocation2 + $0x58] sm:$0xff] %vm1546, %v1586
        %1591 = vrot.lane.b32.xlu0 %v1544, 122
        %v1592 = vpop.permute.xlu0 %1591
        %1593 = vrot.lane.b32.xlu0 %v1545, 122
        %v1594 = vpop.permute.xlu0 %1593
        %1597 = vst.msk [vmem:[#allocation2 + $0x60] sm:$0xff] %vm1546, %v1592
        %1598 = vst.msk [vmem:[#allocation2 + $0x68] sm:$0xff] %vm1546, %v1594
        %v1599 = vld [vmem:[#allocation2] sm:$0xff]
        %v1600 = vld [vmem:[#allocation2 + $0x8] sm:$0xff]
        %v1601 = vld [vmem:[#allocation2 + $0x10] sm:$0xff]
        %v1602 = vld [vmem:[#allocation2 + $0x18] sm:$0xff]
        %v1603 = vld [vmem:[#allocation2 + $0x20] sm:$0xff]
        %v1604 = vld [vmem:[#allocation2 + $0x28] sm:$0xff]
        %v1605 = vld [vmem:[#allocation2 + $0x30] sm:$0xff]
        %v1606 = vld [vmem:[#allocation2 + $0x38] sm:$0xff]
        %v1607 = vld [vmem:[#allocation2 + $0x40] sm:$0xff]
        %v1608 = vld [vmem:[#allocation2 + $0x48] sm:$0xff]
        %v1609 = vld [vmem:[#allocation2 + $0x50] sm:$0xff]
        %v1610 = vld [vmem:[#allocation2 + $0x58] sm:$0xff]
        %v1611 = vld [vmem:[#allocation2 + $0x60] sm:$0xff]
        %v1612 = vld [vmem:[#allocation2 + $0x68] sm:$0xff]
        %v1613 = vld [vmem:[%s7] sm:$0xff]
        %v1614 = vld [vmem:[%s7 + $0x8] sm:$0xff]
        %v1615 = vld [vmem:[%s7 + $0x10] sm:$0xff]
        %v1616 = vld [vmem:[%s7 + $0x18] sm:$0xff]
        %vm1617 = vcmask 916480
        %v1619 = vsel %vm1617, %v1613, 0
        %v1622 = vsel %vm1617, %v1614, 0
        %v1625 = vsel %vm1617, %v1615, 0
        %v1628 = vsel %vm1617, %v1616, 0
        %1630 = vmatprep.subr.mxu0 0.0
        %1631 = vmatpush1.msra.mxu0 %v1599
        %1632 = vmatprep.subr.mxu0 0.0
        %1633 = vmatpush1.msra.mxu0 %v1600
        %1634 = vmatprep.subr.mxu0 0.0
        %1635 = vmatpush1.msra.mxu0 %v1601
        %1636 = vmatprep.subr.mxu0 0.0
        %1637 = vmatpush1.msra.mxu0 %v1602
        %1638 = vmatprep.subr.mxu0 0.0
        %1639 = vmatpush1.msra.mxu0 %v1603
        %1640 = vmatprep.subr.mxu0 0.0
        %1641 = vmatpush1.msra.mxu0 %v1604
        %1642 = vmatprep.subr.mxu0 0.0
        %1643 = vmatpush1.msra.mxu0 %v1605
        %1644 = vmatprep.subr.mxu0 0.0
        %1645 = vmatpush1.msra.mxu0 %v1606
        %1646 = vmatprep.subr.mxu0 0.0
        %1647 = vmatpush1.msra.mxu0 %v1607
        %1648 = vmatprep.subr.mxu0 0.0
        %1649 = vmatpush1.msra.mxu0 %v1608
        %1650 = vmatprep.subr.mxu0 0.0
        %1651 = vmatpush1.msra.mxu0 %v1609
        %1652 = vmatprep.subr.mxu0 0.0
        %1653 = vmatpush1.msra.mxu0 %v1610
        %1654 = vmatprep.subr.mxu0 0.0
        %1655 = vmatpush1.msra.mxu0 %v1611
        %1656 = vmatprep.subr.mxu0 0.0
        %1657 = vmatpush1.msra.mxu0 %v1612
        %1658 = vmatprep.subr.mxu0 0.0
        %1659 = vmatpush1.msra.mxu0 0.0
        %1660 = vmatprep.subr.mxu0 0.0
        %1661 = vmatpush1.msra.mxu0 0.0
        %1662 = vmatprep.subr.mxu0 0.0
        %1663 = vmatpush1.msra.mxu0 0.0
        %1664 = vmatprep.subr.mxu0 0.0
        %1665 = vmatpush1.msra.mxu0 0.0
        %1666 = vmatprep.subr.mxu0 0.0
        %1667 = vmatpush1.msra.mxu0 0.0
        %1668 = vmatprep.subr.mxu0 0.0
        %1669 = vmatpush1.msra.mxu0 0.0
        %1670 = vmatprep.subr.mxu0 0.0
        %1671 = vmatpush1.msra.mxu0 0.0
        %1672 = vmatprep.subr.mxu0 0.0
        %1673 = vmatpush1.msra.mxu0 0.0
        %1674 = vmatprep.subr.mxu0 0.0
        %1675 = vmatpush1.msra.mxu0 0.0
        %1676 = vmatprep.subr.mxu0 0.0
        %1677 = vmatpush1.msra.mxu0 0.0
        %1678 = vmatprep.subr.mxu0 0.0
        %1679 = vmatpush1.msra.mxu0 0.0
        %1680 = vmatprep.subr.mxu0 0.0
        %1681 = vmatpush1.msra.mxu0 0.0
        %1682 = vmatprep.subr.mxu0 0.0
        %1683 = vmatpush1.msra.mxu0 0.0
        %1684 = vmatprep.subr.mxu0 0.0
        %1685 = vmatpush1.msra.mxu0 0.0
        %1686 = vmatprep.subr.mxu0 0.0
        %1687 = vmatpush1.msra.mxu0 0.0
        %1688 = vmatprep.subr.mxu0 0.0
        %1689 = vmatpush1.msra.mxu0 0.0
        %1690 = vmatprep.subr.mxu0 0.0
        %1691 = vmatpush1.msra.mxu0 0.0
        %1692 = vmatprep.subr.mxu0 0.0
        %1693 = vmatpush1.msra.mxu0 0.0
        %1694 = vmatprep.mubr.f32.mxu0 0.0
        %1695 = vmatmul.mubr.f32.gmra.mrb[0].mxu0 %v1619
        %v1696 = vpop.f32.mrb[0].mxu0
        %v1697 = vadd.f32 0.0, %v1696
        %v1698 = vpop.f32.mrb[0].mxu0
        %1699 = vmatprep.mubr.f32.mxu0 0.0
        %1700 = vmatmul.mubr.f32.gmra.mrb[0].mxu0 %v1622
        %v1701 = vpop.f32.mrb[0].mxu0
        %v1702 = vadd.f32 0.0, %v1701
        %v1703 = vpop.f32.mrb[0].mxu0
        %1704 = vmatprep.mubr.f32.mxu0 0.0
        %1705 = vmatmul.mubr.f32.gmra.mrb[0].mxu0 %v1625
        %v1706 = vpop.f32.mrb[0].mxu0
        %v1707 = vadd.f32 0.0, %v1706
        %v1708 = vpop.f32.mrb[0].mxu0
        %1709 = vmatprep.mubr.f32.mxu0 0.0
        %1710 = vmatmul.mubr.f32.gmra.mrb[0].mxu0 %v1628
        %v1711 = vpop.f32.mrb[0].mxu0
        %v1712 = vadd.f32 0.0, %v1711
        %v1713 = vpop.f32.mrb[0].mxu0
        %1714 = vdwg.mxu0
        %v1715 = vld [vmem:[%s8] sm:$0x1f]
        %v1717 = vsel %vm1546, %v1697, 0
        %v1720 = vsel %vm1546, %v1702, 0
        %v1723 = vsel %vm1546, %v1707, 0
        %v1726 = vsel %vm1546, %v1712, 0
        %vm1728 = vcmask 1044480
        %v1730 = vsel %vm1728, %v1715, 0
        %1732 = vmatprep.subr.mxu0 0.0
        %1733 = vmatpush1.msra.mxu0 %v1730
        %1734 = vmatprep.subr.mxu0 0.0
        %1735 = vmatpush1.msra.mxu0 0.0
        %1736 = vmatprep.subr.mxu0 0.0
        %1737 = vmatpush1.msra.mxu0 0.0
        %1738 = vmatprep.subr.mxu0 0.0
        %1739 = vmatpush1.msra.mxu0 0.0
        %1740 = vmatprep.subr.mxu0 0.0
        %1741 = vmatpush1.msra.mxu0 0.0
        %1742 = vmatprep.subr.mxu0 0.0
        %1743 = vmatpush1.msra.mxu0 0.0
        %1744 = vmatprep.subr.mxu0 0.0
        %1745 = vmatpush1.msra.mxu0 0.0
        %1746 = vmatprep.subr.mxu0 0.0
        %1747 = vmatpush1.msra.mxu0 0.0
        %1748 = vmatprep.subr.mxu0 0.0
        %1749 = vmatpush1.msra.mxu0 0.0
        %1750 = vmatprep.subr.mxu0 0.0
        %1751 = vmatpush1.msra.mxu0 0.0
        %1752 = vmatprep.subr.mxu0 0.0
        %1753 = vmatpush1.msra.mxu0 0.0
        %1754 = vmatprep.subr.mxu0 0.0
        %1755 = vmatpush1.msra.mxu0 0.0
        %1756 = vmatprep.subr.mxu0 0.0
        %1757 = vmatpush1.msra.mxu0 0.0
        %1758 = vmatprep.subr.mxu0 0.0
        %1759 = vmatpush1.msra.mxu0 0.0
        %1760 = vmatprep.subr.mxu0 0.0
        %1761 = vmatpush1.msra.mxu0 0.0
        %1762 = vmatprep.subr.mxu0 0.0
        %1763 = vmatpush1.msra.mxu0 0.0
        %1764 = vmatprep.subr.mxu0 0.0
        %1765 = vmatpush1.msra.mxu0 0.0
        %1766 = vmatprep.subr.mxu0 0.0
        %1767 = vmatpush1.msra.mxu0 0.0
        %1768 = vmatprep.subr.mxu0 0.0
        %1769 = vmatpush1.msra.mxu0 0.0
        %1770 = vmatprep.subr.mxu0 0.0
        %1771 = vmatpush1.msra.mxu0 0.0
        %1772 = vmatprep.subr.mxu0 0.0
        %1773 = vmatpush1.msra.mxu0 0.0
        %1774 = vmatprep.subr.mxu0 0.0
        %1775 = vmatpush1.msra.mxu0 0.0
        %1776 = vmatprep.subr.mxu0 0.0
        %1777 = vmatpush1.msra.mxu0 0.0
        %1778 = vmatprep.subr.mxu0 0.0
        %1779 = vmatpush1.msra.mxu0 0.0
        %1780 = vmatprep.subr.mxu0 0.0
        %1781 = vmatpush1.msra.mxu0 0.0
        %1782 = vmatprep.subr.mxu0 0.0
        %1783 = vmatpush1.msra.mxu0 0.0
        %1784 = vmatprep.subr.mxu0 0.0
        %1785 = vmatpush1.msra.mxu0 0.0
        %1786 = vmatprep.subr.mxu0 0.0
        %1787 = vmatpush1.msra.mxu0 0.0
        %1788 = vmatprep.subr.mxu0 0.0
        %1789 = vmatpush1.msra.mxu0 0.0
        %1790 = vmatprep.subr.mxu0 0.0
        %1791 = vmatpush1.msra.mxu0 0.0
        %1792 = vmatprep.subr.mxu0 0.0
        %1793 = vmatpush1.msra.mxu0 0.0
        %1794 = vmatprep.subr.mxu0 0.0
        %1795 = vmatpush1.msra.mxu0 0.0
        %1796 = vmatprep.mubr.f32.mxu0 0.0
        %1797 = vmatmul.mubr.f32.gmra.mrb[0].mxu0 %v1717
        %v1798 = vpop.f32.mrb[0].mxu0
        %v1799 = vadd.f32 0.0, %v1798
        %v1800 = vpop.f32.mrb[0].mxu0
        %1801 = vmatprep.mubr.f32.mxu0 0.0
        %1802 = vmatmul.mubr.f32.gmra.mrb[0].mxu0 %v1720
        %v1803 = vpop.f32.mrb[0].mxu0
        %v1804 = vadd.f32 0.0, %v1803
        %v1805 = vpop.f32.mrb[0].mxu0
        %1806 = vmatprep.mubr.f32.mxu0 0.0
        %1807 = vmatmul.mubr.f32.gmra.mrb[0].mxu0 %v1723
        %v1808 = vpop.f32.mrb[0].mxu0
        %v1809 = vadd.f32 0.0, %v1808
        %v1810 = vpop.f32.mrb[0].mxu0
        %1811 = vmatprep.mubr.f32.mxu0 0.0
        %1812 = vmatmul.mubr.f32.gmra.mrb[0].mxu0 %v1726
        %v1813 = vpop.f32.mrb[0].mxu0
        %v1814 = vadd.f32 0.0, %v1813
        %v1815 = vpop.f32.mrb[0].mxu0
        %1816 = vdwg.mxu0
        %vm1817 = vcmask 23552
        %v1818 = vsel %vm1817, %v1799, 0.0
        %1819 = vadd.xlane.f32.xlu0 %v1818
        %v1820 = vpop.xlane.xlu0 %1819
        %v1821 = vsel %vm1817, %v1804, 0.0
        %1822 = vadd.xlane.f32.xlu0 %v1821
        %v1823 = vpop.xlane.xlu0 %1822
        %v1824 = vsel %vm1817, %v1809, 0.0
        %1825 = vadd.xlane.f32.xlu0 %v1824
        %v1826 = vpop.xlane.xlu0 %1825
        %v1827 = vsel %vm1817, %v1814, 0.0
        %1828 = vadd.xlane.f32.xlu0 %v1827
        %v1829 = vpop.xlane.xlu0 %1828
        %v1830 = vmul.f32 %v1799, %v1799
        %v1831 = vmul.f32 %v1804, %v1804
        %v1832 = vmul.f32 %v1809, %v1809
        %v1833 = vmul.f32 %v1814, %v1814
        %v1834 = vsel %vm1817, %v1830, 0.0
        %1835 = vadd.xlane.f32.xlu0 %v1834
        %v1836 = vpop.xlane.xlu0 %1835
        %v1837 = vsel %vm1817, %v1831, 0.0
        %1838 = vadd.xlane.f32.xlu0 %v1837
        %v1839 = vpop.xlane.xlu0 %1838
        %v1840 = vsel %vm1817, %v1832, 0.0
        %1841 = vadd.xlane.f32.xlu0 %v1840
        %v1842 = vpop.xlane.xlu0 %1841
        %v1843 = vsel %vm1817, %v1833, 0.0
        %1844 = vadd.xlane.f32.xlu0 %v1843
        %v1845 = vpop.xlane.xlu0 %1844
        %v1846 = vmul.f32 %v1820, 0.33333334
        %v1847 = vmul.f32 %v1823, 0.33333334
        %v1848 = vmul.f32 %v1826, 0.33333334
        %v1849 = vmul.f32 %v1829, 0.33333334
        %v1850 = vmul.f32 %v1836, 0.33333334
        %v1851 = vmul.f32 %v1839, 0.33333334
        %v1852 = vmul.f32 %v1842, 0.33333334
        %v1853 = vmul.f32 %v1845, 0.33333334
        %v1854 = vmul.f32 %v1846, %v1846
        %v1855 = vmul.f32 %v1847, %v1847
        %v1856 = vmul.f32 %v1848, %v1848
        %v1857 = vmul.f32 %v1849, %v1849
        %v1858 = vsub.f32 %v1850, %v1854
        %v1859 = vsub.f32 %v1851, %v1855
        %v1860 = vsub.f32 %v1852, %v1856
        %v1861 = vsub.f32 %v1853, %v1857
        %v1862 = vsub.f32 %v1799, %v1846
        %v1863 = vsub.f32 %v1804, %v1847
        %v1864 = vsub.f32 %v1809, %v1848
        %v1865 = vsub.f32 %v1814, %v1849
        %v1866 = vadd.f32 %v1858, 1e-05
        %v1867 = vadd.f32 %v1859, 1e-05
        %v1868 = vadd.f32 %v1860, 1e-05
        %v1869 = vadd.f32 %v1861, 1e-05
        %v1870 = vrsqrt.pop %v1866
        %v1871 = vrsqrt.pop %v1867
        %v1872 = vrsqrt.pop %v1868
        %v1873 = vrsqrt.pop %v1869
        %v1874 = vmul.f32 %v1862, %v1870
        %v1875 = vmul.f32 %v1863, %v1871
        %v1876 = vmul.f32 %v1864, %v1872
        %v1877 = vmul.f32 %v1865, %v1873
        %v1878 = vmax.f32 %v1874, 0.0
        %v1879 = vmax.f32 %v1875, 0.0
        %v1880 = vmax.f32 %v1876, 0.0
        %v1881 = vmax.f32 %v1877, 0.0
        %vm1882 = vcmask 48128
        %1883 = vst.msk [vmem:[#allocation2] sm:$0xff] %vm1882, 0.0
        %1884 = vst.msk [vmem:[#allocation2 + $0x8] sm:$0xff] %vm1882, 0.0
        %1885 = vst.msk [vmem:[#allocation2 + $0x10] sm:$0xff] %vm1882, 0.0
        %1886 = vst.msk [vmem:[#allocation2 + $0x18] sm:$0xff] %vm1882, 0.0
        %1887 = vst.msk [vmem:[#allocation2 + $0x20] sm:$0xff] %vm1882, 0.0
        %1888 = vst.msk [vmem:[#allocation2 + $0x28] sm:$0xff] %vm1882, 0.0
        %1889 = vst.msk [vmem:[#allocation2 + $0x30] sm:$0xff] %vm1882, 0.0
        %1890 = vst.msk [vmem:[#allocation2 + $0x38] sm:$0xff] %vm1882, 0.0
        %1891 = vst.msk [vmem:[#allocation2 + $0x40] sm:$0xff] %vm1882, 0.0
        %1892 = vst.msk [vmem:[#allocation2 + $0x48] sm:$0xff] %vm1882, 0.0
        %1893 = vst.msk [vmem:[#allocation2 + $0x50] sm:$0xff] %vm1882, 0.0
        %1894 = vst.msk [vmem:[#allocation2 + $0x58] sm:$0xff] %vm1882, 0.0
        %1895 = vst.msk [vmem:[#allocation2 + $0x60] sm:$0xff] %vm1882, 0.0
        %1896 = vst.msk [vmem:[#allocation2 + $0x68] sm:$0xff] %vm1882, 0.0
        %1897 = vst.msk [vmem:[#allocation2 + $0x70] sm:$0xff] %vm1882, 0.0
        %1898 = vst.msk [vmem:[#allocation2 + $0x78] sm:$0xff] %vm1882, 0.0
        %1903 = vrot.lane.b32.xlu0 %v1878, 3
        %v1904 = vpop.permute.xlu0 %1903
        %1905 = vrot.lane.b32.xlu0 %v1879, 3
        %v1906 = vpop.permute.xlu0 %1905
        %1907 = vrot.lane.b32.xlu0 %v1880, 3
        %v1908 = vpop.permute.xlu0 %1907
        %1909 = vrot.lane.b32.xlu0 %v1881, 3
        %v1910 = vpop.permute.xlu0 %1909
        %vm1915 = vcmask 48152
        %1916 = vst.msk [vmem:[#allocation2] sm:$0xff] %vm1915, %v1904
        %1917 = vst.msk [vmem:[#allocation2 + $0x8] sm:$0xff] %vm1915, %v1906
        %1918 = vst.msk [vmem:[#allocation2 + $0x10] sm:$0xff] %vm1915, %v1908
        %1919 = vst.msk [vmem:[#allocation2 + $0x18] sm:$0xff] %vm1915, %v1910
        %1920 = vrot.lane.b32.xlu0 %v1878, 2
        %v1921 = vpop.permute.xlu0 %1920
        %1922 = vrot.lane.b32.xlu0 %v1879, 2
        %v1923 = vpop.permute.xlu0 %1922
        %1924 = vrot.lane.b32.xlu0 %v1880, 2
        %v1925 = vpop.permute.xlu0 %1924
        %1926 = vrot.lane.b32.xlu0 %v1881, 2
        %v1927 = vpop.permute.xlu0 %1926
        %vm1932 = vcmask 39952
        %1933 = vst.msk [vmem:[#allocation2 + $0x20] sm:$0xff] %vm1932, %v1921
        %1934 = vst.msk [vmem:[#allocation2 + $0x28] sm:$0xff] %vm1932, %v1923
        %1935 = vst.msk [vmem:[#allocation2 + $0x30] sm:$0xff] %vm1932, %v1925
        %1936 = vst.msk [vmem:[#allocation2 + $0x38] sm:$0xff] %vm1932, %v1927
        %1937 = vrot.lane.b32.xlu0 %v1878, 1
        %v1938 = vpop.permute.xlu0 %1937
        %1939 = vrot.lane.b32.xlu0 %v1879, 1
        %v1940 = vpop.permute.xlu0 %1939
        %1941 = vrot.lane.b32.xlu0 %v1880, 1
        %v1942 = vpop.permute.xlu0 %1941
        %1943 = vrot.lane.b32.xlu0 %v1881, 1
        %v1944 = vpop.permute.xlu0 %1943
        %vm1949 = vcmask 31752
        %1950 = vst.msk [vmem:[#allocation2 + $0x40] sm:$0xff] %vm1949, %v1938
        %1951 = vst.msk [vmem:[#allocation2 + $0x48] sm:$0xff] %vm1949, %v1940
        %1952 = vst.msk [vmem:[#allocation2 + $0x50] sm:$0xff] %vm1949, %v1942
        %1953 = vst.msk [vmem:[#allocation2 + $0x58] sm:$0xff] %vm1949, %v1944
        %1954 = vst.msk [vmem:[#allocation2 + $0x60] sm:$0xff] %vm1817, %v1878
        %1955 = vst.msk [vmem:[#allocation2 + $0x68] sm:$0xff] %vm1817, %v1879
        %1956 = vst.msk [vmem:[#allocation2 + $0x70] sm:$0xff] %vm1817, %v1880
        %1957 = vst.msk [vmem:[#allocation2 + $0x78] sm:$0xff] %vm1817, %v1881
        %v1958 = vld [vmem:[%s9] sm:$0xff]
        %v1959 = vld [vmem:[%s9 + $0x8] sm:$0xff]
        %v1960 = vld [vmem:[#allocation2] sm:$0xff]
        %v1961 = vld [vmem:[#allocation2 + $0x8] sm:$0xff]
        %v1962 = vld [vmem:[#allocation2 + $0x10] sm:$0xff]
        %v1963 = vld [vmem:[#allocation2 + $0x18] sm:$0xff]
        %v1964 = vld [vmem:[#allocation2 + $0x20] sm:$0xff]
        %v1965 = vld [vmem:[#allocation2 + $0x28] sm:$0xff]
        %v1966 = vld [vmem:[#allocation2 + $0x30] sm:$0xff]
        %v1967 = vld [vmem:[#allocation2 + $0x38] sm:$0xff]
        %v1968 = vld [vmem:[#allocation2 + $0x40] sm:$0xff]
        %v1969 = vld [vmem:[#allocation2 + $0x48] sm:$0xff]
        %v1970 = vld [vmem:[#allocation2 + $0x50] sm:$0xff]
        %v1971 = vld [vmem:[#allocation2 + $0x58] sm:$0xff]
        %v1972 = vld [vmem:[#allocation2 + $0x60] sm:$0xff]
        %v1973 = vld [vmem:[#allocation2 + $0x68] sm:$0xff]
        %v1974 = vld [vmem:[#allocation2 + $0x70] sm:$0xff]
        %v1975 = vld [vmem:[#allocation2 + $0x78] sm:$0xff]
        %1976 = vmatprep.subr.mxu0 0.0
        %1977 = vmatpush1.msra.mxu0 %v1960
        %1978 = vmatprep.subr.mxu0 0.0
        %1979 = vmatpush1.msra.mxu0 %v1961
        %1980 = vmatprep.subr.mxu0 0.0
        %1981 = vmatpush1.msra.mxu0 %v1962
        %1982 = vmatprep.subr.mxu0 0.0
        %1983 = vmatpush1.msra.mxu0 %v1963
        %1984 = vmatprep.subr.mxu0 0.0
        %1985 = vmatpush1.msra.mxu0 %v1964
        %1986 = vmatprep.subr.mxu0 0.0
        %1987 = vmatpush1.msra.mxu0 %v1965
        %1988 = vmatprep.subr.mxu0 0.0
        %1989 = vmatpush1.msra.mxu0 %v1966
        %1990 = vmatprep.subr.mxu0 0.0
        %1991 = vmatpush1.msra.mxu0 %v1967
        %1992 = vmatprep.subr.mxu0 0.0
        %1993 = vmatpush1.msra.mxu0 %v1968
        %1994 = vmatprep.subr.mxu0 0.0
        %1995 = vmatpush1.msra.mxu0 %v1969
        %1996 = vmatprep.subr.mxu0 0.0
        %1997 = vmatpush1.msra.mxu0 %v1970
        %1998 = vmatprep.subr.mxu0 0.0
        %1999 = vmatpush1.msra.mxu0 %v1971
        %2000 = vmatprep.subr.mxu0 0.0
        %2001 = vmatpush1.msra.mxu0 %v1972
        %2002 = vmatprep.subr.mxu0 0.0
        %2003 = vmatpush1.msra.mxu0 %v1973
        %2004 = vmatprep.subr.mxu0 0.0
        %2005 = vmatpush1.msra.mxu0 %v1974
        %2006 = vmatprep.subr.mxu0 0.0
        %2007 = vmatpush1.msra.mxu0 %v1975
        %2008 = vmatprep.subr.mxu0 0.0
        %2009 = vmatpush1.msra.mxu0 0.0
        %2010 = vmatprep.subr.mxu0 0.0
        %2011 = vmatpush1.msra.mxu0 0.0
        %2012 = vmatprep.subr.mxu0 0.0
        %2013 = vmatpush1.msra.mxu0 0.0
        %2014 = vmatprep.subr.mxu0 0.0
        %2015 = vmatpush1.msra.mxu0 0.0
        %2016 = vmatprep.subr.mxu0 0.0
        %2017 = vmatpush1.msra.mxu0 0.0
        %2018 = vmatprep.subr.mxu0 0.0
        %2019 = vmatpush1.msra.mxu0 0.0
        %2020 = vmatprep.subr.mxu0 0.0
        %2021 = vmatpush1.msra.mxu0 0.0
        %2022 = vmatprep.subr.mxu0 0.0
        %2023 = vmatpush1.msra.mxu0 0.0
        %2024 = vmatprep.subr.mxu0 0.0
        %2025 = vmatpush1.msra.mxu0 0.0
        %2026 = vmatprep.subr.mxu0 0.0
        %2027 = vmatpush1.msra.mxu0 0.0
        %2028 = vmatprep.subr.mxu0 0.0
        %2029 = vmatpush1.msra.mxu0 0.0
        %2030 = vmatprep.subr.mxu0 0.0
        %2031 = vmatpush1.msra.mxu0 0.0
        %2032 = vmatprep.subr.mxu0 0.0
        %2033 = vmatpush1.msra.mxu0 0.0
        %2034 = vmatprep.subr.mxu0 0.0
        %2035 = vmatpush1.msra.mxu0 0.0
        %2036 = vmatprep.subr.mxu0 0.0
        %2037 = vmatpush1.msra.mxu0 0.0
        %2038 = vmatprep.subr.mxu0 0.0
        %2039 = vmatpush1.msra.mxu0 0.0
        %2040 = vmatprep.mubr.f32.mxu0 0.0
        %2041 = vmatmul.mubr.f32.gmra.mrb[0].mxu0 %v1958
        %v2042 = vpop.f32.mrb[0].mxu0
        %v2043 = vadd.f32 0.0, %v2042
        %v2044 = vpop.f32.mrb[0].mxu0
        %2045 = vmatprep.mubr.f32.mxu0 0.0
        %2046 = vmatmul.mubr.f32.gmra.mrb[0].mxu0 %v1959
        %v2047 = vpop.f32.mrb[0].mxu0
        %v2048 = vadd.f32 0.0, %v2047
        %v2049 = vpop.f32.mrb[0].mxu0
        %2050 = vdwg.mxu0
        %2051 = vst.msk [vmem:[#allocation2] sm:$0xff] %vm1546, 0.0
        %2052 = vst.msk [vmem:[#allocation2 + $0x8] sm:$0xff] %vm1546, 0.0
        %2053 = vst.msk [vmem:[#allocation2 + $0x10] sm:$0xff] %vm1546, 0.0
        %2054 = vst.msk [vmem:[#allocation2 + $0x18] sm:$0xff] %vm1546, 0.0
        %2055 = vst.msk [vmem:[#allocation2 + $0x20] sm:$0xff] %vm1546, 0.0
        %2056 = vst.msk [vmem:[#allocation2 + $0x28] sm:$0xff] %vm1546, 0.0
        %2057 = vst.msk [vmem:[#allocation2 + $0x30] sm:$0xff] %vm1546, 0.0
        %2058 = vst.msk [vmem:[#allocation2 + $0x38] sm:$0xff] %vm1546, 0.0
        %2059 = vst.msk [vmem:[#allocation2 + $0x40] sm:$0xff] %vm1546, 0.0
        %2060 = vst.msk [vmem:[#allocation2 + $0x48] sm:$0xff] %vm1546, 0.0
        %2061 = vst.msk [vmem:[#allocation2 + $0x50] sm:$0xff] %vm1546, 0.0
        %2062 = vst.msk [vmem:[#allocation2 + $0x58] sm:$0xff] %vm1546, 0.0
        %2063 = vst.msk [vmem:[#allocation2] sm:$0xff] %vm1932, %v1921
        %2064 = vst.msk [vmem:[#allocation2 + $0x8] sm:$0xff] %vm1932, %v1923
        %2065 = vst.msk [vmem:[#allocation2 + $0x10] sm:$0xff] %vm1932, %v1925
        %2066 = vst.msk [vmem:[#allocation2 + $0x18] sm:$0xff] %vm1932, %v1927
        %2067 = vst.msk [vmem:[#allocation2 + $0x20] sm:$0xff] %vm1949, %v1938
        %2068 = vst.msk [vmem:[#allocation2 + $0x28] sm:$0xff] %vm1949, %v1940
        %2069 = vst.msk [vmem:[#allocation2 + $0x30] sm:$0xff] %vm1949, %v1942
        %2070 = vst.msk [vmem:[#allocation2 + $0x38] sm:$0xff] %vm1949, %v1944
        %2071 = vst.msk [vmem:[#allocation2 + $0x40] sm:$0xff] %vm1817, %v1878
        %2072 = vst.msk [vmem:[#allocation2 + $0x48] sm:$0xff] %vm1817, %v1879
        %2073 = vst.msk [vmem:[#allocation2 + $0x50] sm:$0xff] %vm1817, %v1880
        %2074 = vst.msk [vmem:[#allocation2 + $0x58] sm:$0xff] %vm1817, %v1881
        %v2075 = vld [vmem:[%s10] sm:$0xff]
        %v2076 = vld [vmem:[%s10 + $0x8] sm:$0xff]
        %v2077 = vld [vmem:[#allocation2] sm:$0xff]
        %v2078 = vld [vmem:[#allocation2 + $0x8] sm:$0xff]
        %v2079 = vld [vmem:[#allocation2 + $0x10] sm:$0xff]
        %v2080 = vld [vmem:[#allocation2 + $0x18] sm:$0xff]
        %v2081 = vld [vmem:[#allocation2 + $0x20] sm:$0xff]
        %v2082 = vld [vmem:[#allocation2 + $0x28] sm:$0xff]
        %v2083 = vld [vmem:[#allocation2 + $0x30] sm:$0xff]
        %v2084 = vld [vmem:[#allocation2 + $0x38] sm:$0xff]
        %v2085 = vld [vmem:[#allocation2 + $0x40] sm:$0xff]
        %v2086 = vld [vmem:[#allocation2 + $0x48] sm:$0xff]
        %v2087 = vld [vmem:[#allocation2 + $0x50] sm:$0xff]
        %v2088 = vld [vmem:[#allocation2 + $0x58] sm:$0xff]
        %vm2089 = vcmask 785408
        %v2091 = vsel %vm2089, %v2075, 0
        %v2094 = vsel %vm2089, %v2076, 0
        %2096 = vmatprep.subr.mxu0 0.0
        %2097 = vmatpush1.msra.mxu0 %v2077
        %2098 = vmatprep.subr.mxu0 0.0
        %2099 = vmatpush1.msra.mxu0 %v2078
        %2100 = vmatprep.subr.mxu0 0.0
        %2101 = vmatpush1.msra.mxu0 %v2079
        %2102 = vmatprep.subr.mxu0 0.0
        %2103 = vmatpush1.msra.mxu0 %v2080
        %2104 = vmatprep.subr.mxu0 0.0
        %2105 = vmatpush1.msra.mxu0 %v2081
        %2106 = vmatprep.subr.mxu0 0.0
        %2107 = vmatpush1.msra.mxu0 %v2082
        %2108 = vmatprep.subr.mxu0 0.0
        %2109 = vmatpush1.msra.mxu0 %v2083
        %2110 = vmatprep.subr.mxu0 0.0
        %2111 = vmatpush1.msra.mxu0 %v2084
        %2112 = vmatprep.subr.mxu0 0.0
        %2113 = vmatpush1.msra.mxu0 %v2085
        %2114 = vmatprep.subr.mxu0 0.0
        %2115 = vmatpush1.msra.mxu0 %v2086
        %2116 = vmatprep.subr.mxu0 0.0
        %2117 = vmatpush1.msra.mxu0 %v2087
        %2118 = vmatprep.subr.mxu0 0.0
        %2119 = vmatpush1.msra.mxu0 %v2088
        %2120 = vmatprep.subr.mxu0 0.0
        %2121 = vmatpush1.msra.mxu0 0.0
        %2122 = vmatprep.subr.mxu0 0.0
        %2123 = vmatpush1.msra.mxu0 0.0
        %2124 = vmatprep.subr.mxu0 0.0
        %2125 = vmatpush1.msra.mxu0 0.0
        %2126 = vmatprep.subr.mxu0 0.0
        %2127 = vmatpush1.msra.mxu0 0.0
        %2128 = vmatprep.subr.mxu0 0.0
        %2129 = vmatpush1.msra.mxu0 0.0
        %2130 = vmatprep.subr.mxu0 0.0
        %2131 = vmatpush1.msra.mxu0 0.0
        %2132 = vmatprep.subr.mxu0 0.0
        %2133 = vmatpush1.msra.mxu0 0.0
        %2134 = vmatprep.subr.mxu0 0.0
        %2135 = vmatpush1.msra.mxu0 0.0
        %2136 = vmatprep.subr.mxu0 0.0
        %2137 = vmatpush1.msra.mxu0 0.0
        %2138 = vmatprep.subr.mxu0 0.0
        %2139 = vmatpush1.msra.mxu0 0.0
        %2140 = vmatprep.subr.mxu0 0.0
        %2141 = vmatpush1.msra.mxu0 0.0
        %2142 = vmatprep.subr.mxu0 0.0
        %2143 = vmatpush1.msra.mxu0 0.0
        %2144 = vmatprep.subr.mxu0 0.0
        %2145 = vmatpush1.msra.mxu0 0.0
        %2146 = vmatprep.subr.mxu0 0.0
        %2147 = vmatpush1.msra.mxu0 0.0
        %2148 = vmatprep.subr.mxu0 0.0
        %2149 = vmatpush1.msra.mxu0 0.0
        %2150 = vmatprep.subr.mxu0 0.0
        %2151 = vmatpush1.msra.mxu0 0.0
        %2152 = vmatprep.subr.mxu0 0.0
        %2153 = vmatpush1.msra.mxu0 0.0
        %2154 = vmatprep.subr.mxu0 0.0
        %2155 = vmatpush1.msra.mxu0 0.0
        %2156 = vmatprep.subr.mxu0 0.0
        %2157 = vmatpush1.msra.mxu0 0.0
        %2158 = vmatprep.subr.mxu0 0.0
        %2159 = vmatpush1.msra.mxu0 0.0
        %2160 = vmatprep.mubr.f32.mxu0 0.0
        %2161 = vmatmul.mubr.f32.gmra.mrb[0].mxu0 %v2091
        %v2162 = vpop.f32.mrb[0].mxu0
        %v2163 = vadd.f32 0.0, %v2162
        %v2164 = vpop.f32.mrb[0].mxu0
        %2165 = vmatprep.mubr.f32.mxu0 0.0
        %2166 = vmatmul.mubr.f32.gmra.mrb[0].mxu0 %v2094
        %v2167 = vpop.f32.mrb[0].mxu0
        %v2168 = vadd.f32 0.0, %v2167
        %v2169 = vpop.f32.mrb[0].mxu0
        %2170 = vdwg.mxu0
        %v2171 = vld [vmem:[#allocation9] sm:$0x3f]
        %v2172 = vld [vmem:[#allocation10] sm:$0x1f]
        %v2174 = vsel %vm1546, %v2163, 0
        %v2177 = vsel %vm1546, %v2168, 0
        %v2180 = vsel %vm1728, %v2172, 0
        %2182 = vmatprep.subr.mxu0 0.0
        %2183 = vmatpush1.msra.mxu0 %v2180
        %2184 = vmatprep.subr.mxu0 0.0
        %2185 = vmatpush1.msra.mxu0 0.0
        %2186 = vmatprep.subr.mxu0 0.0
        %2187 = vmatpush1.msra.mxu0 0.0
        %2188 = vmatprep.subr.mxu0 0.0
        %2189 = vmatpush1.msra.mxu0 0.0
        %2190 = vmatprep.subr.mxu0 0.0
        %2191 = vmatpush1.msra.mxu0 0.0
        %2192 = vmatprep.subr.mxu0 0.0
        %2193 = vmatpush1.msra.mxu0 0.0
        %2194 = vmatprep.subr.mxu0 0.0
        %2195 = vmatpush1.msra.mxu0 0.0
        %2196 = vmatprep.subr.mxu0 0.0
        %2197 = vmatpush1.msra.mxu0 0.0
        %2198 = vmatprep.subr.mxu0 0.0
        %2199 = vmatpush1.msra.mxu0 0.0
        %2200 = vmatprep.subr.mxu0 0.0
        %2201 = vmatpush1.msra.mxu0 0.0
        %2202 = vmatprep.subr.mxu0 0.0
        %2203 = vmatpush1.msra.mxu0 0.0
        %2204 = vmatprep.subr.mxu0 0.0
        %2205 = vmatpush1.msra.mxu0 0.0
        %2206 = vmatprep.subr.mxu0 0.0
        %2207 = vmatpush1.msra.mxu0 0.0
        %2208 = vmatprep.subr.mxu0 0.0
        %2209 = vmatpush1.msra.mxu0 0.0
        %2210 = vmatprep.subr.mxu0 0.0
        %2211 = vmatpush1.msra.mxu0 0.0
        %2212 = vmatprep.subr.mxu0 0.0
        %2213 = vmatpush1.msra.mxu0 0.0
        %2214 = vmatprep.subr.mxu0 0.0
        %2215 = vmatpush1.msra.mxu0 0.0
        %2216 = vmatprep.subr.mxu0 0.0
        %2217 = vmatpush1.msra.mxu0 0.0
        %2218 = vmatprep.subr.mxu0 0.0
        %2219 = vmatpush1.msra.mxu0 0.0
        %2220 = vmatprep.subr.mxu0 0.0
        %2221 = vmatpush1.msra.mxu0 0.0
        %2222 = vmatprep.subr.mxu0 0.0
        %2223 = vmatpush1.msra.mxu0 0.0
        %2224 = vmatprep.subr.mxu0 0.0
        %2225 = vmatpush1.msra.mxu0 0.0
        %2226 = vmatprep.subr.mxu0 0.0
        %2227 = vmatpush1.msra.mxu0 0.0
        %2228 = vmatprep.subr.mxu0 0.0
        %2229 = vmatpush1.msra.mxu0 0.0
        %2230 = vmatprep.subr.mxu0 0.0
        %2231 = vmatpush1.msra.mxu0 0.0
        %2232 = vmatprep.subr.mxu0 0.0
        %2233 = vmatpush1.msra.mxu0 0.0
        %2234 = vmatprep.subr.mxu0 0.0
        %2235 = vmatpush1.msra.mxu0 0.0
        %2236 = vmatprep.subr.mxu0 0.0
        %2237 = vmatpush1.msra.mxu0 0.0
        %2238 = vmatprep.subr.mxu0 0.0
        %2239 = vmatpush1.msra.mxu0 0.0
        %2240 = vmatprep.subr.mxu0 0.0
        %2241 = vmatpush1.msra.mxu0 0.0
        %2242 = vmatprep.subr.mxu0 0.0
        %2243 = vmatpush1.msra.mxu0 0.0
        %2244 = vmatprep.subr.mxu0 0.0
        %2245 = vmatpush1.msra.mxu0 0.0
        %2246 = vmatprep.mubr.f32.mxu0 0.0
        %2247 = vmatmul.mubr.f32.gmra.mrb[0].mxu0 %v2174
        %v2248 = vpop.f32.mrb[0].mxu0
        %v2249 = vadd.f32 0.0, %v2248
        %v2250 = vpop.f32.mrb[0].mxu0
        %2251 = vmatprep.mubr.f32.mxu0 0.0
        %2252 = vmatmul.mubr.f32.gmra.mrb[0].mxu0 %v2177
        %v2253 = vpop.f32.mrb[0].mxu0
        %v2254 = vadd.f32 0.0, %v2253
        %v2255 = vpop.f32.mrb[0].mxu0
        %2256 = vdwg.mxu0
        %v2258 = vsel %vm1882, %v2043, 0
        %v2261 = vsel %vm1882, %v2048, 0
        %v2264 = vsel %vm912, %v2171, 0
        %2266 = vmatprep.subr.mxu0 0.0
        %2267 = vmatpush1.msra.mxu0 %v2264
        %2268 = vmatprep.subr.mxu0 0.0
        %2269 = vmatpush1.msra.mxu0 0.0
        %2270 = vmatprep.subr.mxu0 0.0
        %2271 = vmatpush1.msra.mxu0 0.0
        %2272 = vmatprep.subr.mxu0 0.0
        %2273 = vmatpush1.msra.mxu0 0.0
        %2274 = vmatprep.subr.mxu0 0.0
        %2275 = vmatpush1.msra.mxu0 0.0
        %2276 = vmatprep.subr.mxu0 0.0
        %2277 = vmatpush1.msra.mxu0 0.0
        %2278 = vmatprep.subr.mxu0 0.0
        %2279 = vmatpush1.msra.mxu0 0.0
        %2280 = vmatprep.subr.mxu0 0.0
        %2281 = vmatpush1.msra.mxu0 0.0
        %2282 = vmatprep.subr.mxu0 0.0
        %2283 = vmatpush1.msra.mxu0 0.0
        %2284 = vmatprep.subr.mxu0 0.0
        %2285 = vmatpush1.msra.mxu0 0.0
        %2286 = vmatprep.subr.mxu0 0.0
        %2287 = vmatpush1.msra.mxu0 0.0
        %2288 = vmatprep.subr.mxu0 0.0
        %2289 = vmatpush1.msra.mxu0 0.0
        %2290 = vmatprep.subr.mxu0 0.0
        %2291 = vmatpush1.msra.mxu0 0.0
        %2292 = vmatprep.subr.mxu0 0.0
        %2293 = vmatpush1.msra.mxu0 0.0
        %2294 = vmatprep.subr.mxu0 0.0
        %2295 = vmatpush1.msra.mxu0 0.0
        %2296 = vmatprep.subr.mxu0 0.0
        %2297 = vmatpush1.msra.mxu0 0.0
        %2298 = vmatprep.subr.mxu0 0.0
        %2299 = vmatpush1.msra.mxu0 0.0
        %2300 = vmatprep.subr.mxu0 0.0
        %2301 = vmatpush1.msra.mxu0 0.0
        %2302 = vmatprep.subr.mxu0 0.0
        %2303 = vmatpush1.msra.mxu0 0.0
        %2304 = vmatprep.subr.mxu0 0.0
        %2305 = vmatpush1.msra.mxu0 0.0
        %2306 = vmatprep.subr.mxu0 0.0
        %2307 = vmatpush1.msra.mxu0 0.0
        %2308 = vmatprep.subr.mxu0 0.0
        %2309 = vmatpush1.msra.mxu0 0.0
        %2310 = vmatprep.subr.mxu0 0.0
        %2311 = vmatpush1.msra.mxu0 0.0
        %2312 = vmatprep.subr.mxu0 0.0
        %2313 = vmatpush1.msra.mxu0 0.0
        %2314 = vmatprep.subr.mxu0 0.0
        %2315 = vmatpush1.msra.mxu0 0.0
        %2316 = vmatprep.subr.mxu0 0.0
        %2317 = vmatpush1.msra.mxu0 0.0
        %2318 = vmatprep.subr.mxu0 0.0
        %2319 = vmatpush1.msra.mxu0 0.0
        %2320 = vmatprep.subr.mxu0 0.0
        %2321 = vmatpush1.msra.mxu0 0.0
        %2322 = vmatprep.subr.mxu0 0.0
        %2323 = vmatpush1.msra.mxu0 0.0
        %2324 = vmatprep.subr.mxu0 0.0
        %2325 = vmatpush1.msra.mxu0 0.0
        %2326 = vmatprep.subr.mxu0 0.0
        %2327 = vmatpush1.msra.mxu0 0.0
        %2328 = vmatprep.subr.mxu0 0.0
        %2329 = vmatpush1.msra.mxu0 0.0
        %2330 = vmatprep.mubr.f32.mxu0 0.0
        %2331 = vmatmul.mubr.f32.gmra.mrb[0].mxu0 %v2258
        %v2332 = vpop.f32.mrb[0].mxu0
        %v2333 = vadd.f32 %v2249, %v2332
        %v2334 = vpop.f32.mrb[0].mxu0
        %2335 = vmatprep.mubr.f32.mxu0 0.0
        %2336 = vmatmul.mubr.f32.gmra.mrb[0].mxu0 %v2261
        %v2337 = vpop.f32.mrb[0].mxu0
        %v2338 = vadd.f32 %v2254, %v2337
        %v2339 = vpop.f32.mrb[0].mxu0
        %2340 = vdwg.mxu0
        %v2341 = vsel %vm1513, %v2333, 0.0
        %2342 = vadd.xlane.f32.xlu0 %v2341
        %v2343 = vpop.xlane.xlu0 %2342
        %v2344 = vsel %vm1513, %v2338, 0.0
        %2345 = vadd.xlane.f32.xlu0 %v2344
        %v2346 = vpop.xlane.xlu0 %2345
        %v2347 = vmul.f32 %v2333, %v2333
        %v2348 = vmul.f32 %v2338, %v2338
        %v2349 = vsel %vm1513, %v2347, 0.0
        %2350 = vadd.xlane.f32.xlu0 %v2349
        %v2351 = vpop.xlane.xlu0 %2350
        %v2352 = vsel %vm1513, %v2348, 0.0
        %2353 = vadd.xlane.f32.xlu0 %v2352
        %v2354 = vpop.xlane.xlu0 %2353
        %v2355 = vmul.f32 %v2343, 0.09090909
        %v2356 = vmul.f32 %v2346, 0.09090909
        %v2357 = vmul.f32 %v2351, 0.09090909
        %v2358 = vmul.f32 %v2354, 0.09090909
        %v2359 = vmul.f32 %v2355, %v2355
        %v2360 = vmul.f32 %v2356, %v2356
        %v2361 = vsub.f32 %v2357, %v2359
        %v2362 = vsub.f32 %v2358, %v2360
        %v2363 = vsub.f32 %v2333, %v2355
        %v2364 = vsub.f32 %v2338, %v2356
        %v2365 = vadd.f32 %v2361, 1e-05
        %v2366 = vadd.f32 %v2362, 1e-05
        %v2367 = vrsqrt.pop %v2365
        %v2368 = vrsqrt.pop %v2366
        %v2369 = vmul.f32 %v2363, %v2367
        %v2370 = vmul.f32 %v2364, %v2368
        %v2371 = vmax.f32 %v2369, 0.0
        %v2372 = vmax.f32 %v2370, 0.0
        %2373 = vst.msk [vmem:[#allocation2] sm:$0xff] %vm908, 0.0
        %2374 = vst.msk [vmem:[#allocation2 + $0x8] sm:$0xff] %vm908, 0.0
        %2375 = vst.msk [vmem:[#allocation2 + $0x10] sm:$0xff] %vm908, 0.0
        %2376 = vst.msk [vmem:[#allocation2 + $0x18] sm:$0xff] %vm908, 0.0
        %2377 = vst.msk [vmem:[#allocation2 + $0x20] sm:$0xff] %vm908, 0.0
        %2378 = vst.msk [vmem:[#allocation2 + $0x28] sm:$0xff] %vm908, 0.0
        %2379 = vst.msk [vmem:[#allocation2 + $0x30] sm:$0xff] %vm908, 0.0
        %2380 = vst.msk [vmem:[#allocation2 + $0x38] sm:$0xff] %vm908, 0.0
        %2383 = vrot.lane.b32.xlu0 %v2371, 3
        %v2384 = vpop.permute.xlu0 %2383
        %2385 = vrot.lane.b32.xlu0 %v2372, 3
        %v2386 = vpop.permute.xlu0 %2385
        %vm2389 = vcmask 113688
        %2390 = vst.msk [vmem:[#allocation2] sm:$0xff] %vm2389, %v2384
        %2391 = vst.msk [vmem:[#allocation2 + $0x8] sm:$0xff] %vm2389, %v2386
        %2392 = vrot.lane.b32.xlu0 %v2371, 2
        %v2393 = vpop.permute.xlu0 %2392
        %2394 = vrot.lane.b32.xlu0 %v2372, 2
        %v2395 = vpop.permute.xlu0 %2394
        %vm2398 = vcmask 105488
        %2399 = vst.msk [vmem:[#allocation2 + $0x10] sm:$0xff] %vm2398, %v2393
        %2400 = vst.msk [vmem:[#allocation2 + $0x18] sm:$0xff] %vm2398, %v2395
        %2401 = vrot.lane.b32.xlu0 %v2371, 1
        %v2402 = vpop.permute.xlu0 %2401
        %2403 = vrot.lane.b32.xlu0 %v2372, 1
        %v2404 = vpop.permute.xlu0 %2403
        %vm2407 = vcmask 97288
        %2408 = vst.msk [vmem:[#allocation2 + $0x20] sm:$0xff] %vm2407, %v2402
        %2409 = vst.msk [vmem:[#allocation2 + $0x28] sm:$0xff] %vm2407, %v2404
        %2410 = vst.msk [vmem:[#allocation2 + $0x30] sm:$0xff] %vm1513, %v2371
        %2411 = vst.msk [vmem:[#allocation2 + $0x38] sm:$0xff] %vm1513, %v2372
        %v2412 = vld [vmem:[#allocation12] sm:$0xff]
        %v2413 = vld [vmem:[#allocation2] sm:$0xff]
        %v2414 = vld [vmem:[#allocation2 + $0x8] sm:$0xff]
        %v2415 = vld [vmem:[#allocation2 + $0x10] sm:$0xff]
        %v2416 = vld [vmem:[#allocation2 + $0x18] sm:$0xff]
        %v2417 = vld [vmem:[#allocation2 + $0x20] sm:$0xff]
        %v2418 = vld [vmem:[#allocation2 + $0x28] sm:$0xff]
        %v2419 = vld [vmem:[#allocation2 + $0x30] sm:$0xff]
        %v2420 = vld [vmem:[#allocation2 + $0x38] sm:$0xff]
        %vm2421 = vcmask 523264
        %v2423 = vsel %vm2421, %v2412, 0
        %2425 = vmatprep.subr.mxu0 0.0
        %2426 = vmatpush1.msra.mxu0 %v2413
        %2427 = vmatprep.subr.mxu0 0.0
        %2428 = vmatpush1.msra.mxu0 %v2414
        %2429 = vmatprep.subr.mxu0 0.0
        %2430 = vmatpush1.msra.mxu0 %v2415
        %2431 = vmatprep.subr.mxu0 0.0
        %2432 = vmatpush1.msra.mxu0 %v2416
        %2433 = vmatprep.subr.mxu0 0.0
        %2434 = vmatpush1.msra.mxu0 %v2417
        %2435 = vmatprep.subr.mxu0 0.0
        %2436 = vmatpush1.msra.mxu0 %v2418
        %2437 = vmatprep.subr.mxu0 0.0
        %2438 = vmatpush1.msra.mxu0 %v2419
        %2439 = vmatprep.subr.mxu0 0.0
        %2440 = vmatpush1.msra.mxu0 %v2420
        %2441 = vmatprep.subr.mxu0 0.0
        %2442 = vmatpush1.msra.mxu0 0.0
        %2443 = vmatprep.subr.mxu0 0.0
        %2444 = vmatpush1.msra.mxu0 0.0
        %2445 = vmatprep.subr.mxu0 0.0
        %2446 = vmatpush1.msra.mxu0 0.0
        %2447 = vmatprep.subr.mxu0 0.0
        %2448 = vmatpush1.msra.mxu0 0.0
        %2449 = vmatprep.subr.mxu0 0.0
        %2450 = vmatpush1.msra.mxu0 0.0
        %2451 = vmatprep.subr.mxu0 0.0
        %2452 = vmatpush1.msra.mxu0 0.0
        %2453 = vmatprep.subr.mxu0 0.0
        %2454 = vmatpush1.msra.mxu0 0.0
        %2455 = vmatprep.subr.mxu0 0.0
        %2456 = vmatpush1.msra.mxu0 0.0
        %2457 = vmatprep.subr.mxu0 0.0
        %2458 = vmatpush1.msra.mxu0 0.0
        %2459 = vmatprep.subr.mxu0 0.0
        %2460 = vmatpush1.msra.mxu0 0.0
        %2461 = vmatprep.subr.mxu0 0.0
        %2462 = vmatpush1.msra.mxu0 0.0
        %2463 = vmatprep.subr.mxu0 0.0
        %2464 = vmatpush1.msra.mxu0 0.0
        %2465 = vmatprep.subr.mxu0 0.0
        %2466 = vmatpush1.msra.mxu0 0.0
        %2467 = vmatprep.subr.mxu0 0.0
        %2468 = vmatpush1.msra.mxu0 0.0
        %2469 = vmatprep.subr.mxu0 0.0
        %2470 = vmatpush1.msra.mxu0 0.0
        %2471 = vmatprep.subr.mxu0 0.0
        %2472 = vmatpush1.msra.mxu0 0.0
        %2473 = vmatprep.subr.mxu0 0.0
        %2474 = vmatpush1.msra.mxu0 0.0
        %2475 = vmatprep.subr.mxu0 0.0
        %2476 = vmatpush1.msra.mxu0 0.0
        %2477 = vmatprep.subr.mxu0 0.0
        %2478 = vmatpush1.msra.mxu0 0.0
        %2479 = vmatprep.subr.mxu0 0.0
        %2480 = vmatpush1.msra.mxu0 0.0
        %2481 = vmatprep.subr.mxu0 0.0
        %2482 = vmatpush1.msra.mxu0 0.0
        %2483 = vmatprep.subr.mxu0 0.0
        %2484 = vmatpush1.msra.mxu0 0.0
        %2485 = vmatprep.subr.mxu0 0.0
        %2486 = vmatpush1.msra.mxu0 0.0
        %2487 = vmatprep.subr.mxu0 0.0
        %2488 = vmatpush1.msra.mxu0 0.0
        %2489 = vmatprep.mubr.f32.mxu0 0.0
        %2490 = vmatmul.mubr.f32.gmra.mrb[0].mxu0 %v2423
        %v2491 = vpop.f32.mrb[0].mxu0
        %v2492 = vadd.f32 0.0, %v2491
        %v2493 = vpop.f32.mrb[0].mxu0
        %2494 = vdwg.mxu0
        %vm2495 = vcmask 105472
        %2496 = vst.msk [vmem:[#allocation2] sm:$0xff] %vm2495, 0.0
        %2497 = vst.msk [vmem:[#allocation2 + $0x8] sm:$0xff] %vm2495, 0.0
        %2498 = vst.msk [vmem:[#allocation2 + $0x10] sm:$0xff] %vm2495, 0.0
        %2499 = vst.msk [vmem:[#allocation2 + $0x18] sm:$0xff] %vm2495, 0.0
        %2500 = vst.msk [vmem:[#allocation2 + $0x20] sm:$0xff] %vm2495, 0.0
        %2501 = vst.msk [vmem:[#allocation2 + $0x28] sm:$0xff] %vm2495, 0.0
        %2502 = vst.msk [vmem:[#allocation2] sm:$0xff] %vm2398, %v2393
        %2503 = vst.msk [vmem:[#allocation2 + $0x8] sm:$0xff] %vm2398, %v2395
        %2504 = vst.msk [vmem:[#allocation2 + $0x10] sm:$0xff] %vm2407, %v2402
        %2505 = vst.msk [vmem:[#allocation2 + $0x18] sm:$0xff] %vm2407, %v2404
        %2506 = vst.msk [vmem:[#allocation2 + $0x20] sm:$0xff] %vm1513, %v2371
        %2507 = vst.msk [vmem:[#allocation2 + $0x28] sm:$0xff] %vm1513, %v2372
        %v2508 = vld [vmem:[#allocation13] sm:$0xff]
        %v2509 = vld [vmem:[#allocation2] sm:$0xff]
        %v2510 = vld [vmem:[#allocation2 + $0x8] sm:$0xff]
        %v2511 = vld [vmem:[#allocation2 + $0x10] sm:$0xff]
        %v2512 = vld [vmem:[#allocation2 + $0x18] sm:$0xff]
        %v2513 = vld [vmem:[#allocation2 + $0x20] sm:$0xff]
        %v2514 = vld [vmem:[#allocation2 + $0x28] sm:$0xff]
        %vm2515 = vcmask 392192
        %v2517 = vsel %vm2515, %v2508, 0
        %2519 = vmatprep.subr.mxu0 0.0
        %2520 = vmatpush1.msra.mxu0 %v2509
        %2521 = vmatprep.subr.mxu0 0.0
        %2522 = vmatpush1.msra.mxu0 %v2510
        %2523 = vmatprep.subr.mxu0 0.0
        %2524 = vmatpush1.msra.mxu0 %v2511
        %2525 = vmatprep.subr.mxu0 0.0
        %2526 = vmatpush1.msra.mxu0 %v2512
        %2527 = vmatprep.subr.mxu0 0.0
        %2528 = vmatpush1.msra.mxu0 %v2513
        %2529 = vmatprep.subr.mxu0 0.0
        %2530 = vmatpush1.msra.mxu0 %v2514
        %2531 = vmatprep.subr.mxu0 0.0
        %2532 = vmatpush1.msra.mxu0 0.0
        %2533 = vmatprep.subr.mxu0 0.0
        %2534 = vmatpush1.msra.mxu0 0.0
        %2535 = vmatprep.subr.mxu0 0.0
        %2536 = vmatpush1.msra.mxu0 0.0
        %2537 = vmatprep.subr.mxu0 0.0
        %2538 = vmatpush1.msra.mxu0 0.0
        %2539 = vmatprep.subr.mxu0 0.0
        %2540 = vmatpush1.msra.mxu0 0.0
        %2541 = vmatprep.subr.mxu0 0.0
        %2542 = vmatpush1.msra.mxu0 0.0
        %2543 = vmatprep.subr.mxu0 0.0
        %2544 = vmatpush1.msra.mxu0 0.0
        %2545 = vmatprep.subr.mxu0 0.0
        %2546 = vmatpush1.msra.mxu0 0.0
        %2547 = vmatprep.subr.mxu0 0.0
        %2548 = vmatpush1.msra.mxu0 0.0
        %2549 = vmatprep.subr.mxu0 0.0
        %2550 = vmatpush1.msra.mxu0 0.0
        %2551 = vmatprep.subr.mxu0 0.0
        %2552 = vmatpush1.msra.mxu0 0.0
        %2553 = vmatprep.subr.mxu0 0.0
        %2554 = vmatpush1.msra.mxu0 0.0
        %2555 = vmatprep.subr.mxu0 0.0
        %2556 = vmatpush1.msra.mxu0 0.0
        %2557 = vmatprep.subr.mxu0 0.0
        %2558 = vmatpush1.msra.mxu0 0.0
        %2559 = vmatprep.subr.mxu0 0.0
        %2560 = vmatpush1.msra.mxu0 0.0
        %2561 = vmatprep.subr.mxu0 0.0
        %2562 = vmatpush1.msra.mxu0 0.0
        %2563 = vmatprep.subr.mxu0 0.0
        %2564 = vmatpush1.msra.mxu0 0.0
        %2565 = vmatprep.subr.mxu0 0.0
        %2566 = vmatpush1.msra.mxu0 0.0
        %2567 = vmatprep.subr.mxu0 0.0
        %2568 = vmatpush1.msra.mxu0 0.0
        %2569 = vmatprep.subr.mxu0 0.0
        %2570 = vmatpush1.msra.mxu0 0.0
        %2571 = vmatprep.subr.mxu0 0.0
        %2572 = vmatpush1.msra.mxu0 0.0
        %2573 = vmatprep.subr.mxu0 0.0
        %2574 = vmatpush1.msra.mxu0 0.0
        %2575 = vmatprep.subr.mxu0 0.0
        %2576 = vmatpush1.msra.mxu0 0.0
        %2577 = vmatprep.subr.mxu0 0.0
        %2578 = vmatpush1.msra.mxu0 0.0
        %2579 = vmatprep.subr.mxu0 0.0
        %2580 = vmatpush1.msra.mxu0 0.0
        %2581 = vmatprep.subr.mxu0 0.0
        %2582 = vmatpush1.msra.mxu0 0.0
        %2583 = vmatprep.mubr.f32.mxu0 0.0
        %2584 = vmatmul.mubr.f32.gmra.mrb[0].mxu0 %v2517
        %v2585 = vpop.f32.mrb[0].mxu0
        %v2586 = vadd.f32 0.0, %v2585
        %v2587 = vpop.f32.mrb[0].mxu0
        %2588 = vdwg.mxu0
        %v2589 = vld [vmem:[%s15] sm:$0xff]
        %v2590 = vld [vmem:[%s15 + $0x8] sm:$0x3f]
        %v2591 = vld [vmem:[%s16] sm:$0xff]
        %v2592 = vld [vmem:[%s16 + $0x8] sm:$0x1f]
        %v2594 = vsel %vm2495, %v2586, 0
        %v2597 = vsel %vm1728, %v2592, 0
        %2599 = vmatprep.subr.mxu0 0.0
        %2600 = vmatpush1.msra.mxu0 %v2591
        %2601 = vmatprep.subr.mxu0 0.0
        %2602 = vmatpush1.msra.mxu0 %v2597
        %2603 = vmatprep.subr.mxu0 0.0
        %2604 = vmatpush1.msra.mxu0 0.0
        %2605 = vmatprep.subr.mxu0 0.0
        %2606 = vmatpush1.msra.mxu0 0.0
        %2607 = vmatprep.subr.mxu0 0.0
        %2608 = vmatpush1.msra.mxu0 0.0
        %2609 = vmatprep.subr.mxu0 0.0
        %2610 = vmatpush1.msra.mxu0 0.0
        %2611 = vmatprep.subr.mxu0 0.0
        %2612 = vmatpush1.msra.mxu0 0.0
        %2613 = vmatprep.subr.mxu0 0.0
        %2614 = vmatpush1.msra.mxu0 0.0
        %2615 = vmatprep.subr.mxu0 0.0
        %2616 = vmatpush1.msra.mxu0 0.0
        %2617 = vmatprep.subr.mxu0 0.0
        %2618 = vmatpush1.msra.mxu0 0.0
        %2619 = vmatprep.subr.mxu0 0.0
        %2620 = vmatpush1.msra.mxu0 0.0
        %2621 = vmatprep.subr.mxu0 0.0
        %2622 = vmatpush1.msra.mxu0 0.0
        %2623 = vmatprep.subr.mxu0 0.0
        %2624 = vmatpush1.msra.mxu0 0.0
        %2625 = vmatprep.subr.mxu0 0.0
        %2626 = vmatpush1.msra.mxu0 0.0
        %2627 = vmatprep.subr.mxu0 0.0
        %2628 = vmatpush1.msra.mxu0 0.0
        %2629 = vmatprep.subr.mxu0 0.0
        %2630 = vmatpush1.msra.mxu0 0.0
        %2631 = vmatprep.subr.mxu0 0.0
        %2632 = vmatpush1.msra.mxu0 0.0
        %2633 = vmatprep.subr.mxu0 0.0
        %2634 = vmatpush1.msra.mxu0 0.0
        %2635 = vmatprep.subr.mxu0 0.0
        %2636 = vmatpush1.msra.mxu0 0.0
        %2637 = vmatprep.subr.mxu0 0.0
        %2638 = vmatpush1.msra.mxu0 0.0
        %2639 = vmatprep.subr.mxu0 0.0
        %2640 = vmatpush1.msra.mxu0 0.0
        %2641 = vmatprep.subr.mxu0 0.0
        %2642 = vmatpush1.msra.mxu0 0.0
        %2643 = vmatprep.subr.mxu0 0.0
        %2644 = vmatpush1.msra.mxu0 0.0
        %2645 = vmatprep.subr.mxu0 0.0
        %2646 = vmatpush1.msra.mxu0 0.0
        %2647 = vmatprep.subr.mxu0 0.0
        %2648 = vmatpush1.msra.mxu0 0.0
        %2649 = vmatprep.subr.mxu0 0.0
        %2650 = vmatpush1.msra.mxu0 0.0
        %2651 = vmatprep.subr.mxu0 0.0
        %2652 = vmatpush1.msra.mxu0 0.0
        %2653 = vmatprep.subr.mxu0 0.0
        %2654 = vmatpush1.msra.mxu0 0.0
        %2655 = vmatprep.subr.mxu0 0.0
        %2656 = vmatpush1.msra.mxu0 0.0
        %2657 = vmatprep.subr.mxu0 0.0
        %2658 = vmatpush1.msra.mxu0 0.0
        %2659 = vmatprep.subr.mxu0 0.0
        %2660 = vmatpush1.msra.mxu0 0.0
        %2661 = vmatprep.subr.mxu0 0.0
        %2662 = vmatpush1.msra.mxu0 0.0
        %2663 = vmatprep.mubr.f32.mxu0 0.0
        %2664 = vmatmul.mubr.f32.gmra.mrb[0].mxu0 %v2594
        %v2665 = vpop.f32.mrb[0].mxu0
        %v2666 = vadd.f32 0.0, %v2665
        %v2667 = vpop.f32.mrb[0].mxu0
        %2668 = vdwg.mxu0
        %v2670 = vsel %vm908, %v2492, 0
        %v2673 = vsel %vm912, %v2590, 0
        %2675 = vmatprep.subr.mxu0 0.0
        %2676 = vmatpush1.msra.mxu0 %v2589
        %2677 = vmatprep.subr.mxu0 0.0
        %2678 = vmatpush1.msra.mxu0 %v2673
        %2679 = vmatprep.subr.mxu0 0.0
        %2680 = vmatpush1.msra.mxu0 0.0
        %2681 = vmatprep.subr.mxu0 0.0
        %2682 = vmatpush1.msra.mxu0 0.0
        %2683 = vmatprep.subr.mxu0 0.0
        %2684 = vmatpush1.msra.mxu0 0.0
        %2685 = vmatprep.subr.mxu0 0.0
        %2686 = vmatpush1.msra.mxu0 0.0
        %2687 = vmatprep.subr.mxu0 0.0
        %2688 = vmatpush1.msra.mxu0 0.0
        %2689 = vmatprep.subr.mxu0 0.0
        %2690 = vmatpush1.msra.mxu0 0.0
        %2691 = vmatprep.subr.mxu0 0.0
        %2692 = vmatpush1.msra.mxu0 0.0
        %2693 = vmatprep.subr.mxu0 0.0
        %2694 = vmatpush1.msra.mxu0 0.0
        %2695 = vmatprep.subr.mxu0 0.0
        %2696 = vmatpush1.msra.mxu0 0.0
        %2697 = vmatprep.subr.mxu0 0.0
        %2698 = vmatpush1.msra.mxu0 0.0
        %2699 = vmatprep.subr.mxu0 0.0
        %2700 = vmatpush1.msra.mxu0 0.0
        %2701 = vmatprep.subr.mxu0 0.0
        %2702 = vmatpush1.msra.mxu0 0.0
        %2703 = vmatprep.subr.mxu0 0.0
        %2704 = vmatpush1.msra.mxu0 0.0
        %2705 = vmatprep.subr.mxu0 0.0
        %2706 = vmatpush1.msra.mxu0 0.0
        %2707 = vmatprep.subr.mxu0 0.0
        %2708 = vmatpush1.msra.mxu0 0.0
        %2709 = vmatprep.subr.mxu0 0.0
        %2710 = vmatpush1.msra.mxu0 0.0
        %2711 = vmatprep.subr.mxu0 0.0
        %2712 = vmatpush1.msra.mxu0 0.0
        %2713 = vmatprep.subr.mxu0 0.0
        %2714 = vmatpush1.msra.mxu0 0.0
        %2715 = vmatprep.subr.mxu0 0.0
        %2716 = vmatpush1.msra.mxu0 0.0
        %2717 = vmatprep.subr.mxu0 0.0
        %2718 = vmatpush1.msra.mxu0 0.0
        %2719 = vmatprep.subr.mxu0 0.0
        %2720 = vmatpush1.msra.mxu0 0.0
        %2721 = vmatprep.subr.mxu0 0.0
        %2722 = vmatpush1.msra.mxu0 0.0
        %2723 = vmatprep.subr.mxu0 0.0
        %2724 = vmatpush1.msra.mxu0 0.0
        %2725 = vmatprep.subr.mxu0 0.0
        %2726 = vmatpush1.msra.mxu0 0.0
        %2727 = vmatprep.subr.mxu0 0.0
        %2728 = vmatpush1.msra.mxu0 0.0
        %2729 = vmatprep.subr.mxu0 0.0
        %2730 = vmatpush1.msra.mxu0 0.0
        %2731 = vmatprep.subr.mxu0 0.0
        %2732 = vmatpush1.msra.mxu0 0.0
        %2733 = vmatprep.subr.mxu0 0.0
        %2734 = vmatpush1.msra.mxu0 0.0
        %2735 = vmatprep.subr.mxu0 0.0
        %2736 = vmatpush1.msra.mxu0 0.0
        %2737 = vmatprep.subr.mxu0 0.0
        %2738 = vmatpush1.msra.mxu0 0.0
        %2739 = vmatprep.mubr.f32.mxu0 0.0
        %2740 = vmatmul.mubr.f32.gmra.mrb[0].mxu0 %v2670
        %v2741 = vpop.f32.mrb[0].mxu0
        %v2742 = vadd.f32 %v2666, %v2741
        %v2743 = vpop.f32.mrb[0].mxu0
        %2744 = vdwg.mxu0
        %vm2745 = vcmask 220160
        %v2746 = vsel %vm2745, %v2742, 0.0
        %2747 = vadd.xlane.f32.xlu0 %v2746
        %v2748 = vpop.xlane.xlu0 %2747
        %v2749 = vmul.f32 %v2742, %v2742
        %v2750 = vsel %vm2745, %v2749, 0.0
        %2751 = vadd.xlane.f32.xlu0 %v2750
        %v2752 = vpop.xlane.xlu0 %2751
        %v2753 = vmul.f32 %v2748, 0.037037037
        %v2754 = vmul.f32 %v2752, 0.037037037
        %v2755 = vmul.f32 %v2753, %v2753
        %v2756 = vsub.f32 %v2754, %v2755
        %v2757 = vsub.f32 %v2742, %v2753
        %v2758 = vadd.f32 %v2756, 1e-05
        %v2759 = vrsqrt.pop %v2758
        %v2760 = vmul.f32 %v2757, %v2759
        %v2761 = vmax.f32 %v2760, 0.0
        %vm2762 = vcmask 244736
        %2763 = vst.msk [vmem:[#allocation2] sm:$0xff] %vm2762, 0.0
        %2764 = vst.msk [vmem:[#allocation2 + $0x8] sm:$0xff] %vm2762, 0.0
        %2765 = vst.msk [vmem:[#allocation2 + $0x10] sm:$0xff] %vm2762, 0.0
        %2766 = vst.msk [vmem:[#allocation2 + $0x18] sm:$0xff] %vm2762, 0.0
        %2768 = vrot.lane.b32.xlu0 %v2761, 3
        %v2769 = vpop.permute.xlu0 %2768
        %vm2771 = vcmask 244760
        %2772 = vst.msk [vmem:[#allocation2] sm:$0xff] %vm2771, %v2769
        %2773 = vrot.lane.b32.xlu0 %v2761, 2
        %v2774 = vpop.permute.xlu0 %2773
        %vm2776 = vcmask 236560
        %2777 = vst.msk [vmem:[#allocation2 + $0x8] sm:$0xff] %vm2776, %v2774
        %2778 = vrot.lane.b32.xlu0 %v2761, 1
        %v2779 = vpop.permute.xlu0 %2778
        %vm2781 = vcmask 228360
        %2782 = vst.msk [vmem:[#allocation2 + $0x10] sm:$0xff] %vm2781, %v2779
        %2783 = vst.msk [vmem:[#allocation2 + $0x18] sm:$0xff] %vm2745, %v2761
        %v2784 = vld [vmem:[#allocation15] sm:$0xf]
        %v2785 = vld [vmem:[#allocation2] sm:$0xff]
        %v2786 = vld [vmem:[#allocation2 + $0x8] sm:$0xff]
        %v2787 = vld [vmem:[#allocation2 + $0x10] sm:$0xff]
        %v2788 = vld [vmem:[#allocation2 + $0x18] sm:$0xff]
        %vm2789 = vcmask 261120
        %v2791 = vsel %vm2789, %v2784, 0
        %2793 = vmatprep.subr.mxu0 0.0
        %2794 = vmatpush1.msra.mxu0 %v2785
        %2795 = vmatprep.subr.mxu0 0.0
        %2796 = vmatpush1.msra.mxu0 %v2786
        %2797 = vmatprep.subr.mxu0 0.0
        %2798 = vmatpush1.msra.mxu0 %v2787
        %2799 = vmatprep.subr.mxu0 0.0
        %2800 = vmatpush1.msra.mxu0 %v2788
        %2801 = vmatprep.subr.mxu0 0.0
        %2802 = vmatpush1.msra.mxu0 0.0
        %2803 = vmatprep.subr.mxu0 0.0
        %2804 = vmatpush1.msra.mxu0 0.0
        %2805 = vmatprep.subr.mxu0 0.0
        %2806 = vmatpush1.msra.mxu0 0.0
        %2807 = vmatprep.subr.mxu0 0.0
        %2808 = vmatpush1.msra.mxu0 0.0
        %2809 = vmatprep.subr.mxu0 0.0
        %2810 = vmatpush1.msra.mxu0 0.0
        %2811 = vmatprep.subr.mxu0 0.0
        %2812 = vmatpush1.msra.mxu0 0.0
        %2813 = vmatprep.subr.mxu0 0.0
        %2814 = vmatpush1.msra.mxu0 0.0
        %2815 = vmatprep.subr.mxu0 0.0
        %2816 = vmatpush1.msra.mxu0 0.0
        %2817 = vmatprep.subr.mxu0 0.0
        %2818 = vmatpush1.msra.mxu0 0.0
        %2819 = vmatprep.subr.mxu0 0.0
        %2820 = vmatpush1.msra.mxu0 0.0
        %2821 = vmatprep.subr.mxu0 0.0
        %2822 = vmatpush1.msra.mxu0 0.0
        %2823 = vmatprep.subr.mxu0 0.0
        %2824 = vmatpush1.msra.mxu0 0.0
        %2825 = vmatprep.subr.mxu0 0.0
        %2826 = vmatpush1.msra.mxu0 0.0
        %2827 = vmatprep.subr.mxu0 0.0
        %2828 = vmatpush1.msra.mxu0 0.0
        %2829 = vmatprep.subr.mxu0 0.0
        %2830 = vmatpush1.msra.mxu0 0.0
        %2831 = vmatprep.subr.mxu0 0.0
        %2832 = vmatpush1.msra.mxu0 0.0
        %2833 = vmatprep.subr.mxu0 0.0
        %2834 = vmatpush1.msra.mxu0 0.0
        %2835 = vmatprep.subr.mxu0 0.0
        %2836 = vmatpush1.msra.mxu0 0.0
        %2837 = vmatprep.subr.mxu0 0.0
        %2838 = vmatpush1.msra.mxu0 0.0
        %2839 = vmatprep.subr.mxu0 0.0
        %2840 = vmatpush1.msra.mxu0 0.0
        %2841 = vmatprep.subr.mxu0 0.0
        %2842 = vmatpush1.msra.mxu0 0.0
        %2843 = vmatprep.subr.mxu0 0.0
        %2844 = vmatpush1.msra.mxu0 0.0
        %2845 = vmatprep.subr.mxu0 0.0
        %2846 = vmatpush1.msra.mxu0 0.0
        %2847 = vmatprep.subr.mxu0 0.0
        %2848 = vmatpush1.msra.mxu0 0.0
        %2849 = vmatprep.subr.mxu0 0.0
        %2850 = vmatpush1.msra.mxu0 0.0
        %2851 = vmatprep.subr.mxu0 0.0
        %2852 = vmatpush1.msra.mxu0 0.0
        %2853 = vmatprep.subr.mxu0 0.0
        %2854 = vmatpush1.msra.mxu0 0.0
        %2855 = vmatprep.subr.mxu0 0.0
        %2856 = vmatpush1.msra.mxu0 0.0
        %2857 = vmatprep.mubr.f32.mxu0 0.0
        %2858 = vmatmul.mubr.f32.gmra.mrb[0].mxu0 %v2791
        %v2859 = vpop.f32.mrb[0].mxu0
        %v2860 = vadd.f32 0.0, %v2859
        %v2861 = vpop.f32.mrb[0].mxu0
        %2862 = vdwg.mxu0
        %vm2863 = vcmask 236544
        %2864 = vst.msk [vmem:[#allocation2] sm:$0xff] %vm2863, 0.0
        %2865 = vst.msk [vmem:[#allocation2 + $0x8] sm:$0xff] %vm2863, 0.0
        %2866 = vst.msk [vmem:[#allocation2 + $0x10] sm:$0xff] %vm2863, 0.0
        %2867 = vst.msk [vmem:[#allocation2] sm:$0xff] %vm2776, %v2774
        %2868 = vst.msk [vmem:[#allocation2 + $0x8] sm:$0xff] %vm2781, %v2779
        %2869 = vst.msk [vmem:[#allocation2 + $0x10] sm:$0xff] %vm2745, %v2761
        %v2870 = vld [vmem:[%s18] sm:$0xf]
        %v2871 = vld [vmem:[#allocation2] sm:$0xff]
        %v2872 = vld [vmem:[#allocation2 + $0x8] sm:$0xff]
        %v2873 = vld [vmem:[#allocation2 + $0x10] sm:$0xff]
        %vm2874 = vcmask 195584
        %v2876 = vsel %vm2874, %v2870, 0
        %2878 = vmatprep.subr.mxu0 0.0
        %2879 = vmatpush1.msra.mxu0 %v2871
        %2880 = vmatprep.subr.mxu0 0.0
        %2881 = vmatpush1.msra.mxu0 %v2872
        %2882 = vmatprep.subr.mxu0 0.0
        %2883 = vmatpush1.msra.mxu0 %v2873
        %2884 = vmatprep.subr.mxu0 0.0
        %2885 = vmatpush1.msra.mxu0 0.0
        %2886 = vmatprep.subr.mxu0 0.0
        %2887 = vmatpush1.msra.mxu0 0.0
        %2888 = vmatprep.subr.mxu0 0.0
        %2889 = vmatpush1.msra.mxu0 0.0
        %2890 = vmatprep.subr.mxu0 0.0
        %2891 = vmatpush1.msra.mxu0 0.0
        %2892 = vmatprep.subr.mxu0 0.0
        %2893 = vmatpush1.msra.mxu0 0.0
        %2894 = vmatprep.subr.mxu0 0.0
        %2895 = vmatpush1.msra.mxu0 0.0
        %2896 = vmatprep.subr.mxu0 0.0
        %2897 = vmatpush1.msra.mxu0 0.0
        %2898 = vmatprep.subr.mxu0 0.0
        %2899 = vmatpush1.msra.mxu0 0.0
        %2900 = vmatprep.subr.mxu0 0.0
        %2901 = vmatpush1.msra.mxu0 0.0
        %2902 = vmatprep.subr.mxu0 0.0
        %2903 = vmatpush1.msra.mxu0 0.0
        %2904 = vmatprep.subr.mxu0 0.0
        %2905 = vmatpush1.msra.mxu0 0.0
        %2906 = vmatprep.subr.mxu0 0.0
        %2907 = vmatpush1.msra.mxu0 0.0
        %2908 = vmatprep.subr.mxu0 0.0
        %2909 = vmatpush1.msra.mxu0 0.0
        %2910 = vmatprep.subr.mxu0 0.0
        %2911 = vmatpush1.msra.mxu0 0.0
        %2912 = vmatprep.subr.mxu0 0.0
        %2913 = vmatpush1.msra.mxu0 0.0
        %2914 = vmatprep.subr.mxu0 0.0
        %2915 = vmatpush1.msra.mxu0 0.0
        %2916 = vmatprep.subr.mxu0 0.0
        %2917 = vmatpush1.msra.mxu0 0.0
        %2918 = vmatprep.subr.mxu0 0.0
        %2919 = vmatpush1.msra.mxu0 0.0
        %2920 = vmatprep.subr.mxu0 0.0
        %2921 = vmatpush1.msra.mxu0 0.0
        %2922 = vmatprep.subr.mxu0 0.0
        %2923 = vmatpush1.msra.mxu0 0.0
        %2924 = vmatprep.subr.mxu0 0.0
        %2925 = vmatpush1.msra.mxu0 0.0
        %2926 = vmatprep.subr.mxu0 0.0
        %2927 = vmatpush1.msra.mxu0 0.0
        %2928 = vmatprep.subr.mxu0 0.0
        %2929 = vmatpush1.msra.mxu0 0.0
        %2930 = vmatprep.subr.mxu0 0.0
        %2931 = vmatpush1.msra.mxu0 0.0
        %2932 = vmatprep.subr.mxu0 0.0
        %2933 = vmatpush1.msra.mxu0 0.0
        %2934 = vmatprep.subr.mxu0 0.0
        %2935 = vmatpush1.msra.mxu0 0.0
        %2936 = vmatprep.subr.mxu0 0.0
        %2937 = vmatpush1.msra.mxu0 0.0
        %2938 = vmatprep.subr.mxu0 0.0
        %2939 = vmatpush1.msra.mxu0 0.0
        %2940 = vmatprep.subr.mxu0 0.0
        %2941 = vmatpush1.msra.mxu0 0.0
        %2942 = vmatprep.mubr.f32.mxu0 0.0
        %2943 = vmatmul.mubr.f32.gmra.mrb[0].mxu0 %v2876
        %v2944 = vpop.f32.mrb[0].mxu0
        %v2945 = vadd.f32 0.0, %v2944
        %v2946 = vpop.f32.mrb[0].mxu0
        %2947 = vdwg.mxu0
        %v2948 = vld [vmem:[%s19] sm:$0xff]
        %v2949 = vld [vmem:[%s19 + $0x8] sm:$0xff]
        %v2950 = vld [vmem:[%s19 + $0x10] sm:$0xff]
        %v2951 = vld [vmem:[%s19 + $0x18] sm:$0x3f]
        %v2952 = vld [vmem:[%s20] sm:$0xff]
        %v2953 = vld [vmem:[%s20 + $0x8] sm:$0xff]
        %v2954 = vld [vmem:[%s20 + $0x10] sm:$0xff]
        %v2955 = vld [vmem:[%s20 + $0x18] sm:$0x1f]
        %v2957 = vsel %vm2863, %v2945, 0
        %v2960 = vsel %vm1728, %v2955, 0
        %2962 = vmatprep.subr.mxu0 0.0
        %2963 = vmatpush1.msra.mxu0 %v2952
        %2964 = vmatprep.subr.mxu0 0.0
        %2965 = vmatpush1.msra.mxu0 %v2953
        %2966 = vmatprep.subr.mxu0 0.0
        %2967 = vmatpush1.msra.mxu0 %v2954
        %2968 = vmatprep.subr.mxu0 0.0
        %2969 = vmatpush1.msra.mxu0 %v2960
        %2970 = vmatprep.subr.mxu0 0.0
        %2971 = vmatpush1.msra.mxu0 0.0
        %2972 = vmatprep.subr.mxu0 0.0
        %2973 = vmatpush1.msra.mxu0 0.0
        %2974 = vmatprep.subr.mxu0 0.0
        %2975 = vmatpush1.msra.mxu0 0.0
        %2976 = vmatprep.subr.mxu0 0.0
        %2977 = vmatpush1.msra.mxu0 0.0
        %2978 = vmatprep.subr.mxu0 0.0
        %2979 = vmatpush1.msra.mxu0 0.0
        %2980 = vmatprep.subr.mxu0 0.0
        %2981 = vmatpush1.msra.mxu0 0.0
        %2982 = vmatprep.subr.mxu0 0.0
        %2983 = vmatpush1.msra.mxu0 0.0
        %2984 = vmatprep.subr.mxu0 0.0
        %2985 = vmatpush1.msra.mxu0 0.0
        %2986 = vmatprep.subr.mxu0 0.0
        %2987 = vmatpush1.msra.mxu0 0.0
        %2988 = vmatprep.subr.mxu0 0.0
        %2989 = vmatpush1.msra.mxu0 0.0
        %2990 = vmatprep.subr.mxu0 0.0
        %2991 = vmatpush1.msra.mxu0 0.0
        %2992 = vmatprep.subr.mxu0 0.0
        %2993 = vmatpush1.msra.mxu0 0.0
        %2994 = vmatprep.subr.mxu0 0.0
        %2995 = vmatpush1.msra.mxu0 0.0
        %2996 = vmatprep.subr.mxu0 0.0
        %2997 = vmatpush1.msra.mxu0 0.0
        %2998 = vmatprep.subr.mxu0 0.0
        %2999 = vmatpush1.msra.mxu0 0.0
        %3000 = vmatprep.subr.mxu0 0.0
        %3001 = vmatpush1.msra.mxu0 0.0
        %3002 = vmatprep.subr.mxu0 0.0
        %3003 = vmatpush1.msra.mxu0 0.0
        %3004 = vmatprep.subr.mxu0 0.0
        %3005 = vmatpush1.msra.mxu0 0.0
        %3006 = vmatprep.subr.mxu0 0.0
        %3007 = vmatpush1.msra.mxu0 0.0
        %3008 = vmatprep.subr.mxu0 0.0
        %3009 = vmatpush1.msra.mxu0 0.0
        %3010 = vmatprep.subr.mxu0 0.0
        %3011 = vmatpush1.msra.mxu0 0.0
        %3012 = vmatprep.subr.mxu0 0.0
        %3013 = vmatpush1.msra.mxu0 0.0
        %3014 = vmatprep.subr.mxu0 0.0
        %3015 = vmatpush1.msra.mxu0 0.0
        %3016 = vmatprep.subr.mxu0 0.0
        %3017 = vmatpush1.msra.mxu0 0.0
        %3018 = vmatprep.subr.mxu0 0.0
        %3019 = vmatpush1.msra.mxu0 0.0
        %3020 = vmatprep.subr.mxu0 0.0
        %3021 = vmatpush1.msra.mxu0 0.0
        %3022 = vmatprep.subr.mxu0 0.0
        %3023 = vmatpush1.msra.mxu0 0.0
        %3024 = vmatprep.subr.mxu0 0.0
        %3025 = vmatpush1.msra.mxu0 0.0
        %3026 = vmatprep.mubr.f32.mxu0 0.0
        %3027 = vmatmul.mubr.f32.gmra.mrb[0].mxu0 %v2957
        %v3028 = vpop.f32.mrb[0].mxu0
        %v3029 = vadd.f32 0.0, %v3028
        %v3030 = vpop.f32.mrb[0].mxu0
        %3031 = vdwg.mxu0
        %v3033 = vsel %vm2762, %v2860, 0
        %v3036 = vsel %vm912, %v2951, 0
        %3038 = vmatprep.subr.mxu0 0.0
        %3039 = vmatpush1.msra.mxu0 %v2948
        %3040 = vmatprep.subr.mxu0 0.0
        %3041 = vmatpush1.msra.mxu0 %v2949
        %3042 = vmatprep.subr.mxu0 0.0
        %3043 = vmatpush1.msra.mxu0 %v2950
        %3044 = vmatprep.subr.mxu0 0.0
        %3045 = vmatpush1.msra.mxu0 %v3036
        %3046 = vmatprep.subr.mxu0 0.0
        %3047 = vmatpush1.msra.mxu0 0.0
        %3048 = vmatprep.subr.mxu0 0.0
        %3049 = vmatpush1.msra.mxu0 0.0
        %3050 = vmatprep.subr.mxu0 0.0
        %3051 = vmatpush1.msra.mxu0 0.0
        %3052 = vmatprep.subr.mxu0 0.0
        %3053 = vmatpush1.msra.mxu0 0.0
        %3054 = vmatprep.subr.mxu0 0.0
        %3055 = vmatpush1.msra.mxu0 0.0
        %3056 = vmatprep.subr.mxu0 0.0
        %3057 = vmatpush1.msra.mxu0 0.0
        %3058 = vmatprep.subr.mxu0 0.0
        %3059 = vmatpush1.msra.mxu0 0.0
        %3060 = vmatprep.subr.mxu0 0.0
        %3061 = vmatpush1.msra.mxu0 0.0
        %3062 = vmatprep.subr.mxu0 0.0
        %3063 = vmatpush1.msra.mxu0 0.0
        %3064 = vmatprep.subr.mxu0 0.0
        %3065 = vmatpush1.msra.mxu0 0.0
        %3066 = vmatprep.subr.mxu0 0.0
        %3067 = vmatpush1.msra.mxu0 0.0
        %3068 = vmatprep.subr.mxu0 0.0
        %3069 = vmatpush1.msra.mxu0 0.0
        %3070 = vmatprep.subr.mxu0 0.0
        %3071 = vmatpush1.msra.mxu0 0.0
        %3072 = vmatprep.subr.mxu0 0.0
        %3073 = vmatpush1.msra.mxu0 0.0
        %3074 = vmatprep.subr.mxu0 0.0
        %3075 = vmatpush1.msra.mxu0 0.0
        %3076 = vmatprep.subr.mxu0 0.0
        %3077 = vmatpush1.msra.mxu0 0.0
        %3078 = vmatprep.subr.mxu0 0.0
        %3079 = vmatpush1.msra.mxu0 0.0
        %3080 = vmatprep.subr.mxu0 0.0
        %3081 = vmatpush1.msra.mxu0 0.0
        %3082 = vmatprep.subr.mxu0 0.0
        %3083 = vmatpush1.msra.mxu0 0.0
        %3084 = vmatprep.subr.mxu0 0.0
        %3085 = vmatpush1.msra.mxu0 0.0
        %3086 = vmatprep.subr.mxu0 0.0
        %3087 = vmatpush1.msra.mxu0 0.0
        %3088 = vmatprep.subr.mxu0 0.0
        %3089 = vmatpush1.msra.mxu0 0.0
        %3090 = vmatprep.subr.mxu0 0.0
        %3091 = vmatpush1.msra.mxu0 0.0
        %3092 = vmatprep.subr.mxu0 0.0
        %3093 = vmatpush1.msra.mxu0 0.0
        %3094 = vmatprep.subr.mxu0 0.0
        %3095 = vmatpush1.msra.mxu0 0.0
        %3096 = vmatprep.subr.mxu0 0.0
        %3097 = vmatpush1.msra.mxu0 0.0
        %3098 = vmatprep.subr.mxu0 0.0
        %3099 = vmatpush1.msra.mxu0 0.0
        %3100 = vmatprep.subr.mxu0 0.0
        %3101 = vmatpush1.msra.mxu0 0.0
        %3102 = vmatprep.mubr.f32.mxu0 0.0
        %3103 = vmatmul.mubr.f32.gmra.mrb[0].mxu0 %v3033
        %v3104 = vpop.f32.mrb[0].mxu0
        %v3105 = vadd.f32 %v3029, %v3104
        %v3106 = vpop.f32.mrb[0].mxu0
        %3107 = vdwg.mxu0
        %vm3108 = vcmask 478208
        %v3109 = vsel %vm3108, %v3105, 0.0
        %3110 = vadd.xlane.f32.xlu0 %v3109
        %v3111 = vpop.xlane.xlu0 %3110
        %v3112 = vmul.f32 %v3105, %v3105
        %v3113 = vsel %vm3108, %v3112, 0.0
        %3114 = vadd.xlane.f32.xlu0 %v3113
        %v3115 = vpop.xlane.xlu0 %3114
        %v3116 = vmul.f32 %v3111, 0.016949153
        %v3117 = vmul.f32 %v3115, 0.016949153
        %v3118 = vmul.f32 %v3116, %v3116
        %v3119 = vsub.f32 %v3117, %v3118
        %v3120 = vsub.f32 %v3105, %v3116
        %v3121 = vadd.f32 %v3119, 1e-05
        %v3122 = vrsqrt.pop %v3121
        %v3123 = vmul.f32 %v3120, %v3122
        %v3124 = vmax.f32 %v3123, 0.0
        %vm3125 = vcmask 506880
        %3126 = vst.msk [vmem:[#allocation2] sm:$0xff] %vm3125, 0.0
        %3127 = vst.msk [vmem:[#allocation2 + $0x8] sm:$0xff] %vm3125, 0.0
        %3129 = vrot.lane.b32.xlu0 %v3124, 3
        %v3130 = vpop.permute.xlu0 %3129
        %vm3132 = vcmask 502808
        %3133 = vst.msk [vmem:[#allocation2] sm:$0xf] %vm3132, %v3130
        %3134 = vrot.lane.b32.xlu0 %v3124, 2
        %v3135 = vpop.permute.xlu0 %3134
        %vm3137 = vcmask 494608
        %3138 = vst.msk [vmem:[#allocation2 + $0x4] sm:$0xf] %vm3137, %v3135
        %3139 = vrot.lane.b32.xlu0 %v3124, 1
        %v3140 = vpop.permute.xlu0 %3139
        %vm3142 = vcmask 486408
        %3143 = vst.msk [vmem:[#allocation2 + $0x8] sm:$0xf] %vm3142, %v3140
        %3144 = vst.msk [vmem:[#allocation2 + $0xc] sm:$0xf] %vm3108, %v3124
        %v3145 = vld [vmem:[%s21] sm:$0x1]
        %v3146 = vld [vmem:[#allocation2] sm:$0xff]
        %v3147 = vld [vmem:[#allocation2 + $0x8] sm:$0xff]
        %vm3148 = vcmask 130048
        %v3150 = vsel %vm3148, %v3145, 0
        %3152 = vmatprep.subr.mxu0 0.0
        %3153 = vmatpush1.msra.mxu0 %v3146
        %3154 = vmatprep.subr.mxu0 0.0
        %3155 = vmatpush1.msra.mxu0 %v3147
        %3156 = vmatprep.subr.mxu0 0.0
        %3157 = vmatpush1.msra.mxu0 0.0
        %3158 = vmatprep.subr.mxu0 0.0
        %3159 = vmatpush1.msra.mxu0 0.0
        %3160 = vmatprep.subr.mxu0 0.0
        %3161 = vmatpush1.msra.mxu0 0.0
        %3162 = vmatprep.subr.mxu0 0.0
        %3163 = vmatpush1.msra.mxu0 0.0
        %3164 = vmatprep.subr.mxu0 0.0
        %3165 = vmatpush1.msra.mxu0 0.0
        %3166 = vmatprep.subr.mxu0 0.0
        %3167 = vmatpush1.msra.mxu0 0.0
        %3168 = vmatprep.subr.mxu0 0.0
        %3169 = vmatpush1.msra.mxu0 0.0
        %3170 = vmatprep.subr.mxu0 0.0
        %3171 = vmatpush1.msra.mxu0 0.0
        %3172 = vmatprep.subr.mxu0 0.0
        %3173 = vmatpush1.msra.mxu0 0.0
        %3174 = vmatprep.subr.mxu0 0.0
        %3175 = vmatpush1.msra.mxu0 0.0
        %3176 = vmatprep.subr.mxu0 0.0
        %3177 = vmatpush1.msra.mxu0 0.0
        %3178 = vmatprep.subr.mxu0 0.0
        %3179 = vmatpush1.msra.mxu0 0.0
        %3180 = vmatprep.subr.mxu0 0.0
        %3181 = vmatpush1.msra.mxu0 0.0
        %3182 = vmatprep.subr.mxu0 0.0
        %3183 = vmatpush1.msra.mxu0 0.0
        %3184 = vmatprep.subr.mxu0 0.0
        %3185 = vmatpush1.msra.mxu0 0.0
        %3186 = vmatprep.subr.mxu0 0.0
        %3187 = vmatpush1.msra.mxu0 0.0
        %3188 = vmatprep.subr.mxu0 0.0
        %3189 = vmatpush1.msra.mxu0 0.0
        %3190 = vmatprep.subr.mxu0 0.0
        %3191 = vmatpush1.msra.mxu0 0.0
        %3192 = vmatprep.subr.mxu0 0.0
        %3193 = vmatpush1.msra.mxu0 0.0
        %3194 = vmatprep.subr.mxu0 0.0
        %3195 = vmatpush1.msra.mxu0 0.0
        %3196 = vmatprep.subr.mxu0 0.0
        %3197 = vmatpush1.msra.mxu0 0.0
        %3198 = vmatprep.subr.mxu0 0.0
        %3199 = vmatpush1.msra.mxu0 0.0
        %3200 = vmatprep.subr.mxu0 0.0
        %3201 = vmatpush1.msra.mxu0 0.0
        %3202 = vmatprep.subr.mxu0 0.0
        %3203 = vmatpush1.msra.mxu0 0.0
        %3204 = vmatprep.subr.mxu0 0.0
        %3205 = vmatpush1.msra.mxu0 0.0
        %3206 = vmatprep.subr.mxu0 0.0
        %3207 = vmatpush1.msra.mxu0 0.0
        %3208 = vmatprep.subr.mxu0 0.0
        %3209 = vmatpush1.msra.mxu0 0.0
        %3210 = vmatprep.subr.mxu0 0.0
        %3211 = vmatpush1.msra.mxu0 0.0
        %3212 = vmatprep.subr.mxu0 0.0
        %3213 = vmatpush1.msra.mxu0 0.0
        %3214 = vmatprep.subr.mxu0 0.0
        %3215 = vmatpush1.msra.mxu0 0.0
        %3216 = vmatprep.mubr.f32.mxu0 0.0
        %3217 = vmatmul.mubr.f32.gmra.mrb[0].mxu0 %v3150
        %v3218 = vpop.f32.mrb[0].mxu0
        %v3219 = vadd.f32 0.0, %v3218
        %v3220 = vpop.f32.mrb[0].mxu0
        %3221 = vdwg.mxu0
        %vm3222 = vcmask 498688
        %3223 = vst.msk [vmem:[#allocation2] sm:$0xff] %vm3222, 0.0
        %3224 = vst.msk [vmem:[#allocation2 + $0x8] sm:$0xf] %vm1080, 0.0
        %3225 = vst.msk [vmem:[#allocation2] sm:$0xf] %vm3137, %v3135
        %3226 = vst.msk [vmem:[#allocation2 + $0x4] sm:$0xf] %vm3142, %v3140
        %3227 = vst.msk [vmem:[#allocation2 + $0x8] sm:$0xf] %vm3108, %v3124
        %v3228 = vld [vmem:[%s22] sm:$0x1]
        %v3229 = vld [vmem:[#allocation2] sm:$0xff]
        %v3230 = vld [vmem:[#allocation2 + $0x8] sm:$0xf]
        %vm3231 = vcmask 97280
        %v3233 = vsel %vm3231, %v3228, 0
        %v3236 = vsel %vm1133, %v3230, 0
        %3238 = vmatprep.subr.mxu0 0.0
        %3239 = vmatpush1.msra.mxu0 %v3229
        %3240 = vmatprep.subr.mxu0 0.0
        %3241 = vmatpush1.msra.mxu0 %v3236
        %3242 = vmatprep.subr.mxu0 0.0
        %3243 = vmatpush1.msra.mxu0 0.0
        %3244 = vmatprep.subr.mxu0 0.0
        %3245 = vmatpush1.msra.mxu0 0.0
        %3246 = vmatprep.subr.mxu0 0.0
        %3247 = vmatpush1.msra.mxu0 0.0
        %3248 = vmatprep.subr.mxu0 0.0
        %3249 = vmatpush1.msra.mxu0 0.0
        %3250 = vmatprep.subr.mxu0 0.0
        %3251 = vmatpush1.msra.mxu0 0.0
        %3252 = vmatprep.subr.mxu0 0.0
        %3253 = vmatpush1.msra.mxu0 0.0
        %3254 = vmatprep.subr.mxu0 0.0
        %3255 = vmatpush1.msra.mxu0 0.0
        %3256 = vmatprep.subr.mxu0 0.0
        %3257 = vmatpush1.msra.mxu0 0.0
        %3258 = vmatprep.subr.mxu0 0.0
        %3259 = vmatpush1.msra.mxu0 0.0
        %3260 = vmatprep.subr.mxu0 0.0
        %3261 = vmatpush1.msra.mxu0 0.0
        %3262 = vmatprep.subr.mxu0 0.0
        %3263 = vmatpush1.msra.mxu0 0.0
        %3264 = vmatprep.subr.mxu0 0.0
        %3265 = vmatpush1.msra.mxu0 0.0
        %3266 = vmatprep.subr.mxu0 0.0
        %3267 = vmatpush1.msra.mxu0 0.0
        %3268 = vmatprep.subr.mxu0 0.0
        %3269 = vmatpush1.msra.mxu0 0.0
        %3270 = vmatprep.subr.mxu0 0.0
        %3271 = vmatpush1.msra.mxu0 0.0
        %3272 = vmatprep.subr.mxu0 0.0
        %3273 = vmatpush1.msra.mxu0 0.0
        %3274 = vmatprep.subr.mxu0 0.0
        %3275 = vmatpush1.msra.mxu0 0.0
        %3276 = vmatprep.subr.mxu0 0.0
        %3277 = vmatpush1.msra.mxu0 0.0
        %3278 = vmatprep.subr.mxu0 0.0
        %3279 = vmatpush1.msra.mxu0 0.0
        %3280 = vmatprep.subr.mxu0 0.0
        %3281 = vmatpush1.msra.mxu0 0.0
        %3282 = vmatprep.subr.mxu0 0.0
        %3283 = vmatpush1.msra.mxu0 0.0
        %3284 = vmatprep.subr.mxu0 0.0
        %3285 = vmatpush1.msra.mxu0 0.0
        %3286 = vmatprep.subr.mxu0 0.0
        %3287 = vmatpush1.msra.mxu0 0.0
        %3288 = vmatprep.subr.mxu0 0.0
        %3289 = vmatpush1.msra.mxu0 0.0
        %3290 = vmatprep.subr.mxu0 0.0
        %3291 = vmatpush1.msra.mxu0 0.0
        %3292 = vmatprep.subr.mxu0 0.0
        %3293 = vmatpush1.msra.mxu0 0.0
        %3294 = vmatprep.subr.mxu0 0.0
        %3295 = vmatpush1.msra.mxu0 0.0
        %3296 = vmatprep.subr.mxu0 0.0
        %3297 = vmatpush1.msra.mxu0 0.0
        %3298 = vmatprep.subr.mxu0 0.0
        %3299 = vmatpush1.msra.mxu0 0.0
        %3300 = vmatprep.subr.mxu0 0.0
        %3301 = vmatpush1.msra.mxu0 0.0
        %3302 = vmatprep.mubr.f32.mxu0 0.0
        %3303 = vmatmul.mubr.f32.gmra.mrb[0].mxu0 %v3233
        %v3304 = vpop.f32.mrb[0].mxu0
        %v3305 = vadd.f32 0.0, %v3304
        %v3306 = vpop.f32.mrb[0].mxu0
        %3307 = vdwg.mxu0
        %v3308 = vld [vmem:[%s23] sm:$0xff]
        %v3309 = vld [vmem:[%s23 + $0x8] sm:$0xff]
        %v3310 = vld [vmem:[%s23 + $0x10] sm:$0xff]
        %v3311 = vld [vmem:[%s23 + $0x18] sm:$0xff]
        %v3312 = vld [vmem:[%s23 + $0x20] sm:$0xff]
        %v3313 = vld [vmem:[%s23 + $0x28] sm:$0xff]
        %v3314 = vld [vmem:[%s23 + $0x30] sm:$0xff]
        %v3315 = vld [vmem:[%s23 + $0x38] sm:$0x3f]
        %v3316 = vld [vmem:[%s24] sm:$0xff]
        %v3317 = vld [vmem:[%s24 + $0x8] sm:$0xff]
        %v3318 = vld [vmem:[%s24 + $0x10] sm:$0xff]
        %v3319 = vld [vmem:[%s24 + $0x18] sm:$0xff]
        %v3320 = vld [vmem:[%s24 + $0x20] sm:$0xff]
        %v3321 = vld [vmem:[%s24 + $0x28] sm:$0xff]
        %v3322 = vld [vmem:[%s24 + $0x30] sm:$0xff]
        %v3323 = vld [vmem:[%s24 + $0x38] sm:$0x1f]
        %v3325 = vsel %vm3222, %v3305, 0
        %v3328 = vsel %vm1728, %v3323, 0
        %3330 = vmatprep.subr.mxu0 0.0
        %3331 = vmatpush1.msra.mxu0 %v3316
        %3332 = vmatprep.subr.mxu0 0.0
        %3333 = vmatpush1.msra.mxu0 %v3317
        %3334 = vmatprep.subr.mxu0 0.0
        %3335 = vmatpush1.msra.mxu0 %v3318
        %3336 = vmatprep.subr.mxu0 0.0
        %3337 = vmatpush1.msra.mxu0 %v3319
        %3338 = vmatprep.subr.mxu0 0.0
        %3339 = vmatpush1.msra.mxu0 %v3320
        %3340 = vmatprep.subr.mxu0 0.0
        %3341 = vmatpush1.msra.mxu0 %v3321
        %3342 = vmatprep.subr.mxu0 0.0
        %3343 = vmatpush1.msra.mxu0 %v3322
        %3344 = vmatprep.subr.mxu0 0.0
        %3345 = vmatpush1.msra.mxu0 %v3328
        %3346 = vmatprep.subr.mxu0 0.0
        %3347 = vmatpush1.msra.mxu0 0.0
        %3348 = vmatprep.subr.mxu0 0.0
        %3349 = vmatpush1.msra.mxu0 0.0
        %3350 = vmatprep.subr.mxu0 0.0
        %3351 = vmatpush1.msra.mxu0 0.0
        %3352 = vmatprep.subr.mxu0 0.0
        %3353 = vmatpush1.msra.mxu0 0.0
        %3354 = vmatprep.subr.mxu0 0.0
        %3355 = vmatpush1.msra.mxu0 0.0
        %3356 = vmatprep.subr.mxu0 0.0
        %3357 = vmatpush1.msra.mxu0 0.0
        %3358 = vmatprep.subr.mxu0 0.0
        %3359 = vmatpush1.msra.mxu0 0.0
        %3360 = vmatprep.subr.mxu0 0.0
        %3361 = vmatpush1.msra.mxu0 0.0
        %3362 = vmatprep.subr.mxu0 0.0
        %3363 = vmatpush1.msra.mxu0 0.0
        %3364 = vmatprep.subr.mxu0 0.0
        %3365 = vmatpush1.msra.mxu0 0.0
        %3366 = vmatprep.subr.mxu0 0.0
        %3367 = vmatpush1.msra.mxu0 0.0
        %3368 = vmatprep.subr.mxu0 0.0
        %3369 = vmatpush1.msra.mxu0 0.0
        %3370 = vmatprep.subr.mxu0 0.0
        %3371 = vmatpush1.msra.mxu0 0.0
        %3372 = vmatprep.subr.mxu0 0.0
        %3373 = vmatpush1.msra.mxu0 0.0
        %3374 = vmatprep.subr.mxu0 0.0
        %3375 = vmatpush1.msra.mxu0 0.0
        %3376 = vmatprep.subr.mxu0 0.0
        %3377 = vmatpush1.msra.mxu0 0.0
        %3378 = vmatprep.subr.mxu0 0.0
        %3379 = vmatpush1.msra.mxu0 0.0
        %3380 = vmatprep.subr.mxu0 0.0
        %3381 = vmatpush1.msra.mxu0 0.0
        %3382 = vmatprep.subr.mxu0 0.0
        %3383 = vmatpush1.msra.mxu0 0.0
        %3384 = vmatprep.subr.mxu0 0.0
        %3385 = vmatpush1.msra.mxu0 0.0
        %3386 = vmatprep.subr.mxu0 0.0
        %3387 = vmatpush1.msra.mxu0 0.0
        %3388 = vmatprep.subr.mxu0 0.0
        %3389 = vmatpush1.msra.mxu0 0.0
        %3390 = vmatprep.subr.mxu0 0.0
        %3391 = vmatpush1.msra.mxu0 0.0
        %3392 = vmatprep.subr.mxu0 0.0
        %3393 = vmatpush1.msra.mxu0 0.0
        %3394 = vmatprep.mubr.f32.mxu0 0.0
        %3395 = vmatmul.mubr.f32.gmra.mrb[0].mxu0 %v3325
        %v3396 = vpop.f32.mrb[0].mxu0
        %v3397 = vadd.f32 0.0, %v3396
        %v3398 = vpop.f32.mrb[0].mxu0
        %3399 = vdwg.mxu0
        %v3401 = vsel %vm3125, %v3219, 0
        %v3404 = vsel %vm912, %v3315, 0
        %3406 = vmatprep.subr.mxu0 0.0
        %3407 = vmatpush1.msra.mxu0 %v3308
        %3408 = vmatprep.subr.mxu0 0.0
        %3409 = vmatpush1.msra.mxu0 %v3309
        %3410 = vmatprep.subr.mxu0 0.0
        %3411 = vmatpush1.msra.mxu0 %v3310
        %3412 = vmatprep.subr.mxu0 0.0
        %3413 = vmatpush1.msra.mxu0 %v3311
        %3414 = vmatprep.subr.mxu0 0.0
        %3415 = vmatpush1.msra.mxu0 %v3312
        %3416 = vmatprep.subr.mxu0 0.0
        %3417 = vmatpush1.msra.mxu0 %v3313
        %3418 = vmatprep.subr.mxu0 0.0
        %3419 = vmatpush1.msra.mxu0 %v3314
        %3420 = vmatprep.subr.mxu0 0.0
        %3421 = vmatpush1.msra.mxu0 %v3404
        %3422 = vmatprep.subr.mxu0 0.0
        %3423 = vmatpush1.msra.mxu0 0.0
        %3424 = vmatprep.subr.mxu0 0.0
        %3425 = vmatpush1.msra.mxu0 0.0
        %3426 = vmatprep.subr.mxu0 0.0
        %3427 = vmatpush1.msra.mxu0 0.0
        %3428 = vmatprep.subr.mxu0 0.0
        %3429 = vmatpush1.msra.mxu0 0.0
        %3430 = vmatprep.subr.mxu0 0.0
        %3431 = vmatpush1.msra.mxu0 0.0
        %3432 = vmatprep.subr.mxu0 0.0
        %3433 = vmatpush1.msra.mxu0 0.0
        %3434 = vmatprep.subr.mxu0 0.0
        %3435 = vmatpush1.msra.mxu0 0.0
        %3436 = vmatprep.subr.mxu0 0.0
        %3437 = vmatpush1.msra.mxu0 0.0
        %3438 = vmatprep.subr.mxu0 0.0
        %3439 = vmatpush1.msra.mxu0 0.0
        %3440 = vmatprep.subr.mxu0 0.0
        %3441 = vmatpush1.msra.mxu0 0.0
        %3442 = vmatprep.subr.mxu0 0.0
        %3443 = vmatpush1.msra.mxu0 0.0
        %3444 = vmatprep.subr.mxu0 0.0
        %3445 = vmatpush1.msra.mxu0 0.0
        %3446 = vmatprep.subr.mxu0 0.0
        %3447 = vmatpush1.msra.mxu0 0.0
        %3448 = vmatprep.subr.mxu0 0.0
        %3449 = vmatpush1.msra.mxu0 0.0
        %3450 = vmatprep.subr.mxu0 0.0
        %3451 = vmatpush1.msra.mxu0 0.0
        %3452 = vmatprep.subr.mxu0 0.0
        %3453 = vmatpush1.msra.mxu0 0.0
        %3454 = vmatprep.subr.mxu0 0.0
        %3455 = vmatpush1.msra.mxu0 0.0
        %3456 = vmatprep.subr.mxu0 0.0
        %3457 = vmatpush1.msra.mxu0 0.0
        %3458 = vmatprep.subr.mxu0 0.0
        %3459 = vmatpush1.msra.mxu0 0.0
        %3460 = vmatprep.subr.mxu0 0.0
        %3461 = vmatpush1.msra.mxu0 0.0
        %3462 = vmatprep.subr.mxu0 0.0
        %3463 = vmatpush1.msra.mxu0 0.0
        %3464 = vmatprep.subr.mxu0 0.0
        %3465 = vmatpush1.msra.mxu0 0.0
        %3466 = vmatprep.subr.mxu0 0.0
        %3467 = vmatpush1.msra.mxu0 0.0
        %3468 = vmatprep.subr.mxu0 0.0
        %3469 = vmatpush1.msra.mxu0 0.0
        %3470 = vmatprep.mubr.f32.mxu0 0.0
        %3471 = vmatmul.mubr.f32.gmra.mrb[0].mxu0 %v3401
        %v3472 = vpop.f32.mrb[0].mxu0
        %v3473 = vadd.f32 %v3397, %v3472
        %v3474 = vpop.f32.mrb[0].mxu0
        %3475 = vdwg.mxu0
        %v3476 = vld [vmem:[#allocation3] sm:$0x1]
        %3478 = vset.pattern.permute.xlu0 0
        %3479 = vperm.xlu0 %3478, %v3476
        %v3480 = vpop.permute.xlu0 %3479
        %v3482 = vlaneseq
        %v3483 = vshrl.u32 %v3482, 7
        %v3484 = vsub.s32 0, %v3483
        %v3485 = vrot.slane %v3480, %v3484
        %v3486 = vadd.f32 %v3473, %v3485
        %3487 = vst [vmem:[%s871] sm:$0x1] 0.0
        %vm3488 = vcmask 999424
        %3489 = vst.msk [vmem:[%s871] sm:$0x1] %vm3488, %v3486
        %s3490 = sand.u32 %s605, 1
        %s3491 = scalar_lea.sflag [#allocation6], %s3490
        %s3492 = sand.u32 %s605, 1
        %s3493 = scalar_lea.vmem [#allocation16], %s3492
        // Predicated region
        $region153: #{conv_8_layer_forward.1} parent=123 // pred_check
          %p3494 = pneg %p615
        $region154: #{conv_8_layer_forward.1} parent=123 // pred_check_branch
          %3496 = sbr.rel (%p3494) target = $region156
        $region155: #{conv_8_layer_forward.1} parent=123 // pred_region
          %s3498 = ssub.s32 16, 16
          %3499 = vsyncadd %s3491, %s3498
          %s3500 = smul.addr %s46, 16
          %s3501 = scalar_lea.hbm %s26, %s3500
          %s3503 = sshll.u32 %s3493, 4
          %s3504 = int_to_ptr.vmem [resolvable:$true] %s3503
          %3506 = dma.vmem_to_hbm [thread:$0]  %s3504, 16, %s3501, %s3491
        $region156: #{conv_8_layer_forward.1} parent=123 // pred_fallthru
          _
      $region124: #{conv_8_layer_forward.1} parent=5 // pred_fallthru
        _
      %p3507 = scmp.le.s32.totalorder 2, %s41
      // Predicated region
      $region157: #{conv_8_layer_forward.1} parent=5 // pred_check
        %p3508 = pneg %p3507
      $region158: #{conv_8_layer_forward.1} parent=5 // pred_check_branch
        %3510 = sbr.rel (%p3508) target = $region160
      $region159: #{conv_8_layer_forward.1} parent=5 // pred_region
        %s3511 = ssub.s32 %s41, 2
        // Predicated region
        $region161: #{conv_8_layer_forward.1} parent=159 // pred_check
          %p3512 = pneg %p621
        $region162: #{conv_8_layer_forward.1} parent=159 // pred_check_branch
          %3514 = sbr.rel (%p3512) target = $region164
        $region163: #{conv_8_layer_forward.1} parent=159 // pred_region
          %s3515 = sand.u32 %s606, 1
          %s3516 = scalar_lea.sflag [#allocation6], %s3515
          %s3517 = sand.u32 %s606, 1
          %s3518 = scalar_lea.vmem [#allocation16], %s3517
          %3519 = dma.done %s3516, 16
        $region164: #{conv_8_layer_forward.1} parent=159 // pred_fallthru
          _
      $region160: #{conv_8_layer_forward.1} parent=5 // pred_fallthru
        _
    $region6: #{conv_8_layer_forward.1} parent=1 // loop_footer
      %s45 = sadd.s32 1, %s41
    $region7: #{conv_8_layer_forward.1} parent=1 // loop_footer_branch
      %40 = sbr.rel target = $region3
    $region8: #{conv_8_layer_forward.1} parent=1 // loop_exit
      _
    %3520 = vsyncpa [#allocation5], 1
    %s3521 = scalar_lea.sflag [#allocation5], 1
    %3522 = vsyncpa %s3521, 1
    %3523 = vsyncpa [#allocation8], 1
    %3524 = vsyncpa [#allocation11], 1
    %3525 = vsyncpa [#allocation14], 1
    %3526 = vsyncpa [#allocation6], 1
    %s3527 = scalar_lea.sflag [#allocation6], 1
    %3528 = vsyncpa %s3527, 1

</llo_original>
